<compile_context>
chip_gen: v7x
topology: tpu7x:2x2x1
jax: 0.10.0
libtpu: 0.0.40
codegen_flags: <defaults>
</compile_context>

<pallas_src>
import functools
import numpy as np
import jax
import jax.numpy as jnp
from jax.experimental import pallas as pl
from jax.experimental.pallas import tpu as pltpu


def _round_up(x, m):
    return (x + m - 1) // m * m


# --------------------------------------------------------------------------
# Fused Pallas kernel: whole ValueNet forward (single invocation, no grid)
# --------------------------------------------------------------------------

def _value_net_kernel(feat_ref, add_ref, ent_w_ref, ee_w_ref, wqkv_ref, wu_ref,
                      wf1_ref, wf2_ref, bias_e_ref, bias_w_ref, out_ref,
                      *, depth, heads, bl, t, e, w_ff, eps=1e-5):
    rows = bl * t
    he = heads * e
    scale = 1.0 / (e ** 0.25)

    # -- entity embeddings (own/enemy/ally linears + history passthrough) fused
    #    into one banded matmul; `add` carries the per-row bias or hidden state.
    x = jnp.dot(feat_ref[...], ent_w_ref[...],
                preferred_element_type=jnp.float32) + add_ref[...]

    # -- transformer token embedding (e -> e)
    x = jnp.dot(x, ee_w_ref[0], preferred_element_type=jnp.float32) + bias_e_ref[0:1, :]

    # -- block-diagonal additive attention mask built in-kernel (no HBM DMA).
    #    Batch id per row computed as a sum of threshold compares (no int div).
    ri = jax.lax.broadcasted_iota(jnp.int32, (rows, 1), 0)
    ci = jax.lax.broadcasted_iota(jnp.int32, (1, rows), 1)
    bid_r = jnp.zeros((rows, 1), jnp.int32)
    bid_c = jnp.zeros((1, rows), jnp.int32)
    for k in range(1, bl):
        bid_r = bid_r + (ri >= k * t).astype(jnp.int32)
        bid_c = bid_c + (ci >= k * t).astype(jnp.int32)
    mask = jnp.where(bid_r == bid_c, 0.0, -1e30)          # [rows, rows]

    def layernorm(z, g, b):
        mu = jnp.mean(z, axis=-1, keepdims=True)
        var = jnp.mean((z - mu) ** 2, axis=-1, keepdims=True)
        return (z - mu) * jax.lax.rsqrt(var + eps) * g + b

    for d in range(depth):
        wqkv = wqkv_ref[d]                 # [e, 3*heads*e]
        wu = wu_ref[d]                     # [heads*e, e]
        wf1 = wf1_ref[d]                   # [e, w_ff]   (zero-padded past 4e)
        wf2 = wf2_ref[d]                   # [w_ff, e]   (zero rows past 4e)
        bf1 = bias_w_ref[d:d + 1, :]       # [1, w_ff]
        bb = 3 + 6 * d
        bu = bias_e_ref[bb:bb + 1, :]
        g1, b1 = bias_e_ref[bb + 1:bb + 2, :], bias_e_ref[bb + 2:bb + 3, :]
        bf2 = bias_e_ref[bb + 3:bb + 4, :]
        g2, b2 = bias_e_ref[bb + 4:bb + 5, :], bias_e_ref[bb + 5:bb + 6, :]

        # fused 192-wide QKV projection: one MXU push instead of 3*heads
        qkv = jnp.dot(x, wqkv, preferred_element_type=jnp.float32)

        attended = None
        for hd in range(heads):
            qh = qkv[:, hd * e:(hd + 1) * e] * scale
            kh = qkv[:, he + hd * e:he + (hd + 1) * e] * scale
            vh = qkv[:, 2 * he + hd * e:2 * he + (hd + 1) * e]
            logits = jax.lax.dot_general(qh, kh, (((1,), (1,)), ((), ())),
                                         preferred_element_type=jnp.float32) + mask
            logits = logits - jnp.max(logits, axis=-1, keepdims=True)
            p = jnp.exp(logits)
            p = p / jnp.sum(p, axis=-1, keepdims=True)     # exact softmax
            ho = jnp.dot(p, vh, preferred_element_type=jnp.float32)
            # accumulate through per-head row-slices of wu (no lane concat)
            contrib = jnp.dot(ho, wu[hd * e:(hd + 1) * e, :],
                              preferred_element_type=jnp.float32)
            attended = contrib if attended is None else attended + contrib
        attended = attended + bu

        x1 = layernorm(attended + x, g1, b1)
        ff = jnp.maximum(jnp.dot(x1, wf1, preferred_element_type=jnp.float32) + bf1, 0.0)
        ff = jnp.dot(ff, wf2, preferred_element_type=jnp.float32) + bf2
        x = layernorm(ff + x1, g2, b2)

    # -- gather first (reward) / last (h) token rows with a one-hot selection
    #    matmul BEFORE toprobs (toprobs then runs on 2*bl rows, not rows).
    nsel = 2 * bl
    ris = jax.lax.broadcasted_iota(jnp.int32, (nsel, 1), 0)
    cis = jax.lax.broadcasted_iota(jnp.int32, (1, rows), 1)
    tgt = jnp.where(ris < bl, ris * t, (ris - bl) * t + (t - 1))   # [nsel, 1]
    sel_mat = jnp.where(cis == tgt, 1.0, 0.0)                      # [nsel, rows]
    sel = jnp.dot(sel_mat, x, preferred_element_type=jnp.float32)  # [2*bl, e]

    outp = jnp.dot(sel, ee_w_ref[1],
                   preferred_element_type=jnp.float32) + bias_e_ref[1:2, :]
    first = outp[:bl, :]        # toprobs output of token 0   -> reward branch
    last = outp[bl:, :]         # toprobs output of last token -> h

    # -- reward MLP: e -> 128 (ReLU) -> 1 ; second layer done as a lane reduce
    #    against rw2^T stored as a row of the 128-wide bias slab.
    rw1 = wf1_ref[depth]                    # [e, w_ff]
    rb1 = bias_w_ref[depth:depth + 1, :]    # [1, w_ff]
    rw2_row = bias_w_ref[depth + 1:depth + 2, :]   # [1, w_ff] (= rw2_w^T, zero-padded)
    rb2 = bias_e_ref[2:3, 0:1]              # [1, 1]
    r = jnp.maximum(jnp.dot(first, rw1, preferred_element_type=jnp.float32) + rb1, 0.0)
    reward = jnp.sum(r * rw2_row, axis=-1, keepdims=True) + rb2    # [bl, 1]

    # -- single lane-dense output block: h in lanes [0,e), reward replicated
    #    in lanes [e,2e), rest zero.
    pad = jnp.zeros((bl, out_ref.shape[1] - 2 * e), jnp.float32)
    out_ref[...] = jnp.concatenate(
        [last, jnp.broadcast_to(reward, (bl, e)), pad], axis=-1).astype(out_ref.dtype)


def fused_value_net_call(feat, add, weights, *, bl, t, e, depth, heads, w_ff):
    out_w = 128
    rows = bl * t
    he = heads * e
    d_feat = feat.shape[1]

    # advisory cost estimate so XLA schedules sensibly around the custom call
    flops = 2 * rows * d_feat * e + 2 * rows * e * e
    flops += depth * (2 * rows * e * 3 * he
                      + heads * (4 * rows * rows * e + 2 * rows * e * e)
                      + 4 * rows * e * w_ff)
    flops += 2 * (2 * bl) * rows * e + 2 * (2 * bl) * e * e + 2 * bl * e * w_ff + 2 * bl * w_ff
    transcendentals = depth * heads * rows * rows + 2 * depth * rows
    bytes_accessed = sum(int(np.prod(a.shape)) * 4 for a in (feat, add, *weights))
    bytes_accessed += bl * out_w * 4

    kernel = functools.partial(_value_net_kernel, depth=depth, heads=heads,
                               bl=bl, t=t, e=e, w_ff=w_ff)
    out = pl.pallas_call(
        kernel,
        out_shape=jax.ShapeDtypeStruct((bl, out_w), jnp.float32),
        in_specs=[pl.BlockSpec(memory_space=pltpu.MemorySpace.VMEM)] * (2 + len(weights)),
        out_specs=pl.BlockSpec(memory_space=pltpu.MemorySpace.VMEM),
        cost_estimate=pl.CostEstimate(flops=int(flops),
                                      transcendentals=int(transcendentals),
                                      bytes_accessed=int(bytes_accessed)),
    )(feat, add, *weights)
    reward = out[:, e:e + 1]
    h = out[:, :e]
    return reward, h


# --------------------------------------------------------------------------
# Parameter setup & obs decomposition (plain JAX / numpy glue)
# --------------------------------------------------------------------------

def binary_embed(x, bit_num, max_num):
    assert x <= max_num
    bits = [int(c) for c in format(x, 'b').zfill(bit_num)]
    return np.asarray(bits[-bit_num:], dtype=np.float32)


def _lin_init(key, fan_in, fan_out):
    k1, k2 = jax.random.split(key)
    w = jax.random.normal(k1, (fan_in, fan_out), jnp.float32) * 0.1
    b = jax.random.normal(k2, (fan_out,), jnp.float32) * 0.01
    return w, b


def init_params(key, cfg):
    e = cfg['entity_embed_dim']
    heads = cfg['head']
    wrapped_own = cfg['own_obs_dim'] + cfg['id_length'] + cfg['n_actions_no_attack'] + 1
    en_dim = cfg['obs_nf_en'] + 1
    al_dim = cfg['obs_nf_al']

    keys = jax.random.split(key, 10 + 8 * cfg['depth'])
    ki = iter(keys)
    params = {}
    params['al_w'], params['al_b'] = _lin_init(next(ki), al_dim, e)
    params['en_w'], params['en_b'] = _lin_init(next(ki), en_dim, e)
    params['own_w'], params['own_b'] = _lin_init(next(ki), wrapped_own, e)
    params['tok_w'], params['tok_b'] = _lin_init(next(ki), e, e)
    params['toprobs_w'], params['toprobs_b'] = _lin_init(next(ki), e, e)
    params['qsk_w'], params['qsk_b'] = _lin_init(next(ki), e, cfg['skill_dim'])  # unused in fwd
    params['rw1_w'], params['rw1_b'] = _lin_init(next(ki), e, 128)
    params['rw2_w'], params['rw2_b'] = _lin_init(next(ki), 128, 1)

    blocks = []
    for _ in range(cfg['depth']):
        blk = {}
        wq = jax.random.normal(next(ki), (e, heads * e), jnp.float32) * 0.1
        wk = jax.random.normal(next(ki), (e, heads * e), jnp.float32) * 0.1
        wv = jax.random.normal(next(ki), (e, heads * e), jnp.float32) * 0.1
        blk['wqkv'] = jnp.concatenate([wq, wk, wv], axis=1)      # [e, 3*heads*e]
        blk['wu'], blk['bu'] = _lin_init(next(ki), heads * e, e)
        blk['wf1'], blk['bf1'] = _lin_init(next(ki), e, 4 * e)
        blk['wf2'], blk['bf2'] = _lin_init(next(ki), 4 * e, e)
        blk['g1'] = jnp.ones((e,), jnp.float32)
        blk['b1'] = jnp.zeros((e,), jnp.float32)
        blk['g2'] = jnp.ones((e,), jnp.float32)
        blk['b2'] = jnp.zeros((e,), jnp.float32)
        blocks.append(blk)
    params['blocks'] = blocks
    return params


def value_net_forward(params, inputs, hidden_state, cfg):
    e = cfg['entity_embed_dim']
    heads = cfg['head']
    depth = cfg['depth']
    own_dim = cfg['own_obs_dim']
    n_en, nf_en = cfg['n_enemies'], cfg['obs_nf_en']
    n_al, nf_al = cfg['n_allies'], cfg['obs_nf_al']
    nna = cfg['n_actions_no_attack']
    n_agents = cfg['n_agents']
    obs_dim = own_dim + n_en * nf_en + n_al * nf_al
    la_shape = nna + n_en
    t = 1 + n_en + n_al + 1                       # [own | enemies | allies | history]
    w_ff = max(4 * e, 128)

    obs_inputs = inputs[:, :obs_dim]
    last_action_inputs = inputs[:, obs_dim:obs_dim + la_shape]
    # NOTE: trailing agent-id one-hot in `inputs` is ignored; ids are regenerated
    # below exactly like the reference encode() (batch-major / agent-minor rows).

    own_obs = obs_inputs[:, :own_dim]
    enemy_feats = obs_inputs[:, own_dim:own_dim + n_en * nf_en].reshape(-1, n_en, nf_en)
    ally_feats = obs_inputs[:, own_dim + n_en * nf_en:].reshape(-1, n_al, nf_al)

    B = own_obs.shape[0]
    bs = B // n_agents
    ids = np.stack([binary_embed(i + 1, cfg['id_length'], cfg['max_agent'])
                    for i in range(n_agents)], axis=0)
    agent_id_inputs = jnp.tile(jnp.asarray(ids, jnp.float32), (bs, 1))

    attack_action_info = last_action_inputs[:, nna:]
    compact_action_states = jnp.concatenate(
        [last_action_inputs[:, :nna], attack_action_info.sum(-1, keepdims=True)], axis=-1)

    own_obs_w = jnp.concatenate([own_obs, agent_id_inputs, compact_action_states], axis=-1)
    enemy_feats = jnp.concatenate([enemy_feats, attack_action_info[..., None]], axis=-1)
    hist = hidden_state.reshape(B, e)

    d_own, d_en, d_al = own_obs_w.shape[-1], enemy_feats.shape[-1], ally_feats.shape[-1]
    d_own_p, d_en_p, d_al_p = _round_up(d_own, 8), _round_up(d_en, 8), _round_up(d_al, 8)
    d_feat = d_own_p + d_en_p + d_al_p            # sublane-aligned band offsets

    # pack entity features into disjoint, 8-aligned column bands (token order per
    # batch element = [own, enemies..., allies..., history])
    feat_own = jnp.pad(own_obs_w, ((0, 0), (0, d_feat - d_own)))[:, None, :]
    feat_en = jnp.pad(enemy_feats, ((0, 0), (0, 0), (d_own_p, d_feat - d_own_p - d_en)))
    feat_al = jnp.pad(ally_feats, ((0, 0), (0, 0), (d_own_p + d_en_p, d_al_p - d_al)))
    feat_hist = jnp.zeros((B, 1, d_feat), jnp.float32)
    feat = jnp.concatenate([feat_own, feat_en, feat_al, feat_hist],
                           axis=1).reshape(B * t, d_feat)

    # per-row additive term: entity bias, or the history hidden state itself
    add = jnp.concatenate([
        jnp.broadcast_to(params['own_b'], (B, 1, e)),
        jnp.broadcast_to(params['en_b'], (B, n_en, e)),
        jnp.broadcast_to(params['al_b'], (B, n_al, e)),
        hist[:, None, :],
    ], axis=1).reshape(B * t, e)

    ent_w = jnp.concatenate([
        jnp.pad(params['own_w'], ((0, d_own_p - d_own), (0, 0))),
        jnp.pad(params['en_w'], ((0, d_en_p - d_en), (0, 0))),
        jnp.pad(params['al_w'], ((0, d_al_p - d_al), (0, 0))),
    ], axis=0)                                                    # [d_feat, e]

    # ---- pack the ~30 weight/bias tensors into 8 slabs (fewer, larger DMAs)
    blocks = params['blocks']
    ee_w = jnp.stack([params['tok_w'], params['toprobs_w']], axis=0)          # [2,e,e]
    wqkv_all = jnp.stack([blk['wqkv'] for blk in blocks], axis=0)             # [depth,e,3he]
    wu_all = jnp.stack([blk['wu'] for blk in blocks], axis=0)                 # [depth,he,e]
    wf1_all = jnp.stack(
        [jnp.pad(blk['wf1'], ((0, 0), (0, w_ff - 4 * e))) for blk in blocks]
        + [jnp.pad(params['rw1_w'], ((0, 0), (0, w_ff - 128)))], axis=0)      # [depth+1,e,w_ff]
    wf2_all = jnp.stack(
        [jnp.pad(blk['wf2'], ((0, w_ff - 4 * e), (0, 0))) for blk in blocks], axis=0)

    bias_e_rows = [params['tok_b'], params['toprobs_b'],
                   jnp.broadcast_to(params['rw2_b'], (e,))]
    for blk in blocks:
        bias_e_rows += [blk['bu'], blk['g1'], blk['b1'], blk['bf2'], blk['g2'], blk['b2']]
    bias_e = jnp.stack(bias_e_rows, axis=0)                                   # [3+6*depth, e]

    bias_w_rows = ([jnp.pad(blk['bf1'], (0, w_ff - 4 * e)) for blk in blocks]
                   + [jnp.pad(params['rw1_b'], (0, w_ff - 128)),
                      jnp.pad(params['rw2_w'][:, 0], (0, w_ff - 128))])
    bias_w = jnp.stack(bias_w_rows, axis=0)                                   # [depth+2, w_ff]

    weights = (ent_w, ee_w, wqkv_all, wu_all, wf1_all, wf2_all, bias_e, bias_w)
    reward, h2d = fused_value_net_call(feat, add, weights, bl=B, t=t, e=e,
                                       depth=depth, heads=heads, w_ff=w_ff)
    return reward, h2d.reshape(B, 1, e)


# --------------------------------------------------------------------------
# Main
# --------------------------------------------------------------------------

if __name__ == "__main__":
    cfg = dict(
        entity_embed_dim=32, attn_embed_dim=32, skill_dim=4,
        head=2, depth=2, id_length=4, max_agent=8,
        own_obs_dim=10, obs_nf_en=6, obs_nf_al=5,
        n_actions_no_attack=6, n_enemies=5, n_allies=3, n_agents=4,
    )
    bs = 2
    n_agents = cfg['n_agents']
    obs_dim = cfg['own_obs_dim'] + cfg['n_enemies'] * cfg['obs_nf_en'] \
        + cfg['n_allies'] * cfg['obs_nf_al']
    last_action_shape = cfg['n_actions_no_attack'] + cfg['n_enemies']
    input_dim = obs_dim + last_action_shape + n_agents   # trailing agent-id one-hot (ignored)

    key = jax.random.PRNGKey(0)
    kp, kx = jax.random.split(key)
    params = init_params(kp, cfg)

    inputs = jax.random.normal(kx, (bs * n_agents, input_dim), jnp.float32)
    hidden_state = jnp.zeros((bs * n_agents, cfg['entity_embed_dim']), jnp.float32)

    fwd = jax.jit(lambda p, x, h: value_net_forward(p, x, h, cfg))
    reward, h = fwd(params, inputs, hidden_state)
    reward = jax.block_until_ready(reward)
    h = jax.block_until_ready(h)

    assert reward.shape == (bs * n_agents, 1)
    assert h.shape == (bs * n_agents, 1, cfg['entity_embed_dim'])
    assert bool(jnp.all(jnp.isfinite(reward))) and bool(jnp.all(jnp.isfinite(h)))
    print("KERNEL_OK")
</pallas_src>

<mosaic_0001>
module attributes {stable_mosaic.version = 11 : i64} {
  func.func @_value_net_kernel(%arg0: memref<80x40xf32, #tpu.memory_space<vmem>>, %arg1: memref<80x32xf32, #tpu.memory_space<vmem>>, %arg2: memref<40x32xf32, #tpu.memory_space<vmem>>, %arg3: memref<2x32x32xf32, #tpu.memory_space<vmem>>, %arg4: memref<2x32x192xf32, #tpu.memory_space<vmem>>, %arg5: memref<2x64x32xf32, #tpu.memory_space<vmem>>, %arg6: memref<3x32x128xf32, #tpu.memory_space<vmem>>, %arg7: memref<2x128x32xf32, #tpu.memory_space<vmem>>, %arg8: memref<15x32xf32, #tpu.memory_space<vmem>>, %arg9: memref<4x128xf32, #tpu.memory_space<vmem>>, %arg10: memref<8x128xf32, #tpu.memory_space<vmem>>) attributes {dimension_semantics = [], scalar_prefetch = 0 : i64, scratch_operands = 0 : i64, tpu.core_type = #tpu.core_type<tc>} {
    %c0 = arith.constant 0 : index
    %c0_0 = arith.constant 0 : index
    %0 = vector.load %arg0[%c0, %c0_0] : memref<80x40xf32, #tpu.memory_space<vmem>>, vector<80x40xf32>
    %c0_1 = arith.constant 0 : index
    %c0_2 = arith.constant 0 : index
    %1 = vector.load %arg2[%c0_1, %c0_2] : memref<40x32xf32, #tpu.memory_space<vmem>>, vector<40x32xf32>
    %cst = arith.constant dense<0.000000e+00> : vector<80x32xf32>
    %2 = tpu.matmul %0, %1, %cst {dimension_numbers = #tpu.dot_dimension_numbers<[1], [0], [0], [1], [0, 0, 1, 1], [], []>} : vector<80x40xf32>, vector<40x32xf32>, vector<80x32xf32> -> vector<80x32xf32>
    %c0_3 = arith.constant 0 : index
    %c0_4 = arith.constant 0 : index
    %3 = vector.load %arg1[%c0_3, %c0_4] : memref<80x32xf32, #tpu.memory_space<vmem>>, vector<80x32xf32>
    %4 = arith.addf %2, %3 : vector<80x32xf32>
    %c0_5 = arith.constant 0 : index
    %c0_6 = arith.constant 0 : index
    %c0_7 = arith.constant 0 : index
    %5 = vector.load %arg3[%c0_5, %c0_6, %c0_7] : memref<2x32x32xf32, #tpu.memory_space<vmem>>, vector<1x32x32xf32>
    %6 = vector.shape_cast %5 : vector<1x32x32xf32> to vector<32x32xf32>
    %cst_8 = arith.constant dense<0.000000e+00> : vector<80x32xf32>
    %7 = tpu.matmul %4, %6, %cst_8 {dimension_numbers = #tpu.dot_dimension_numbers<[1], [0], [0], [1], [0, 0, 1, 1], [], []>} : vector<80x32xf32>, vector<32x32xf32>, vector<80x32xf32> -> vector<80x32xf32>
    %c0_9 = arith.constant 0 : index
    %c0_10 = arith.constant 0 : index
    %8 = vector.load %arg8[%c0_9, %c0_10] : memref<15x32xf32, #tpu.memory_space<vmem>>, vector<1x32xf32>
    %9 = vector.broadcast %8 : vector<1x32xf32> to vector<80x32xf32>
    %10 = arith.addf %7, %9 : vector<80x32xf32>
    %11 = tpu.iota {dimensions = array<i32: 0>} : vector<80x1xi32>
    %12 = tpu.iota {dimensions = array<i32: 1>} : vector<1x80xi32>
    %c0_i32 = arith.constant 0 : i32
    %13 = vector.broadcast %c0_i32 : i32 to vector<80x1xi32>
    %c0_i32_11 = arith.constant 0 : i32
    %14 = vector.broadcast %c0_i32_11 : i32 to vector<1x80xi32>
    %c10_i32 = arith.constant 10 : i32
    %15 = vector.broadcast %c10_i32 : i32 to vector<80x1xi32>
    %16 = arith.cmpi sge, %11, %15 : vector<80x1xi32>
    %17 = arith.extui %16 : vector<80x1xi1> to vector<80x1xi32>
    %18 = arith.addi %13, %17 : vector<80x1xi32>
    %c10_i32_12 = arith.constant 10 : i32
    %19 = vector.broadcast %c10_i32_12 : i32 to vector<1x80xi32>
    %20 = arith.cmpi sge, %12, %19 : vector<1x80xi32>
    %21 = arith.extui %20 : vector<1x80xi1> to vector<1x80xi32>
    %22 = arith.addi %14, %21 : vector<1x80xi32>
    %c20_i32 = arith.constant 20 : i32
    %23 = vector.broadcast %c20_i32 : i32 to vector<80x1xi32>
    %24 = arith.cmpi sge, %11, %23 : vector<80x1xi32>
    %25 = arith.extui %24 : vector<80x1xi1> to vector<80x1xi32>
    %26 = arith.addi %18, %25 : vector<80x1xi32>
    %c20_i32_13 = arith.constant 20 : i32
    %27 = vector.broadcast %c20_i32_13 : i32 to vector<1x80xi32>
    %28 = arith.cmpi sge, %12, %27 : vector<1x80xi32>
    %29 = arith.extui %28 : vector<1x80xi1> to vector<1x80xi32>
    %30 = arith.addi %22, %29 : vector<1x80xi32>
    %c30_i32 = arith.constant 30 : i32
    %31 = vector.broadcast %c30_i32 : i32 to vector<80x1xi32>
    %32 = arith.cmpi sge, %11, %31 : vector<80x1xi32>
    %33 = arith.extui %32 : vector<80x1xi1> to vector<80x1xi32>
    %34 = arith.addi %26, %33 : vector<80x1xi32>
    %c30_i32_14 = arith.constant 30 : i32
    %35 = vector.broadcast %c30_i32_14 : i32 to vector<1x80xi32>
    %36 = arith.cmpi sge, %12, %35 : vector<1x80xi32>
    %37 = arith.extui %36 : vector<1x80xi1> to vector<1x80xi32>
    %38 = arith.addi %30, %37 : vector<1x80xi32>
    %c40_i32 = arith.constant 40 : i32
    %39 = vector.broadcast %c40_i32 : i32 to vector<80x1xi32>
    %40 = arith.cmpi sge, %11, %39 : vector<80x1xi32>
    %41 = arith.extui %40 : vector<80x1xi1> to vector<80x1xi32>
    %42 = arith.addi %34, %41 : vector<80x1xi32>
    %c40_i32_15 = arith.constant 40 : i32
    %43 = vector.broadcast %c40_i32_15 : i32 to vector<1x80xi32>
    %44 = arith.cmpi sge, %12, %43 : vector<1x80xi32>
    %45 = arith.extui %44 : vector<1x80xi1> to vector<1x80xi32>
    %46 = arith.addi %38, %45 : vector<1x80xi32>
    %c50_i32 = arith.constant 50 : i32
    %47 = vector.broadcast %c50_i32 : i32 to vector<80x1xi32>
    %48 = arith.cmpi sge, %11, %47 : vector<80x1xi32>
    %49 = arith.extui %48 : vector<80x1xi1> to vector<80x1xi32>
    %50 = arith.addi %42, %49 : vector<80x1xi32>
    %c50_i32_16 = arith.constant 50 : i32
    %51 = vector.broadcast %c50_i32_16 : i32 to vector<1x80xi32>
    %52 = arith.cmpi sge, %12, %51 : vector<1x80xi32>
    %53 = arith.extui %52 : vector<1x80xi1> to vector<1x80xi32>
    %54 = arith.addi %46, %53 : vector<1x80xi32>
    %c60_i32 = arith.constant 60 : i32
    %55 = vector.broadcast %c60_i32 : i32 to vector<80x1xi32>
    %56 = arith.cmpi sge, %11, %55 : vector<80x1xi32>
    %57 = arith.extui %56 : vector<80x1xi1> to vector<80x1xi32>
    %58 = arith.addi %50, %57 : vector<80x1xi32>
    %c60_i32_17 = arith.constant 60 : i32
    %59 = vector.broadcast %c60_i32_17 : i32 to vector<1x80xi32>
    %60 = arith.cmpi sge, %12, %59 : vector<1x80xi32>
    %61 = arith.extui %60 : vector<1x80xi1> to vector<1x80xi32>
    %62 = arith.addi %54, %61 : vector<1x80xi32>
    %c70_i32 = arith.constant 70 : i32
    %63 = vector.broadcast %c70_i32 : i32 to vector<80x1xi32>
    %64 = arith.cmpi sge, %11, %63 : vector<80x1xi32>
    %65 = arith.extui %64 : vector<80x1xi1> to vector<80x1xi32>
    %66 = arith.addi %58, %65 : vector<80x1xi32>
    %c70_i32_18 = arith.constant 70 : i32
    %67 = vector.broadcast %c70_i32_18 : i32 to vector<1x80xi32>
    %68 = arith.cmpi sge, %12, %67 : vector<1x80xi32>
    %69 = arith.extui %68 : vector<1x80xi1> to vector<1x80xi32>
    %70 = arith.addi %62, %69 : vector<1x80xi32>
    %71 = vector.broadcast %66 : vector<80x1xi32> to vector<80x80xi32>
    %72 = vector.broadcast %70 : vector<1x80xi32> to vector<80x80xi32>
    %73 = arith.cmpi eq, %71, %72 : vector<80x80xi32>
    %cst_19 = arith.constant 0.000000e+00 : f32
    %cst_20 = arith.constant -1.000000e+30 : f32
    %74 = vector.broadcast %cst_19 : f32 to vector<80x80xf32>
    %75 = vector.broadcast %cst_20 : f32 to vector<80x80xf32>
    %76 = arith.select %73, %74, %75 : vector<80x80xi1>, vector<80x80xf32>
    %c0_21 = arith.constant 0 : index
    %c0_22 = arith.constant 0 : index
    %c0_23 = arith.constant 0 : index
    %77 = vector.load %arg4[%c0_21, %c0_22, %c0_23] : memref<2x32x192xf32, #tpu.memory_space<vmem>>, vector<1x32x192xf32>
    %78 = vector.shape_cast %77 : vector<1x32x192xf32> to vector<32x192xf32>
    %c0_24 = arith.constant 0 : index
    %c0_25 = arith.constant 0 : index
    %c0_26 = arith.constant 0 : index
    %79 = vector.load %arg5[%c0_24, %c0_25, %c0_26] : memref<2x64x32xf32, #tpu.memory_space<vmem>>, vector<1x64x32xf32>
    %80 = vector.shape_cast %79 : vector<1x64x32xf32> to vector<64x32xf32>
    %c0_27 = arith.constant 0 : index
    %c0_28 = arith.constant 0 : index
    %c0_29 = arith.constant 0 : index
    %81 = vector.load %arg6[%c0_27, %c0_28, %c0_29] : memref<3x32x128xf32, #tpu.memory_space<vmem>>, vector<1x32x128xf32>
    %82 = vector.shape_cast %81 : vector<1x32x128xf32> to vector<32x128xf32>
    %c0_30 = arith.constant 0 : index
    %c0_31 = arith.constant 0 : index
    %c0_32 = arith.constant 0 : index
    %83 = vector.load %arg7[%c0_30, %c0_31, %c0_32] : memref<2x128x32xf32, #tpu.memory_space<vmem>>, vector<1x128x32xf32>
    %84 = vector.shape_cast %83 : vector<1x128x32xf32> to vector<128x32xf32>
    %c0_33 = arith.constant 0 : index
    %c0_34 = arith.constant 0 : index
    %85 = vector.load %arg9[%c0_33, %c0_34] : memref<4x128xf32, #tpu.memory_space<vmem>>, vector<1x128xf32>
    %c3 = arith.constant 3 : index
    %c0_35 = arith.constant 0 : index
    %86 = vector.load %arg8[%c3, %c0_35] : memref<15x32xf32, #tpu.memory_space<vmem>>, vector<1x32xf32>
    %c4 = arith.constant 4 : index
    %c0_36 = arith.constant 0 : index
    %87 = vector.load %arg8[%c4, %c0_36] : memref<15x32xf32, #tpu.memory_space<vmem>>, vector<1x32xf32>
    %c5 = arith.constant 5 : index
    %c0_37 = arith.constant 0 : index
    %88 = vector.load %arg8[%c5, %c0_37] : memref<15x32xf32, #tpu.memory_space<vmem>>, vector<1x32xf32>
    %c6 = arith.constant 6 : index
    %c0_38 = arith.constant 0 : index
    %89 = vector.load %arg8[%c6, %c0_38] : memref<15x32xf32, #tpu.memory_space<vmem>>, vector<1x32xf32>
    %c7 = arith.constant 7 : index
    %c0_39 = arith.constant 0 : index
    %90 = vector.load %arg8[%c7, %c0_39] : memref<15x32xf32, #tpu.memory_space<vmem>>, vector<1x32xf32>
    %c8 = arith.constant 8 : index
    %c0_40 = arith.constant 0 : index
    %91 = vector.load %arg8[%c8, %c0_40] : memref<15x32xf32, #tpu.memory_space<vmem>>, vector<1x32xf32>
    %cst_41 = arith.constant dense<0.000000e+00> : vector<80x192xf32>
    %92 = tpu.matmul %10, %78, %cst_41 {dimension_numbers = #tpu.dot_dimension_numbers<[1], [0], [0], [1], [0, 0, 1, 1], [], []>} : vector<80x32xf32>, vector<32x192xf32>, vector<80x192xf32> -> vector<80x192xf32>
    %93 = vector.extract_strided_slice %92 {offsets = [0, 0], sizes = [80, 32], strides = [1, 1]} : vector<80x192xf32> to vector<80x32xf32>
    %cst_42 = arith.constant 0.420448214 : f32
    %94 = vector.broadcast %cst_42 : f32 to vector<80x32xf32>
    %95 = arith.mulf %93, %94 : vector<80x32xf32>
    %96 = vector.extract_strided_slice %92 {offsets = [0, 64], sizes = [80, 32], strides = [1, 1]} : vector<80x192xf32> to vector<80x32xf32>
    %cst_43 = arith.constant 0.420448214 : f32
    %97 = vector.broadcast %cst_43 : f32 to vector<80x32xf32>
    %98 = arith.mulf %96, %97 : vector<80x32xf32>
    %99 = vector.extract_strided_slice %92 {offsets = [0, 128], sizes = [80, 32], strides = [1, 1]} : vector<80x192xf32> to vector<80x32xf32>
    %cst_44 = arith.constant dense<0.000000e+00> : vector<80x80xf32>
    %100 = tpu.matmul %95, %98, %cst_44 {dimension_numbers = #tpu.dot_dimension_numbers<[1], [1], [0], [0], [0, 0, 1, 0], [], []>} : vector<80x32xf32>, vector<80x32xf32>, vector<80x80xf32> -> vector<80x80xf32>
    %101 = arith.addf %100, %76 : vector<80x80xf32>
    %cst_45 = arith.constant dense<0xFF800000> : vector<80xf32>
    %102 = vector.multi_reduction <maximumf>, %101, %cst_45 [1] : vector<80x80xf32> to vector<80xf32>
    %103 = vector.shape_cast %102 : vector<80xf32> to vector<80x1xf32>
    %104 = vector.broadcast %103 : vector<80x1xf32> to vector<80x80xf32>
    %105 = arith.subf %101, %104 : vector<80x80xf32>
    %106 = math.exp %105 : vector<80x80xf32>
    %cst_46 = arith.constant dense<0.000000e+00> : vector<80xf32>
    %107 = vector.multi_reduction <add>, %106, %cst_46 [1] : vector<80x80xf32> to vector<80xf32>
    %108 = vector.shape_cast %107 : vector<80xf32> to vector<80x1xf32>
    %109 = vector.broadcast %108 : vector<80x1xf32> to vector<80x80xf32>
    %110 = arith.divf %106, %109 : vector<80x80xf32>
    %cst_47 = arith.constant dense<0.000000e+00> : vector<80x32xf32>
    %111 = tpu.matmul %110, %99, %cst_47 {dimension_numbers = #tpu.dot_dimension_numbers<[1], [0], [0], [1], [0, 0, 1, 1], [], []>} : vector<80x80xf32>, vector<80x32xf32>, vector<80x32xf32> -> vector<80x32xf32>
    %112 = vector.extract_strided_slice %80 {offsets = [0, 0], sizes = [32, 32], strides = [1, 1]} : vector<64x32xf32> to vector<32x32xf32>
    %cst_48 = arith.constant dense<0.000000e+00> : vector<80x32xf32>
    %113 = tpu.matmul %111, %112, %cst_48 {dimension_numbers = #tpu.dot_dimension_numbers<[1], [0], [0], [1], [0, 0, 1, 1], [], []>} : vector<80x32xf32>, vector<32x32xf32>, vector<80x32xf32> -> vector<80x32xf32>
    %114 = vector.extract_strided_slice %92 {offsets = [0, 32], sizes = [80, 32], strides = [1, 1]} : vector<80x192xf32> to vector<80x32xf32>
    %cst_49 = arith.constant 0.420448214 : f32
    %115 = vector.broadcast %cst_49 : f32 to vector<80x32xf32>
    %116 = arith.mulf %114, %115 : vector<80x32xf32>
    %117 = vector.extract_strided_slice %92 {offsets = [0, 96], sizes = [80, 32], strides = [1, 1]} : vector<80x192xf32> to vector<80x32xf32>
    %cst_50 = arith.constant 0.420448214 : f32
    %118 = vector.broadcast %cst_50 : f32 to vector<80x32xf32>
    %119 = arith.mulf %117, %118 : vector<80x32xf32>
    %120 = vector.extract_strided_slice %92 {offsets = [0, 160], sizes = [80, 32], strides = [1, 1]} : vector<80x192xf32> to vector<80x32xf32>
    %cst_51 = arith.constant dense<0.000000e+00> : vector<80x80xf32>
    %121 = tpu.matmul %116, %119, %cst_51 {dimension_numbers = #tpu.dot_dimension_numbers<[1], [1], [0], [0], [0, 0, 1, 0], [], []>} : vector<80x32xf32>, vector<80x32xf32>, vector<80x80xf32> -> vector<80x80xf32>
    %122 = arith.addf %121, %76 : vector<80x80xf32>
    %cst_52 = arith.constant dense<0xFF800000> : vector<80xf32>
    %123 = vector.multi_reduction <maximumf>, %122, %cst_52 [1] : vector<80x80xf32> to vector<80xf32>
    %124 = vector.shape_cast %123 : vector<80xf32> to vector<80x1xf32>
    %125 = vector.broadcast %124 : vector<80x1xf32> to vector<80x80xf32>
    %126 = arith.subf %122, %125 : vector<80x80xf32>
    %127 = math.exp %126 : vector<80x80xf32>
    %cst_53 = arith.constant dense<0.000000e+00> : vector<80xf32>
    %128 = vector.multi_reduction <add>, %127, %cst_53 [1] : vector<80x80xf32> to vector<80xf32>
    %129 = vector.shape_cast %128 : vector<80xf32> to vector<80x1xf32>
    %130 = vector.broadcast %129 : vector<80x1xf32> to vector<80x80xf32>
    %131 = arith.divf %127, %130 : vector<80x80xf32>
    %cst_54 = arith.constant dense<0.000000e+00> : vector<80x32xf32>
    %132 = tpu.matmul %131, %120, %cst_54 {dimension_numbers = #tpu.dot_dimension_numbers<[1], [0], [0], [1], [0, 0, 1, 1], [], []>} : vector<80x80xf32>, vector<80x32xf32>, vector<80x32xf32> -> vector<80x32xf32>
    %133 = vector.extract_strided_slice %80 {offsets = [32, 0], sizes = [32, 32], strides = [1, 1]} : vector<64x32xf32> to vector<32x32xf32>
    %cst_55 = arith.constant dense<0.000000e+00> : vector<80x32xf32>
    %134 = tpu.matmul %132, %133, %cst_55 {dimension_numbers = #tpu.dot_dimension_numbers<[1], [0], [0], [1], [0, 0, 1, 1], [], []>} : vector<80x32xf32>, vector<32x32xf32>, vector<80x32xf32> -> vector<80x32xf32>
    %135 = arith.addf %113, %134 : vector<80x32xf32>
    %136 = vector.broadcast %86 : vector<1x32xf32> to vector<80x32xf32>
    %137 = arith.addf %135, %136 : vector<80x32xf32>
    %138 = arith.addf %137, %10 : vector<80x32xf32>
    %cst_56 = arith.constant dense<0.000000e+00> : vector<80xf32>
    %139 = vector.multi_reduction <add>, %138, %cst_56 [1] : vector<80x32xf32> to vector<80xf32>
    %140 = vector.shape_cast %139 : vector<80xf32> to vector<80x1xf32>
    %cst_57 = arith.constant 3.200000e+01 : f32
    %141 = vector.broadcast %cst_57 : f32 to vector<80x1xf32>
    %142 = arith.divf %140, %141 : vector<80x1xf32>
    %143 = vector.broadcast %142 : vector<80x1xf32> to vector<80x32xf32>
    %144 = arith.subf %138, %143 : vector<80x32xf32>
    %145 = arith.mulf %144, %144 : vector<80x32xf32>
    %cst_58 = arith.constant dense<0.000000e+00> : vector<80xf32>
    %146 = vector.multi_reduction <add>, %145, %cst_58 [1] : vector<80x32xf32> to vector<80xf32>
    %147 = vector.shape_cast %146 : vector<80xf32> to vector<80x1xf32>
    %cst_59 = arith.constant 3.200000e+01 : f32
    %148 = vector.broadcast %cst_59 : f32 to vector<80x1xf32>
    %149 = arith.divf %147, %148 : vector<80x1xf32>
    %150 = vector.broadcast %142 : vector<80x1xf32> to vector<80x32xf32>
    %151 = arith.subf %138, %150 : vector<80x32xf32>
    %cst_60 = arith.constant 9.99999974E-6 : f32
    %152 = vector.broadcast %cst_60 : f32 to vector<80x1xf32>
    %153 = arith.addf %149, %152 : vector<80x1xf32>
    %154 = math.rsqrt %153 : vector<80x1xf32>
    %155 = vector.broadcast %154 : vector<80x1xf32> to vector<80x32xf32>
    %156 = arith.mulf %151, %155 : vector<80x32xf32>
    %157 = vector.broadcast %87 : vector<1x32xf32> to vector<80x32xf32>
    %158 = arith.mulf %156, %157 : vector<80x32xf32>
    %159 = vector.broadcast %88 : vector<1x32xf32> to vector<80x32xf32>
    %160 = arith.addf %158, %159 : vector<80x32xf32>
    %cst_61 = arith.constant dense<0.000000e+00> : vector<80x128xf32>
    %161 = tpu.matmul %160, %82, %cst_61 {dimension_numbers = #tpu.dot_dimension_numbers<[1], [0], [0], [1], [0, 0, 1, 1], [], []>} : vector<80x32xf32>, vector<32x128xf32>, vector<80x128xf32> -> vector<80x128xf32>
    %162 = vector.broadcast %85 : vector<1x128xf32> to vector<80x128xf32>
    %163 = arith.addf %161, %162 : vector<80x128xf32>
    %cst_62 = arith.constant 0.000000e+00 : f32
    %164 = vector.broadcast %cst_62 : f32 to vector<80x128xf32>
    %165 = arith.maximumf %163, %164 : vector<80x128xf32>
    %cst_63 = arith.constant dense<0.000000e+00> : vector<80x32xf32>
    %166 = tpu.matmul %165, %84, %cst_63 {dimension_numbers = #tpu.dot_dimension_numbers<[1], [0], [0], [1], [0, 0, 1, 1], [], []>} : vector<80x128xf32>, vector<128x32xf32>, vector<80x32xf32> -> vector<80x32xf32>
    %167 = vector.broadcast %89 : vector<1x32xf32> to vector<80x32xf32>
    %168 = arith.addf %166, %167 : vector<80x32xf32>
    %169 = arith.addf %168, %160 : vector<80x32xf32>
    %cst_64 = arith.constant dense<0.000000e+00> : vector<80xf32>
    %170 = vector.multi_reduction <add>, %169, %cst_64 [1] : vector<80x32xf32> to vector<80xf32>
    %171 = vector.shape_cast %170 : vector<80xf32> to vector<80x1xf32>
    %cst_65 = arith.constant 3.200000e+01 : f32
    %172 = vector.broadcast %cst_65 : f32 to vector<80x1xf32>
    %173 = arith.divf %171, %172 : vector<80x1xf32>
    %174 = vector.broadcast %173 : vector<80x1xf32> to vector<80x32xf32>
    %175 = arith.subf %169, %174 : vector<80x32xf32>
    %176 = arith.mulf %175, %175 : vector<80x32xf32>
    %cst_66 = arith.constant dense<0.000000e+00> : vector<80xf32>
    %177 = vector.multi_reduction <add>, %176, %cst_66 [1] : vector<80x32xf32> to vector<80xf32>
    %178 = vector.shape_cast %177 : vector<80xf32> to vector<80x1xf32>
    %cst_67 = arith.constant 3.200000e+01 : f32
    %179 = vector.broadcast %cst_67 : f32 to vector<80x1xf32>
    %180 = arith.divf %178, %179 : vector<80x1xf32>
    %181 = vector.broadcast %173 : vector<80x1xf32> to vector<80x32xf32>
    %182 = arith.subf %169, %181 : vector<80x32xf32>
    %cst_68 = arith.constant 9.99999974E-6 : f32
    %183 = vector.broadcast %cst_68 : f32 to vector<80x1xf32>
    %184 = arith.addf %180, %183 : vector<80x1xf32>
    %185 = math.rsqrt %184 : vector<80x1xf32>
    %186 = vector.broadcast %185 : vector<80x1xf32> to vector<80x32xf32>
    %187 = arith.mulf %182, %186 : vector<80x32xf32>
    %188 = vector.broadcast %90 : vector<1x32xf32> to vector<80x32xf32>
    %189 = arith.mulf %187, %188 : vector<80x32xf32>
    %190 = vector.broadcast %91 : vector<1x32xf32> to vector<80x32xf32>
    %191 = arith.addf %189, %190 : vector<80x32xf32>
    %c1 = arith.constant 1 : index
    %c0_69 = arith.constant 0 : index
    %c0_70 = arith.constant 0 : index
    %192 = vector.load %arg4[%c1, %c0_69, %c0_70] : memref<2x32x192xf32, #tpu.memory_space<vmem>>, vector<1x32x192xf32>
    %193 = vector.shape_cast %192 : vector<1x32x192xf32> to vector<32x192xf32>
    %c1_71 = arith.constant 1 : index
    %c0_72 = arith.constant 0 : index
    %c0_73 = arith.constant 0 : index
    %194 = vector.load %arg5[%c1_71, %c0_72, %c0_73] : memref<2x64x32xf32, #tpu.memory_space<vmem>>, vector<1x64x32xf32>
    %195 = vector.shape_cast %194 : vector<1x64x32xf32> to vector<64x32xf32>
    %c1_74 = arith.constant 1 : index
    %c0_75 = arith.constant 0 : index
    %c0_76 = arith.constant 0 : index
    %196 = vector.load %arg6[%c1_74, %c0_75, %c0_76] : memref<3x32x128xf32, #tpu.memory_space<vmem>>, vector<1x32x128xf32>
    %197 = vector.shape_cast %196 : vector<1x32x128xf32> to vector<32x128xf32>
    %c1_77 = arith.constant 1 : index
    %c0_78 = arith.constant 0 : index
    %c0_79 = arith.constant 0 : index
    %198 = vector.load %arg7[%c1_77, %c0_78, %c0_79] : memref<2x128x32xf32, #tpu.memory_space<vmem>>, vector<1x128x32xf32>
    %199 = vector.shape_cast %198 : vector<1x128x32xf32> to vector<128x32xf32>
    %c1_80 = arith.constant 1 : index
    %c0_81 = arith.constant 0 : index
    %200 = vector.load %arg9[%c1_80, %c0_81] : memref<4x128xf32, #tpu.memory_space<vmem>>, vector<1x128xf32>
    %c9 = arith.constant 9 : index
    %c0_82 = arith.constant 0 : index
    %201 = vector.load %arg8[%c9, %c0_82] : memref<15x32xf32, #tpu.memory_space<vmem>>, vector<1x32xf32>
    %c10 = arith.constant 10 : index
    %c0_83 = arith.constant 0 : index
    %202 = vector.load %arg8[%c10, %c0_83] : memref<15x32xf32, #tpu.memory_space<vmem>>, vector<1x32xf32>
    %c11 = arith.constant 11 : index
    %c0_84 = arith.constant 0 : index
    %203 = vector.load %arg8[%c11, %c0_84] : memref<15x32xf32, #tpu.memory_space<vmem>>, vector<1x32xf32>
    %c12 = arith.constant 12 : index
    %c0_85 = arith.constant 0 : index
    %204 = vector.load %arg8[%c12, %c0_85] : memref<15x32xf32, #tpu.memory_space<vmem>>, vector<1x32xf32>
    %c13 = arith.constant 13 : index
    %c0_86 = arith.constant 0 : index
    %205 = vector.load %arg8[%c13, %c0_86] : memref<15x32xf32, #tpu.memory_space<vmem>>, vector<1x32xf32>
    %c14 = arith.constant 14 : index
    %c0_87 = arith.constant 0 : index
    %206 = vector.load %arg8[%c14, %c0_87] : memref<15x32xf32, #tpu.memory_space<vmem>>, vector<1x32xf32>
    %cst_88 = arith.constant dense<0.000000e+00> : vector<80x192xf32>
    %207 = tpu.matmul %191, %193, %cst_88 {dimension_numbers = #tpu.dot_dimension_numbers<[1], [0], [0], [1], [0, 0, 1, 1], [], []>} : vector<80x32xf32>, vector<32x192xf32>, vector<80x192xf32> -> vector<80x192xf32>
    %208 = vector.extract_strided_slice %207 {offsets = [0, 0], sizes = [80, 32], strides = [1, 1]} : vector<80x192xf32> to vector<80x32xf32>
    %cst_89 = arith.constant 0.420448214 : f32
    %209 = vector.broadcast %cst_89 : f32 to vector<80x32xf32>
    %210 = arith.mulf %208, %209 : vector<80x32xf32>
    %211 = vector.extract_strided_slice %207 {offsets = [0, 64], sizes = [80, 32], strides = [1, 1]} : vector<80x192xf32> to vector<80x32xf32>
    %cst_90 = arith.constant 0.420448214 : f32
    %212 = vector.broadcast %cst_90 : f32 to vector<80x32xf32>
    %213 = arith.mulf %211, %212 : vector<80x32xf32>
    %214 = vector.extract_strided_slice %207 {offsets = [0, 128], sizes = [80, 32], strides = [1, 1]} : vector<80x192xf32> to vector<80x32xf32>
    %cst_91 = arith.constant dense<0.000000e+00> : vector<80x80xf32>
    %215 = tpu.matmul %210, %213, %cst_91 {dimension_numbers = #tpu.dot_dimension_numbers<[1], [1], [0], [0], [0, 0, 1, 0], [], []>} : vector<80x32xf32>, vector<80x32xf32>, vector<80x80xf32> -> vector<80x80xf32>
    %216 = arith.addf %215, %76 : vector<80x80xf32>
    %cst_92 = arith.constant dense<0xFF800000> : vector<80xf32>
    %217 = vector.multi_reduction <maximumf>, %216, %cst_92 [1] : vector<80x80xf32> to vector<80xf32>
    %218 = vector.shape_cast %217 : vector<80xf32> to vector<80x1xf32>
    %219 = vector.broadcast %218 : vector<80x1xf32> to vector<80x80xf32>
    %220 = arith.subf %216, %219 : vector<80x80xf32>
    %221 = math.exp %220 : vector<80x80xf32>
    %cst_93 = arith.constant dense<0.000000e+00> : vector<80xf32>
    %222 = vector.multi_reduction <add>, %221, %cst_93 [1] : vector<80x80xf32> to vector<80xf32>
    %223 = vector.shape_cast %222 : vector<80xf32> to vector<80x1xf32>
    %224 = vector.broadcast %223 : vector<80x1xf32> to vector<80x80xf32>
    %225 = arith.divf %221, %224 : vector<80x80xf32>
    %cst_94 = arith.constant dense<0.000000e+00> : vector<80x32xf32>
    %226 = tpu.matmul %225, %214, %cst_94 {dimension_numbers = #tpu.dot_dimension_numbers<[1], [0], [0], [1], [0, 0, 1, 1], [], []>} : vector<80x80xf32>, vector<80x32xf32>, vector<80x32xf32> -> vector<80x32xf32>
    %227 = vector.extract_strided_slice %195 {offsets = [0, 0], sizes = [32, 32], strides = [1, 1]} : vector<64x32xf32> to vector<32x32xf32>
    %cst_95 = arith.constant dense<0.000000e+00> : vector<80x32xf32>
    %228 = tpu.matmul %226, %227, %cst_95 {dimension_numbers = #tpu.dot_dimension_numbers<[1], [0], [0], [1], [0, 0, 1, 1], [], []>} : vector<80x32xf32>, vector<32x32xf32>, vector<80x32xf32> -> vector<80x32xf32>
    %229 = vector.extract_strided_slice %207 {offsets = [0, 32], sizes = [80, 32], strides = [1, 1]} : vector<80x192xf32> to vector<80x32xf32>
    %cst_96 = arith.constant 0.420448214 : f32
    %230 = vector.broadcast %cst_96 : f32 to vector<80x32xf32>
    %231 = arith.mulf %229, %230 : vector<80x32xf32>
    %232 = vector.extract_strided_slice %207 {offsets = [0, 96], sizes = [80, 32], strides = [1, 1]} : vector<80x192xf32> to vector<80x32xf32>
    %cst_97 = arith.constant 0.420448214 : f32
    %233 = vector.broadcast %cst_97 : f32 to vector<80x32xf32>
    %234 = arith.mulf %232, %233 : vector<80x32xf32>
    %235 = vector.extract_strided_slice %207 {offsets = [0, 160], sizes = [80, 32], strides = [1, 1]} : vector<80x192xf32> to vector<80x32xf32>
    %cst_98 = arith.constant dense<0.000000e+00> : vector<80x80xf32>
    %236 = tpu.matmul %231, %234, %cst_98 {dimension_numbers = #tpu.dot_dimension_numbers<[1], [1], [0], [0], [0, 0, 1, 0], [], []>} : vector<80x32xf32>, vector<80x32xf32>, vector<80x80xf32> -> vector<80x80xf32>
    %237 = arith.addf %236, %76 : vector<80x80xf32>
    %cst_99 = arith.constant dense<0xFF800000> : vector<80xf32>
    %238 = vector.multi_reduction <maximumf>, %237, %cst_99 [1] : vector<80x80xf32> to vector<80xf32>
    %239 = vector.shape_cast %238 : vector<80xf32> to vector<80x1xf32>
    %240 = vector.broadcast %239 : vector<80x1xf32> to vector<80x80xf32>
    %241 = arith.subf %237, %240 : vector<80x80xf32>
    %242 = math.exp %241 : vector<80x80xf32>
    %cst_100 = arith.constant dense<0.000000e+00> : vector<80xf32>
    %243 = vector.multi_reduction <add>, %242, %cst_100 [1] : vector<80x80xf32> to vector<80xf32>
    %244 = vector.shape_cast %243 : vector<80xf32> to vector<80x1xf32>
    %245 = vector.broadcast %244 : vector<80x1xf32> to vector<80x80xf32>
    %246 = arith.divf %242, %245 : vector<80x80xf32>
    %cst_101 = arith.constant dense<0.000000e+00> : vector<80x32xf32>
    %247 = tpu.matmul %246, %235, %cst_101 {dimension_numbers = #tpu.dot_dimension_numbers<[1], [0], [0], [1], [0, 0, 1, 1], [], []>} : vector<80x80xf32>, vector<80x32xf32>, vector<80x32xf32> -> vector<80x32xf32>
    %248 = vector.extract_strided_slice %195 {offsets = [32, 0], sizes = [32, 32], strides = [1, 1]} : vector<64x32xf32> to vector<32x32xf32>
    %cst_102 = arith.constant dense<0.000000e+00> : vector<80x32xf32>
    %249 = tpu.matmul %247, %248, %cst_102 {dimension_numbers = #tpu.dot_dimension_numbers<[1], [0], [0], [1], [0, 0, 1, 1], [], []>} : vector<80x32xf32>, vector<32x32xf32>, vector<80x32xf32> -> vector<80x32xf32>
    %250 = arith.addf %228, %249 : vector<80x32xf32>
    %251 = vector.broadcast %201 : vector<1x32xf32> to vector<80x32xf32>
    %252 = arith.addf %250, %251 : vector<80x32xf32>
    %253 = arith.addf %252, %191 : vector<80x32xf32>
    %cst_103 = arith.constant dense<0.000000e+00> : vector<80xf32>
    %254 = vector.multi_reduction <add>, %253, %cst_103 [1] : vector<80x32xf32> to vector<80xf32>
    %255 = vector.shape_cast %254 : vector<80xf32> to vector<80x1xf32>
    %cst_104 = arith.constant 3.200000e+01 : f32
    %256 = vector.broadcast %cst_104 : f32 to vector<80x1xf32>
    %257 = arith.divf %255, %256 : vector<80x1xf32>
    %258 = vector.broadcast %257 : vector<80x1xf32> to vector<80x32xf32>
    %259 = arith.subf %253, %258 : vector<80x32xf32>
    %260 = arith.mulf %259, %259 : vector<80x32xf32>
    %cst_105 = arith.constant dense<0.000000e+00> : vector<80xf32>
    %261 = vector.multi_reduction <add>, %260, %cst_105 [1] : vector<80x32xf32> to vector<80xf32>
    %262 = vector.shape_cast %261 : vector<80xf32> to vector<80x1xf32>
    %cst_106 = arith.constant 3.200000e+01 : f32
    %263 = vector.broadcast %cst_106 : f32 to vector<80x1xf32>
    %264 = arith.divf %262, %263 : vector<80x1xf32>
    %265 = vector.broadcast %257 : vector<80x1xf32> to vector<80x32xf32>
    %266 = arith.subf %253, %265 : vector<80x32xf32>
    %cst_107 = arith.constant 9.99999974E-6 : f32
    %267 = vector.broadcast %cst_107 : f32 to vector<80x1xf32>
    %268 = arith.addf %264, %267 : vector<80x1xf32>
    %269 = math.rsqrt %268 : vector<80x1xf32>
    %270 = vector.broadcast %269 : vector<80x1xf32> to vector<80x32xf32>
    %271 = arith.mulf %266, %270 : vector<80x32xf32>
    %272 = vector.broadcast %202 : vector<1x32xf32> to vector<80x32xf32>
    %273 = arith.mulf %271, %272 : vector<80x32xf32>
    %274 = vector.broadcast %203 : vector<1x32xf32> to vector<80x32xf32>
    %275 = arith.addf %273, %274 : vector<80x32xf32>
    %cst_108 = arith.constant dense<0.000000e+00> : vector<80x128xf32>
    %276 = tpu.matmul %275, %197, %cst_108 {dimension_numbers = #tpu.dot_dimension_numbers<[1], [0], [0], [1], [0, 0, 1, 1], [], []>} : vector<80x32xf32>, vector<32x128xf32>, vector<80x128xf32> -> vector<80x128xf32>
    %277 = vector.broadcast %200 : vector<1x128xf32> to vector<80x128xf32>
    %278 = arith.addf %276, %277 : vector<80x128xf32>
    %cst_109 = arith.constant 0.000000e+00 : f32
    %279 = vector.broadcast %cst_109 : f32 to vector<80x128xf32>
    %280 = arith.maximumf %278, %279 : vector<80x128xf32>
    %cst_110 = arith.constant dense<0.000000e+00> : vector<80x32xf32>
    %281 = tpu.matmul %280, %199, %cst_110 {dimension_numbers = #tpu.dot_dimension_numbers<[1], [0], [0], [1], [0, 0, 1, 1], [], []>} : vector<80x128xf32>, vector<128x32xf32>, vector<80x32xf32> -> vector<80x32xf32>
    %282 = vector.broadcast %204 : vector<1x32xf32> to vector<80x32xf32>
    %283 = arith.addf %281, %282 : vector<80x32xf32>
    %284 = arith.addf %283, %275 : vector<80x32xf32>
    %cst_111 = arith.constant dense<0.000000e+00> : vector<80xf32>
    %285 = vector.multi_reduction <add>, %284, %cst_111 [1] : vector<80x32xf32> to vector<80xf32>
    %286 = vector.shape_cast %285 : vector<80xf32> to vector<80x1xf32>
    %cst_112 = arith.constant 3.200000e+01 : f32
    %287 = vector.broadcast %cst_112 : f32 to vector<80x1xf32>
    %288 = arith.divf %286, %287 : vector<80x1xf32>
    %289 = vector.broadcast %288 : vector<80x1xf32> to vector<80x32xf32>
    %290 = arith.subf %284, %289 : vector<80x32xf32>
    %291 = arith.mulf %290, %290 : vector<80x32xf32>
    %cst_113 = arith.constant dense<0.000000e+00> : vector<80xf32>
    %292 = vector.multi_reduction <add>, %291, %cst_113 [1] : vector<80x32xf32> to vector<80xf32>
    %293 = vector.shape_cast %292 : vector<80xf32> to vector<80x1xf32>
    %cst_114 = arith.constant 3.200000e+01 : f32
    %294 = vector.broadcast %cst_114 : f32 to vector<80x1xf32>
    %295 = arith.divf %293, %294 : vector<80x1xf32>
    %296 = vector.broadcast %288 : vector<80x1xf32> to vector<80x32xf32>
    %297 = arith.subf %284, %296 : vector<80x32xf32>
    %cst_115 = arith.constant 9.99999974E-6 : f32
    %298 = vector.broadcast %cst_115 : f32 to vector<80x1xf32>
    %299 = arith.addf %295, %298 : vector<80x1xf32>
    %300 = math.rsqrt %299 : vector<80x1xf32>
    %301 = vector.broadcast %300 : vector<80x1xf32> to vector<80x32xf32>
    %302 = arith.mulf %297, %301 : vector<80x32xf32>
    %303 = vector.broadcast %205 : vector<1x32xf32> to vector<80x32xf32>
    %304 = arith.mulf %302, %303 : vector<80x32xf32>
    %305 = vector.broadcast %206 : vector<1x32xf32> to vector<80x32xf32>
    %306 = arith.addf %304, %305 : vector<80x32xf32>
    %307 = tpu.iota {dimensions = array<i32: 0>} : vector<16x1xi32>
    %308 = tpu.iota {dimensions = array<i32: 1>} : vector<1x80xi32>
    %c8_i32 = arith.constant 8 : i32
    %309 = vector.broadcast %c8_i32 : i32 to vector<16x1xi32>
    %310 = arith.cmpi slt, %307, %309 : vector<16x1xi32>
    %c10_i32_116 = arith.constant 10 : i32
    %311 = vector.broadcast %c10_i32_116 : i32 to vector<16x1xi32>
    %312 = arith.muli %307, %311 : vector<16x1xi32>
    %c8_i32_117 = arith.constant 8 : i32
    %313 = vector.broadcast %c8_i32_117 : i32 to vector<16x1xi32>
    %314 = arith.subi %307, %313 : vector<16x1xi32>
    %c10_i32_118 = arith.constant 10 : i32
    %315 = vector.broadcast %c10_i32_118 : i32 to vector<16x1xi32>
    %316 = arith.muli %314, %315 : vector<16x1xi32>
    %c9_i32 = arith.constant 9 : i32
    %317 = vector.broadcast %c9_i32 : i32 to vector<16x1xi32>
    %318 = arith.addi %316, %317 : vector<16x1xi32>
    %319 = arith.select %310, %312, %318 : vector<16x1xi1>, vector<16x1xi32>
    %320 = vector.broadcast %308 : vector<1x80xi32> to vector<16x80xi32>
    %321 = vector.broadcast %319 : vector<16x1xi32> to vector<16x80xi32>
    %322 = arith.cmpi eq, %320, %321 : vector<16x80xi32>
    %cst_119 = arith.constant 1.000000e+00 : f32
    %cst_120 = arith.constant 0.000000e+00 : f32
    %323 = vector.broadcast %cst_119 : f32 to vector<16x80xf32>
    %324 = vector.broadcast %cst_120 : f32 to vector<16x80xf32>
    %325 = arith.select %322, %323, %324 : vector<16x80xi1>, vector<16x80xf32>
    %cst_121 = arith.constant dense<0.000000e+00> : vector<16x32xf32>
    %326 = tpu.matmul %325, %306, %cst_121 {dimension_numbers = #tpu.dot_dimension_numbers<[1], [0], [0], [1], [0, 0, 1, 1], [], []>} : vector<16x80xf32>, vector<80x32xf32>, vector<16x32xf32> -> vector<16x32xf32>
    %c1_122 = arith.constant 1 : index
    %c0_123 = arith.constant 0 : index
    %c0_124 = arith.constant 0 : index
    %327 = vector.load %arg3[%c1_122, %c0_123, %c0_124] : memref<2x32x32xf32, #tpu.memory_space<vmem>>, vector<1x32x32xf32>
    %328 = vector.shape_cast %327 : vector<1x32x32xf32> to vector<32x32xf32>
    %cst_125 = arith.constant dense<0.000000e+00> : vector<16x32xf32>
    %329 = tpu.matmul %326, %328, %cst_125 {dimension_numbers = #tpu.dot_dimension_numbers<[1], [0], [0], [1], [0, 0, 1, 1], [], []>} : vector<16x32xf32>, vector<32x32xf32>, vector<16x32xf32> -> vector<16x32xf32>
    %c1_126 = arith.constant 1 : index
    %c0_127 = arith.constant 0 : index
    %330 = vector.load %arg8[%c1_126, %c0_127] : memref<15x32xf32, #tpu.memory_space<vmem>>, vector<1x32xf32>
    %331 = vector.broadcast %330 : vector<1x32xf32> to vector<16x32xf32>
    %332 = arith.addf %329, %331 : vector<16x32xf32>
    %333 = vector.extract_strided_slice %332 {offsets = [0, 0], sizes = [8, 32], strides = [1, 1]} : vector<16x32xf32> to vector<8x32xf32>
    %334 = vector.extract_strided_slice %332 {offsets = [8, 0], sizes = [8, 32], strides = [1, 1]} : vector<16x32xf32> to vector<8x32xf32>
    %c2 = arith.constant 2 : index
    %c0_128 = arith.constant 0 : index
    %c0_129 = arith.constant 0 : index
    %335 = vector.load %arg6[%c2, %c0_128, %c0_129] : memref<3x32x128xf32, #tpu.memory_space<vmem>>, vector<1x32x128xf32>
    %336 = vector.shape_cast %335 : vector<1x32x128xf32> to vector<32x128xf32>
    %c2_130 = arith.constant 2 : index
    %c0_131 = arith.constant 0 : index
    %337 = vector.load %arg9[%c2_130, %c0_131] : memref<4x128xf32, #tpu.memory_space<vmem>>, vector<1x128xf32>
    %c3_132 = arith.constant 3 : index
    %c0_133 = arith.constant 0 : index
    %338 = vector.load %arg9[%c3_132, %c0_133] : memref<4x128xf32, #tpu.memory_space<vmem>>, vector<1x128xf32>
    %c2_134 = arith.constant 2 : index
    %c0_135 = arith.constant 0 : index
    %339 = vector.load %arg8[%c2_134, %c0_135] : memref<15x32xf32, #tpu.memory_space<vmem>>, vector<1x1xf32>
    %cst_136 = arith.constant dense<0.000000e+00> : vector<8x128xf32>
    %340 = tpu.matmul %333, %336, %cst_136 {dimension_numbers = #tpu.dot_dimension_numbers<[1], [0], [0], [1], [0, 0, 1, 1], [], []>} : vector<8x32xf32>, vector<32x128xf32>, vector<8x128xf32> -> vector<8x128xf32>
    %341 = vector.broadcast %337 : vector<1x128xf32> to vector<8x128xf32>
    %342 = arith.addf %340, %341 : vector<8x128xf32>
    %cst_137 = arith.constant 0.000000e+00 : f32
    %343 = vector.broadcast %cst_137 : f32 to vector<8x128xf32>
    %344 = arith.maximumf %342, %343 : vector<8x128xf32>
    %345 = vector.broadcast %338 : vector<1x128xf32> to vector<8x128xf32>
    %346 = arith.mulf %344, %345 : vector<8x128xf32>
    %cst_138 = arith.constant dense<0.000000e+00> : vector<8xf32>
    %347 = vector.multi_reduction <add>, %346, %cst_138 [1] : vector<8x128xf32> to vector<8xf32>
    %348 = vector.shape_cast %347 : vector<8xf32> to vector<8x1xf32>
    %349 = vector.broadcast %339 : vector<1x1xf32> to vector<8x1xf32>
    %350 = arith.addf %348, %349 : vector<8x1xf32>
    %cst_139 = arith.constant 0.000000e+00 : f32
    %351 = vector.broadcast %cst_139 : f32 to vector<8x64xf32>
    %352 = vector.shape_cast %350 : vector<8x1xf32> to vector<8x1xf32>
    %353 = vector.broadcast %352 : vector<8x1xf32> to vector<8x32xf32>
    %354 = tpu.concatenate %334, %353, %351 in 1 : vector<8x32xf32>, vector<8x32xf32>, vector<8x64xf32> -> vector<8x128xf32>
    %c0_140 = arith.constant 0 : index
    %c0_141 = arith.constant 0 : index
    %355 = vector.load %arg10[%c0_140, %c0_141] : memref<8x128xf32, #tpu.memory_space<vmem>>, vector<8x128xf32>
    tpu.vector_store %arg10[%c0_140, %c0_141], %354 {strides = array<i32>} : memref<8x128xf32, #tpu.memory_space<vmem>>, vector<8x128xf32>,
    return
  }
}

</mosaic_0001>

<llo_original>
// kernel: _lambda_.1
$region0: #{_lambda_.1}
  #allocation0 [shape = 'u32[]', space=smem, size = 0x4, offset = 0x4, fixed_abs, tag = 'smem constant byte address 0x4 - core index']
  #allocation1 [shape = 'u32[144,128]{1,0:T(1,128)}', space=vmem, size = 0x12000, scoped, tag = 'internal scratch']
  %s0 = inlined_call_operand.vmem [shape: f32[80,40], index: 0, kind: input, shape index: {}]
  %s1 = inlined_call_operand.vmem [shape: f32[80,32], index: 1, kind: input, shape index: {}]
  %s2 = inlined_call_operand.vmem [shape: f32[40,32], index: 2, kind: input, shape index: {}]
  %s3 = inlined_call_operand.vmem [shape: f32[2,32,32], index: 3, kind: input, shape index: {}]
  %s4 = inlined_call_operand.vmem [shape: f32[2,32,192], index: 4, kind: input, shape index: {}]
  %s5 = inlined_call_operand.vmem [shape: f32[2,64,32], index: 5, kind: input, shape index: {}]
  %s6 = inlined_call_operand.vmem [shape: f32[3,32,128], index: 6, kind: input, shape index: {}]
  %s7 = inlined_call_operand.vmem [shape: f32[2,128,32], index: 7, kind: input, shape index: {}]
  %s8 = inlined_call_operand.vmem [shape: f32[15,32], index: 8, kind: input, shape index: {}]
  %s9 = inlined_call_operand.vmem [shape: f32[4,128], index: 9, kind: input, shape index: {}]
  %s10 = inlined_call_operand.vmem [shape: f32[8,128], index: 10, kind: output, shape index: {}]
  %s11 = sld [smem:[#allocation0]]
  $region50: #{_lambda_.1} parent=0
    _
  %s13 = ssub.s32 1, %s11
  %s14 = scalar_select 0, %s13, %s11
  // Predicated region
  $region2: #{_lambda_.1} parent=0 // pred_check
    _
  $region3: #{_lambda_.1} parent=0 // pred_check_branch
    %16 = sbr.rel (0) target = $region5
  $region4: #{_lambda_.1} parent=0 // pred_region
    _
  $region5: #{_lambda_.1} parent=0 // pred_fallthru
    _
  // Predicated region
  $region6: #{_lambda_.1} parent=0 // pred_check
    _
  $region7: #{_lambda_.1} parent=0 // pred_check_branch
    %18 = sbr.rel (0) target = $region9
  $region8: #{_lambda_.1} parent=0 // pred_region
    _
  $region9: #{_lambda_.1} parent=0 // pred_fallthru
    _
  // Predicated region
  $region10: #{_lambda_.1} parent=0 // pred_check
    _
  $region11: #{_lambda_.1} parent=0 // pred_check_branch
    %20 = sbr.rel (0) target = $region13
  $region12: #{_lambda_.1} parent=0 // pred_region
    _
  $region13: #{_lambda_.1} parent=0 // pred_fallthru
    _
  // Predicated region
  $region14: #{_lambda_.1} parent=0 // pred_check
    _
  $region15: #{_lambda_.1} parent=0 // pred_check_branch
    %22 = sbr.rel (0) target = $region17
  $region16: #{_lambda_.1} parent=0 // pred_region
    _
  $region17: #{_lambda_.1} parent=0 // pred_fallthru
    _
  // Predicated region
  $region18: #{_lambda_.1} parent=0 // pred_check
    _
  $region19: #{_lambda_.1} parent=0 // pred_check_branch
    %24 = sbr.rel (0) target = $region21
  $region20: #{_lambda_.1} parent=0 // pred_region
    _
  $region21: #{_lambda_.1} parent=0 // pred_fallthru
    _
  // Predicated region
  $region22: #{_lambda_.1} parent=0 // pred_check
    _
  $region23: #{_lambda_.1} parent=0 // pred_check_branch
    %26 = sbr.rel (0) target = $region25
  $region24: #{_lambda_.1} parent=0 // pred_region
    _
  $region25: #{_lambda_.1} parent=0 // pred_fallthru
    _
  // Predicated region
  $region26: #{_lambda_.1} parent=0 // pred_check
    _
  $region27: #{_lambda_.1} parent=0 // pred_check_branch
    %28 = sbr.rel (0) target = $region29
  $region28: #{_lambda_.1} parent=0 // pred_region
    _
  $region29: #{_lambda_.1} parent=0 // pred_fallthru
    _
  // Predicated region
  $region30: #{_lambda_.1} parent=0 // pred_check
    _
  $region31: #{_lambda_.1} parent=0 // pred_check_branch
    %30 = sbr.rel (0) target = $region33
  $region32: #{_lambda_.1} parent=0 // pred_region
    _
  $region33: #{_lambda_.1} parent=0 // pred_fallthru
    _
  // Predicated region
  $region34: #{_lambda_.1} parent=0 // pred_check
    _
  $region35: #{_lambda_.1} parent=0 // pred_check_branch
    %32 = sbr.rel (0) target = $region37
  $region36: #{_lambda_.1} parent=0 // pred_region
    _
  $region37: #{_lambda_.1} parent=0 // pred_fallthru
    _
  // Predicated region
  $region38: #{_lambda_.1} parent=0 // pred_check
    _
  $region39: #{_lambda_.1} parent=0 // pred_check_branch
    %34 = sbr.rel (0) target = $region41
  $region40: #{_lambda_.1} parent=0 // pred_region
    _
  $region41: #{_lambda_.1} parent=0 // pred_fallthru
    _
  %v35 = vld [vmem:[%s0] sm:$0xff]
  %v36 = vld [vmem:[%s0 + $0x8] sm:$0xff]
  %v37 = vld [vmem:[%s0 + $0x10] sm:$0xff]
  %v38 = vld [vmem:[%s0 + $0x18] sm:$0xff]
  %v39 = vld [vmem:[%s0 + $0x20] sm:$0xff]
  %v40 = vld [vmem:[%s0 + $0x28] sm:$0xff]
  %v41 = vld [vmem:[%s0 + $0x30] sm:$0xff]
  %v42 = vld [vmem:[%s0 + $0x38] sm:$0xff]
  %v43 = vld [vmem:[%s0 + $0x40] sm:$0xff]
  %v44 = vld [vmem:[%s0 + $0x48] sm:$0xff]
  %v45 = vld [vmem:[%s2] sm:$0xff]
  %v46 = vld [vmem:[%s2 + $0x8] sm:$0xff]
  %v47 = vld [vmem:[%s2 + $0x10] sm:$0xff]
  %v48 = vld [vmem:[%s2 + $0x18] sm:$0xff]
  %v49 = vld [vmem:[%s2 + $0x20] sm:$0xff]
  %v50 = vld [vmem:[%s1] sm:$0xff]
  %v51 = vld [vmem:[%s1 + $0x8] sm:$0xff]
  %v52 = vld [vmem:[%s1 + $0x10] sm:$0xff]
  %v53 = vld [vmem:[%s1 + $0x18] sm:$0xff]
  %v54 = vld [vmem:[%s1 + $0x20] sm:$0xff]
  %v55 = vld [vmem:[%s1 + $0x28] sm:$0xff]
  %v56 = vld [vmem:[%s1 + $0x30] sm:$0xff]
  %v57 = vld [vmem:[%s1 + $0x38] sm:$0xff]
  %v58 = vld [vmem:[%s1 + $0x40] sm:$0xff]
  %v59 = vld [vmem:[%s1 + $0x48] sm:$0xff]
  %vm60 = vcmask 326656
  %v62 = vsel %vm60, %v35, 0
  %v65 = vsel %vm60, %v36, 0
  %v68 = vsel %vm60, %v37, 0
  %v71 = vsel %vm60, %v38, 0
  %v74 = vsel %vm60, %v39, 0
  %v77 = vsel %vm60, %v40, 0
  %v80 = vsel %vm60, %v41, 0
  %v83 = vsel %vm60, %v42, 0
  %v86 = vsel %vm60, %v43, 0
  %v89 = vsel %vm60, %v44, 0
  %91 = vmatprep.subr.mxu0 0.0
  %92 = vmatpush1.msra.mxu0 %v45
  %93 = vmatprep.subr.mxu0 0.0
  %94 = vmatpush1.msra.mxu0 %v46
  %95 = vmatprep.subr.mxu0 0.0
  %96 = vmatpush1.msra.mxu0 %v47
  %97 = vmatprep.subr.mxu0 0.0
  %98 = vmatpush1.msra.mxu0 %v48
  %99 = vmatprep.subr.mxu0 0.0
  %100 = vmatpush1.msra.mxu0 %v49
  %101 = vmatprep.subr.mxu0 0.0
  %102 = vmatpush1.msra.mxu0 0.0
  %103 = vmatprep.subr.mxu0 0.0
  %104 = vmatpush1.msra.mxu0 0.0
  %105 = vmatprep.subr.mxu0 0.0
  %106 = vmatpush1.msra.mxu0 0.0
  %107 = vmatprep.subr.mxu0 0.0
  %108 = vmatpush1.msra.mxu0 0.0
  %109 = vmatprep.subr.mxu0 0.0
  %110 = vmatpush1.msra.mxu0 0.0
  %111 = vmatprep.subr.mxu0 0.0
  %112 = vmatpush1.msra.mxu0 0.0
  %113 = vmatprep.subr.mxu0 0.0
  %114 = vmatpush1.msra.mxu0 0.0
  %115 = vmatprep.subr.mxu0 0.0
  %116 = vmatpush1.msra.mxu0 0.0
  %117 = vmatprep.subr.mxu0 0.0
  %118 = vmatpush1.msra.mxu0 0.0
  %119 = vmatprep.subr.mxu0 0.0
  %120 = vmatpush1.msra.mxu0 0.0
  %121 = vmatprep.subr.mxu0 0.0
  %122 = vmatpush1.msra.mxu0 0.0
  %123 = vmatprep.subr.mxu0 0.0
  %124 = vmatpush1.msra.mxu0 0.0
  %125 = vmatprep.subr.mxu0 0.0
  %126 = vmatpush1.msra.mxu0 0.0
  %127 = vmatprep.subr.mxu0 0.0
  %128 = vmatpush1.msra.mxu0 0.0
  %129 = vmatprep.subr.mxu0 0.0
  %130 = vmatpush1.msra.mxu0 0.0
  %131 = vmatprep.subr.mxu0 0.0
  %132 = vmatpush1.msra.mxu0 0.0
  %133 = vmatprep.subr.mxu0 0.0
  %134 = vmatpush1.msra.mxu0 0.0
  %135 = vmatprep.subr.mxu0 0.0
  %136 = vmatpush1.msra.mxu0 0.0
  %137 = vmatprep.subr.mxu0 0.0
  %138 = vmatpush1.msra.mxu0 0.0
  %139 = vmatprep.subr.mxu0 0.0
  %140 = vmatpush1.msra.mxu0 0.0
  %141 = vmatprep.subr.mxu0 0.0
  %142 = vmatpush1.msra.mxu0 0.0
  %143 = vmatprep.subr.mxu0 0.0
  %144 = vmatpush1.msra.mxu0 0.0
  %145 = vmatprep.subr.mxu0 0.0
  %146 = vmatpush1.msra.mxu0 0.0
  %147 = vmatprep.subr.mxu0 0.0
  %148 = vmatpush1.msra.mxu0 0.0
  %149 = vmatprep.subr.mxu0 0.0
  %150 = vmatpush1.msra.mxu0 0.0
  %151 = vmatprep.subr.mxu0 0.0
  %152 = vmatpush1.msra.mxu0 0.0
  %153 = vmatprep.subr.mxu0 0.0
  %154 = vmatpush1.msra.mxu0 0.0
  %155 = vmatprep.mubr.f32.mxu0 0.0
  %156 = vmatmul.mubr.f32.gmra.mrb[0].mxu0 %v62
  %v157 = vpop.f32.mrb[0].mxu0
  %v158 = vadd.f32 %v50, %v157
  %v159 = vpop.f32.mrb[0].mxu0
  %160 = vmatprep.mubr.f32.mxu0 0.0
  %161 = vmatmul.mubr.f32.gmra.mrb[0].mxu0 %v65
  %v162 = vpop.f32.mrb[0].mxu0
  %v163 = vadd.f32 %v51, %v162
  %v164 = vpop.f32.mrb[0].mxu0
  %165 = vmatprep.mubr.f32.mxu0 0.0
  %166 = vmatmul.mubr.f32.gmra.mrb[0].mxu0 %v68
  %v167 = vpop.f32.mrb[0].mxu0
  %v168 = vadd.f32 %v52, %v167
  %v169 = vpop.f32.mrb[0].mxu0
  %170 = vmatprep.mubr.f32.mxu0 0.0
  %171 = vmatmul.mubr.f32.gmra.mrb[0].mxu0 %v71
  %v172 = vpop.f32.mrb[0].mxu0
  %v173 = vadd.f32 %v53, %v172
  %v174 = vpop.f32.mrb[0].mxu0
  %175 = vmatprep.mubr.f32.mxu0 0.0
  %176 = vmatmul.mubr.f32.gmra.mrb[0].mxu0 %v74
  %v177 = vpop.f32.mrb[0].mxu0
  %v178 = vadd.f32 %v54, %v177
  %v179 = vpop.f32.mrb[0].mxu0
  %180 = vmatprep.mubr.f32.mxu0 0.0
  %181 = vmatmul.mubr.f32.gmra.mrb[0].mxu0 %v77
  %v182 = vpop.f32.mrb[0].mxu0
  %v183 = vadd.f32 %v55, %v182
  %v184 = vpop.f32.mrb[0].mxu0
  %185 = vmatprep.mubr.f32.mxu0 0.0
  %186 = vmatmul.mubr.f32.gmra.mrb[0].mxu0 %v80
  %v187 = vpop.f32.mrb[0].mxu0
  %v188 = vadd.f32 %v56, %v187
  %v189 = vpop.f32.mrb[0].mxu0
  %190 = vmatprep.mubr.f32.mxu0 0.0
  %191 = vmatmul.mubr.f32.gmra.mrb[0].mxu0 %v83
  %v192 = vpop.f32.mrb[0].mxu0
  %v193 = vadd.f32 %v57, %v192
  %v194 = vpop.f32.mrb[0].mxu0
  %195 = vmatprep.mubr.f32.mxu0 0.0
  %196 = vmatmul.mubr.f32.gmra.mrb[0].mxu0 %v86
  %v197 = vpop.f32.mrb[0].mxu0
  %v198 = vadd.f32 %v58, %v197
  %v199 = vpop.f32.mrb[0].mxu0
  %200 = vmatprep.mubr.f32.mxu0 0.0
  %201 = vmatmul.mubr.f32.gmra.mrb[0].mxu0 %v89
  %v202 = vpop.f32.mrb[0].mxu0
  %v203 = vadd.f32 %v59, %v202
  %v204 = vpop.f32.mrb[0].mxu0
  %205 = vdwg.mxu0
  %v206 = vld [vmem:[%s3] sm:$0xff]
  %v207 = vld [vmem:[%s3 + $0x8] sm:$0xff]
  %v208 = vld [vmem:[%s3 + $0x10] sm:$0xff]
  %v209 = vld [vmem:[%s3 + $0x18] sm:$0xff]
  %v210 = vld [vmem:[%s8] sm:$0x1]
  %v211 = vlaneseq
  %v212 = vshrl.u32 %v211, 7
  %v213 = vsub.s32 0, %v212
  %v214 = vrot.slane %v210, %v213
  %vm215 = vcmask 261120
  %v217 = vsel %vm215, %v158, 0
  %v220 = vsel %vm215, %v163, 0
  %v223 = vsel %vm215, %v168, 0
  %v226 = vsel %vm215, %v173, 0
  %v229 = vsel %vm215, %v178, 0
  %v232 = vsel %vm215, %v183, 0
  %v235 = vsel %vm215, %v188, 0
  %v238 = vsel %vm215, %v193, 0
  %v241 = vsel %vm215, %v198, 0
  %v244 = vsel %vm215, %v203, 0
  %246 = vmatprep.subr.mxu0 0.0
  %247 = vmatpush1.msra.mxu0 %v206
  %248 = vmatprep.subr.mxu0 0.0
  %249 = vmatpush1.msra.mxu0 %v207
  %250 = vmatprep.subr.mxu0 0.0
  %251 = vmatpush1.msra.mxu0 %v208
  %252 = vmatprep.subr.mxu0 0.0
  %253 = vmatpush1.msra.mxu0 %v209
  %254 = vmatprep.subr.mxu0 0.0
  %255 = vmatpush1.msra.mxu0 0.0
  %256 = vmatprep.subr.mxu0 0.0
  %257 = vmatpush1.msra.mxu0 0.0
  %258 = vmatprep.subr.mxu0 0.0
  %259 = vmatpush1.msra.mxu0 0.0
  %260 = vmatprep.subr.mxu0 0.0
  %261 = vmatpush1.msra.mxu0 0.0
  %262 = vmatprep.subr.mxu0 0.0
  %263 = vmatpush1.msra.mxu0 0.0
  %264 = vmatprep.subr.mxu0 0.0
  %265 = vmatpush1.msra.mxu0 0.0
  %266 = vmatprep.subr.mxu0 0.0
  %267 = vmatpush1.msra.mxu0 0.0
  %268 = vmatprep.subr.mxu0 0.0
  %269 = vmatpush1.msra.mxu0 0.0
  %270 = vmatprep.subr.mxu0 0.0
  %271 = vmatpush1.msra.mxu0 0.0
  %272 = vmatprep.subr.mxu0 0.0
  %273 = vmatpush1.msra.mxu0 0.0
  %274 = vmatprep.subr.mxu0 0.0
  %275 = vmatpush1.msra.mxu0 0.0
  %276 = vmatprep.subr.mxu0 0.0
  %277 = vmatpush1.msra.mxu0 0.0
  %278 = vmatprep.subr.mxu0 0.0
  %279 = vmatpush1.msra.mxu0 0.0
  %280 = vmatprep.subr.mxu0 0.0
  %281 = vmatpush1.msra.mxu0 0.0
  %282 = vmatprep.subr.mxu0 0.0
  %283 = vmatpush1.msra.mxu0 0.0
  %284 = vmatprep.subr.mxu0 0.0
  %285 = vmatpush1.msra.mxu0 0.0
  %286 = vmatprep.subr.mxu0 0.0
  %287 = vmatpush1.msra.mxu0 0.0
  %288 = vmatprep.subr.mxu0 0.0
  %289 = vmatpush1.msra.mxu0 0.0
  %290 = vmatprep.subr.mxu0 0.0
  %291 = vmatpush1.msra.mxu0 0.0
  %292 = vmatprep.subr.mxu0 0.0
  %293 = vmatpush1.msra.mxu0 0.0
  %294 = vmatprep.subr.mxu0 0.0
  %295 = vmatpush1.msra.mxu0 0.0
  %296 = vmatprep.subr.mxu0 0.0
  %297 = vmatpush1.msra.mxu0 0.0
  %298 = vmatprep.subr.mxu0 0.0
  %299 = vmatpush1.msra.mxu0 0.0
  %300 = vmatprep.subr.mxu0 0.0
  %301 = vmatpush1.msra.mxu0 0.0
  %302 = vmatprep.subr.mxu0 0.0
  %303 = vmatpush1.msra.mxu0 0.0
  %304 = vmatprep.subr.mxu0 0.0
  %305 = vmatpush1.msra.mxu0 0.0
  %306 = vmatprep.subr.mxu0 0.0
  %307 = vmatpush1.msra.mxu0 0.0
  %308 = vmatprep.subr.mxu0 0.0
  %309 = vmatpush1.msra.mxu0 0.0
  %310 = vmatprep.mubr.f32.mxu0 0.0
  %311 = vmatmul.mubr.f32.gmra.mrb[0].mxu0 %v217
  %v312 = vpop.f32.mrb[0].mxu0
  %v313 = vadd.f32 %v214, %v312
  %v314 = vpop.f32.mrb[0].mxu0
  %315 = vmatprep.mubr.f32.mxu0 0.0
  %316 = vmatmul.mubr.f32.gmra.mrb[0].mxu0 %v220
  %v317 = vpop.f32.mrb[0].mxu0
  %v318 = vadd.f32 %v214, %v317
  %v319 = vpop.f32.mrb[0].mxu0
  %320 = vmatprep.mubr.f32.mxu0 0.0
  %321 = vmatmul.mubr.f32.gmra.mrb[0].mxu0 %v223
  %v322 = vpop.f32.mrb[0].mxu0
  %v323 = vadd.f32 %v214, %v322
  %v324 = vpop.f32.mrb[0].mxu0
  %325 = vmatprep.mubr.f32.mxu0 0.0
  %326 = vmatmul.mubr.f32.gmra.mrb[0].mxu0 %v226
  %v327 = vpop.f32.mrb[0].mxu0
  %v328 = vadd.f32 %v214, %v327
  %v329 = vpop.f32.mrb[0].mxu0
  %330 = vmatprep.mubr.f32.mxu0 0.0
  %331 = vmatmul.mubr.f32.gmra.mrb[0].mxu0 %v229
  %v332 = vpop.f32.mrb[0].mxu0
  %v333 = vadd.f32 %v214, %v332
  %v334 = vpop.f32.mrb[0].mxu0
  %335 = vmatprep.mubr.f32.mxu0 0.0
  %336 = vmatmul.mubr.f32.gmra.mrb[0].mxu0 %v232
  %v337 = vpop.f32.mrb[0].mxu0
  %v338 = vadd.f32 %v214, %v337
  %v339 = vpop.f32.mrb[0].mxu0
  %340 = vmatprep.mubr.f32.mxu0 0.0
  %341 = vmatmul.mubr.f32.gmra.mrb[0].mxu0 %v235
  %v342 = vpop.f32.mrb[0].mxu0
  %v343 = vadd.f32 %v214, %v342
  %v344 = vpop.f32.mrb[0].mxu0
  %345 = vmatprep.mubr.f32.mxu0 0.0
  %346 = vmatmul.mubr.f32.gmra.mrb[0].mxu0 %v238
  %v347 = vpop.f32.mrb[0].mxu0
  %v348 = vadd.f32 %v214, %v347
  %v349 = vpop.f32.mrb[0].mxu0
  %350 = vmatprep.mubr.f32.mxu0 0.0
  %351 = vmatmul.mubr.f32.gmra.mrb[0].mxu0 %v241
  %v352 = vpop.f32.mrb[0].mxu0
  %v353 = vadd.f32 %v214, %v352
  %v354 = vpop.f32.mrb[0].mxu0
  %355 = vmatprep.mubr.f32.mxu0 0.0
  %356 = vmatmul.mubr.f32.gmra.mrb[0].mxu0 %v244
  %v357 = vpop.f32.mrb[0].mxu0
  %v358 = vadd.f32 %v214, %v357
  %v359 = vpop.f32.mrb[0].mxu0
  %360 = vdwg.mxu0
  %v361 = vlaneseq
  %v362 = vshrl.u32 %v361, 7
  %v363 = vadd.s32 %v362, 8
  %v364 = vadd.s32 %v362, 16
  %v365 = vadd.s32 %v362, 24
  %v366 = vadd.s32 %v362, 32
  %v367 = vadd.s32 %v362, 40
  %v368 = vadd.s32 %v362, 48
  %v369 = vadd.s32 %v362, 56
  %v370 = vadd.s32 %v362, 64
  %v371 = vadd.s32 %v362, 72
  %v372 = vlaneseq
  %v373 = vand.u32 %v372, 127
  %vm374 = vcmp.ge.s32.totalorder %v362, 10
  %vm375 = vcmp.ge.s32.totalorder %v363, 10
  %vm376 = vcmp.ge.s32.totalorder %v364, 10
  %vm377 = vcmp.ge.s32.totalorder %v365, 10
  %vm378 = vcmp.ge.s32.totalorder %v366, 10
  %vm379 = vcmp.ge.s32.totalorder %v367, 10
  %vm380 = vcmp.ge.s32.totalorder %v368, 10
  %vm381 = vcmp.ge.s32.totalorder %v369, 10
  %vm382 = vcmp.ge.s32.totalorder %v370, 10
  %vm383 = vcmp.ge.s32.totalorder %v371, 10
  %v384 = vsel %vm374, 1, 0
  %v385 = vsel %vm375, 1, 0
  %v386 = vsel %vm376, 1, 0
  %v387 = vsel %vm377, 1, 0
  %v388 = vsel %vm378, 1, 0
  %v389 = vsel %vm379, 1, 0
  %v390 = vsel %vm380, 1, 0
  %v391 = vsel %vm381, 1, 0
  %v392 = vsel %vm382, 1, 0
  %v393 = vsel %vm383, 1, 0
  %vm394 = vcmp.ge.s32.totalorder %v373, 10
  %v395 = vsel %vm394, 1, 0
  %vm396 = vcmp.ge.s32.totalorder %v362, 20
  %vm397 = vcmp.ge.s32.totalorder %v363, 20
  %vm398 = vcmp.ge.s32.totalorder %v364, 20
  %vm399 = vcmp.ge.s32.totalorder %v365, 20
  %vm400 = vcmp.ge.s32.totalorder %v366, 20
  %vm401 = vcmp.ge.s32.totalorder %v367, 20
  %vm402 = vcmp.ge.s32.totalorder %v368, 20
  %vm403 = vcmp.ge.s32.totalorder %v369, 20
  %vm404 = vcmp.ge.s32.totalorder %v370, 20
  %vm405 = vcmp.ge.s32.totalorder %v371, 20
  %v406 = vsel %vm396, 1, 0
  %v407 = vsel %vm397, 1, 0
  %v408 = vsel %vm398, 1, 0
  %v409 = vsel %vm399, 1, 0
  %v410 = vsel %vm400, 1, 0
  %v411 = vsel %vm401, 1, 0
  %v412 = vsel %vm402, 1, 0
  %v413 = vsel %vm403, 1, 0
  %v414 = vsel %vm404, 1, 0
  %v415 = vsel %vm405, 1, 0
  %v416 = vadd.s32 %v384, %v406
  %v417 = vadd.s32 %v385, %v407
  %v418 = vadd.s32 %v386, %v408
  %v419 = vadd.s32 %v387, %v409
  %v420 = vadd.s32 %v388, %v410
  %v421 = vadd.s32 %v389, %v411
  %v422 = vadd.s32 %v390, %v412
  %v423 = vadd.s32 %v391, %v413
  %v424 = vadd.s32 %v392, %v414
  %v425 = vadd.s32 %v393, %v415
  %vm426 = vcmp.ge.s32.totalorder %v373, 20
  %v427 = vsel %vm426, 1, 0
  %v428 = vadd.s32 %v395, %v427
  %vm429 = vcmp.ge.s32.totalorder %v362, 30
  %vm430 = vcmp.ge.s32.totalorder %v363, 30
  %vm431 = vcmp.ge.s32.totalorder %v364, 30
  %vm432 = vcmp.ge.s32.totalorder %v365, 30
  %vm433 = vcmp.ge.s32.totalorder %v366, 30
  %vm434 = vcmp.ge.s32.totalorder %v367, 30
  %vm435 = vcmp.ge.s32.totalorder %v368, 30
  %vm436 = vcmp.ge.s32.totalorder %v369, 30
  %vm437 = vcmp.ge.s32.totalorder %v370, 30
  %vm438 = vcmp.ge.s32.totalorder %v371, 30
  %v439 = vsel %vm429, 1, 0
  %v440 = vsel %vm430, 1, 0
  %v441 = vsel %vm431, 1, 0
  %v442 = vsel %vm432, 1, 0
  %v443 = vsel %vm433, 1, 0
  %v444 = vsel %vm434, 1, 0
  %v445 = vsel %vm435, 1, 0
  %v446 = vsel %vm436, 1, 0
  %v447 = vsel %vm437, 1, 0
  %v448 = vsel %vm438, 1, 0
  %v449 = vadd.s32 %v416, %v439
  %v450 = vadd.s32 %v417, %v440
  %v451 = vadd.s32 %v418, %v441
  %v452 = vadd.s32 %v419, %v442
  %v453 = vadd.s32 %v420, %v443
  %v454 = vadd.s32 %v421, %v444
  %v455 = vadd.s32 %v422, %v445
  %v456 = vadd.s32 %v423, %v446
  %v457 = vadd.s32 %v424, %v447
  %v458 = vadd.s32 %v425, %v448
  %vm459 = vcmp.ge.s32.totalorder %v373, 30
  %v460 = vsel %vm459, 1, 0
  %v461 = vadd.s32 %v428, %v460
  %vm462 = vcmp.ge.s32.totalorder %v362, 40
  %vm463 = vcmp.ge.s32.totalorder %v363, 40
  %vm464 = vcmp.ge.s32.totalorder %v364, 40
  %vm465 = vcmp.ge.s32.totalorder %v365, 40
  %vm466 = vcmp.ge.s32.totalorder %v366, 40
  %vm467 = vcmp.ge.s32.totalorder %v367, 40
  %vm468 = vcmp.ge.s32.totalorder %v368, 40
  %vm469 = vcmp.ge.s32.totalorder %v369, 40
  %vm470 = vcmp.ge.s32.totalorder %v370, 40
  %vm471 = vcmp.ge.s32.totalorder %v371, 40
  %v472 = vsel %vm462, 1, 0
  %v473 = vsel %vm463, 1, 0
  %v474 = vsel %vm464, 1, 0
  %v475 = vsel %vm465, 1, 0
  %v476 = vsel %vm466, 1, 0
  %v477 = vsel %vm467, 1, 0
  %v478 = vsel %vm468, 1, 0
  %v479 = vsel %vm469, 1, 0
  %v480 = vsel %vm470, 1, 0
  %v481 = vsel %vm471, 1, 0
  %v482 = vadd.s32 %v449, %v472
  %v483 = vadd.s32 %v450, %v473
  %v484 = vadd.s32 %v451, %v474
  %v485 = vadd.s32 %v452, %v475
  %v486 = vadd.s32 %v453, %v476
  %v487 = vadd.s32 %v454, %v477
  %v488 = vadd.s32 %v455, %v478
  %v489 = vadd.s32 %v456, %v479
  %v490 = vadd.s32 %v457, %v480
  %v491 = vadd.s32 %v458, %v481
  %vm492 = vcmp.ge.s32.totalorder %v373, 40
  %v493 = vsel %vm492, 1, 0
  %v494 = vadd.s32 %v461, %v493
  %vm495 = vcmp.ge.s32.totalorder %v362, 50
  %vm496 = vcmp.ge.s32.totalorder %v363, 50
  %vm497 = vcmp.ge.s32.totalorder %v364, 50
  %vm498 = vcmp.ge.s32.totalorder %v365, 50
  %vm499 = vcmp.ge.s32.totalorder %v366, 50
  %vm500 = vcmp.ge.s32.totalorder %v367, 50
  %vm501 = vcmp.ge.s32.totalorder %v368, 50
  %vm502 = vcmp.ge.s32.totalorder %v369, 50
  %vm503 = vcmp.ge.s32.totalorder %v370, 50
  %vm504 = vcmp.ge.s32.totalorder %v371, 50
  %v505 = vsel %vm495, 1, 0
  %v506 = vsel %vm496, 1, 0
  %v507 = vsel %vm497, 1, 0
  %v508 = vsel %vm498, 1, 0
  %v509 = vsel %vm499, 1, 0
  %v510 = vsel %vm500, 1, 0
  %v511 = vsel %vm501, 1, 0
  %v512 = vsel %vm502, 1, 0
  %v513 = vsel %vm503, 1, 0
  %v514 = vsel %vm504, 1, 0
  %v515 = vadd.s32 %v482, %v505
  %v516 = vadd.s32 %v483, %v506
  %v517 = vadd.s32 %v484, %v507
  %v518 = vadd.s32 %v485, %v508
  %v519 = vadd.s32 %v486, %v509
  %v520 = vadd.s32 %v487, %v510
  %v521 = vadd.s32 %v488, %v511
  %v522 = vadd.s32 %v489, %v512
  %v523 = vadd.s32 %v490, %v513
  %v524 = vadd.s32 %v491, %v514
  %vm525 = vcmp.ge.s32.totalorder %v373, 50
  %v526 = vsel %vm525, 1, 0
  %v527 = vadd.s32 %v494, %v526
  %vm528 = vcmp.ge.s32.totalorder %v362, 60
  %vm529 = vcmp.ge.s32.totalorder %v363, 60
  %vm530 = vcmp.ge.s32.totalorder %v364, 60
  %vm531 = vcmp.ge.s32.totalorder %v365, 60
  %vm532 = vcmp.ge.s32.totalorder %v366, 60
  %vm533 = vcmp.ge.s32.totalorder %v367, 60
  %vm534 = vcmp.ge.s32.totalorder %v368, 60
  %vm535 = vcmp.ge.s32.totalorder %v369, 60
  %vm536 = vcmp.ge.s32.totalorder %v370, 60
  %vm537 = vcmp.ge.s32.totalorder %v371, 60
  %v538 = vsel %vm528, 1, 0
  %v539 = vsel %vm529, 1, 0
  %v540 = vsel %vm530, 1, 0
  %v541 = vsel %vm531, 1, 0
  %v542 = vsel %vm532, 1, 0
  %v543 = vsel %vm533, 1, 0
  %v544 = vsel %vm534, 1, 0
  %v545 = vsel %vm535, 1, 0
  %v546 = vsel %vm536, 1, 0
  %v547 = vsel %vm537, 1, 0
  %v548 = vadd.s32 %v515, %v538
  %v549 = vadd.s32 %v516, %v539
  %v550 = vadd.s32 %v517, %v540
  %v551 = vadd.s32 %v518, %v541
  %v552 = vadd.s32 %v519, %v542
  %v553 = vadd.s32 %v520, %v543
  %v554 = vadd.s32 %v521, %v544
  %v555 = vadd.s32 %v522, %v545
  %v556 = vadd.s32 %v523, %v546
  %v557 = vadd.s32 %v524, %v547
  %vm558 = vcmp.ge.s32.totalorder %v373, 60
  %v559 = vsel %vm558, 1, 0
  %v560 = vadd.s32 %v527, %v559
  %vm561 = vcmp.ge.s32.totalorder %v362, 70
  %vm562 = vcmp.ge.s32.totalorder %v363, 70
  %vm563 = vcmp.ge.s32.totalorder %v364, 70
  %vm564 = vcmp.ge.s32.totalorder %v365, 70
  %vm565 = vcmp.ge.s32.totalorder %v366, 70
  %vm566 = vcmp.ge.s32.totalorder %v367, 70
  %vm567 = vcmp.ge.s32.totalorder %v368, 70
  %vm568 = vcmp.ge.s32.totalorder %v369, 70
  %vm569 = vcmp.ge.s32.totalorder %v370, 70
  %vm570 = vcmp.ge.s32.totalorder %v371, 70
  %v571 = vsel %vm561, 1, 0
  %v572 = vsel %vm562, 1, 0
  %v573 = vsel %vm563, 1, 0
  %v574 = vsel %vm564, 1, 0
  %v575 = vsel %vm565, 1, 0
  %v576 = vsel %vm566, 1, 0
  %v577 = vsel %vm567, 1, 0
  %v578 = vsel %vm568, 1, 0
  %v579 = vsel %vm569, 1, 0
  %v580 = vsel %vm570, 1, 0
  %v581 = vadd.s32 %v548, %v571
  %v582 = vadd.s32 %v549, %v572
  %v583 = vadd.s32 %v550, %v573
  %v584 = vadd.s32 %v551, %v574
  %v585 = vadd.s32 %v552, %v575
  %v586 = vadd.s32 %v553, %v576
  %v587 = vadd.s32 %v554, %v577
  %v588 = vadd.s32 %v555, %v578
  %v589 = vadd.s32 %v556, %v579
  %v590 = vadd.s32 %v557, %v580
  %vm591 = vcmp.ge.s32.totalorder %v373, 70
  %v592 = vsel %vm591, 1, 0
  %v593 = vadd.s32 %v560, %v592
  %vm594 = vcmp.eq.s32.totalorder %v581, %v593
  %vm595 = vcmp.eq.s32.totalorder %v582, %v593
  %vm596 = vcmp.eq.s32.totalorder %v583, %v593
  %vm597 = vcmp.eq.s32.totalorder %v584, %v593
  %vm598 = vcmp.eq.s32.totalorder %v585, %v593
  %vm599 = vcmp.eq.s32.totalorder %v586, %v593
  %vm600 = vcmp.eq.s32.totalorder %v587, %v593
  %vm601 = vcmp.eq.s32.totalorder %v588, %v593
  %vm602 = vcmp.eq.s32.totalorder %v589, %v593
  %vm603 = vcmp.eq.s32.totalorder %v590, %v593
  %v604 = vsel %vm594, 0.0, -1e+30
  %v605 = vsel %vm595, 0.0, -1e+30
  %v606 = vsel %vm596, 0.0, -1e+30
  %v607 = vsel %vm597, 0.0, -1e+30
  %v608 = vsel %vm598, 0.0, -1e+30
  %v609 = vsel %vm599, 0.0, -1e+30
  %v610 = vsel %vm600, 0.0, -1e+30
  %v611 = vsel %vm601, 0.0, -1e+30
  %v612 = vsel %vm602, 0.0, -1e+30
  %v613 = vsel %vm603, 0.0, -1e+30
  %v614 = vld [vmem:[%s4] sm:$0xff]
  %v615 = vld [vmem:[%s4 + $0x8] sm:$0xff]
  %v616 = vld [vmem:[%s4 + $0x10] sm:$0xff]
  %v617 = vld [vmem:[%s4 + $0x18] sm:$0xff]
  %v618 = vld [vmem:[%s4 + $0x20] sm:$0xff]
  %v619 = vld [vmem:[%s4 + $0x28] sm:$0xff]
  %v620 = vld [vmem:[%s4 + $0x30] sm:$0xff]
  %v621 = vld [vmem:[%s4 + $0x38] sm:$0xff]
  %v622 = vld [vmem:[%s5] sm:$0xff]
  %v623 = vld [vmem:[%s5 + $0x8] sm:$0xff]
  %v624 = vld [vmem:[%s5 + $0x10] sm:$0xff]
  %v625 = vld [vmem:[%s5 + $0x18] sm:$0xff]
  %v626 = vld [vmem:[%s5 + $0x20] sm:$0xff]
  %v627 = vld [vmem:[%s5 + $0x28] sm:$0xff]
  %v628 = vld [vmem:[%s5 + $0x30] sm:$0xff]
  %v629 = vld [vmem:[%s5 + $0x38] sm:$0xff]
  %v630 = vld [vmem:[%s6] sm:$0xff]
  %v631 = vld [vmem:[%s6 + $0x8] sm:$0xff]
  %v632 = vld [vmem:[%s6 + $0x10] sm:$0xff]
  %v633 = vld [vmem:[%s6 + $0x18] sm:$0xff]
  %v634 = vld [vmem:[%s7] sm:$0xff]
  %v635 = vld [vmem:[%s7 + $0x8] sm:$0xff]
  %v636 = vld [vmem:[%s7 + $0x10] sm:$0xff]
  %v637 = vld [vmem:[%s7 + $0x18] sm:$0xff]
  %v638 = vld [vmem:[%s7 + $0x20] sm:$0xff]
  %v639 = vld [vmem:[%s7 + $0x28] sm:$0xff]
  %v640 = vld [vmem:[%s7 + $0x30] sm:$0xff]
  %v641 = vld [vmem:[%s7 + $0x38] sm:$0xff]
  %v642 = vld [vmem:[%s7 + $0x40] sm:$0xff]
  %v643 = vld [vmem:[%s7 + $0x48] sm:$0xff]
  %v644 = vld [vmem:[%s7 + $0x50] sm:$0xff]
  %v645 = vld [vmem:[%s7 + $0x58] sm:$0xff]
  %v646 = vld [vmem:[%s7 + $0x60] sm:$0xff]
  %v647 = vld [vmem:[%s7 + $0x68] sm:$0xff]
  %v648 = vld [vmem:[%s7 + $0x70] sm:$0xff]
  %v649 = vld [vmem:[%s7 + $0x78] sm:$0xff]
  %v650 = vld [vmem:[%s9] sm:$0x1]
  %v651 = vld [vmem:[%s8 + $0x3] sm:$0x1]
  %v652 = vld [vmem:[%s8 + $0x4] sm:$0x1]
  %v653 = vld [vmem:[%s8 + $0x5] sm:$0x1]
  %v654 = vld [vmem:[%s8 + $0x6] sm:$0x1]
  %v655 = vld [vmem:[%s8 + $0x7] sm:$0x1]
  %v656 = vld [vmem:[%s8 + $0x8] sm:$0x1]
  %v658 = vsel %vm215, %v313, 0
  %v661 = vsel %vm215, %v318, 0
  %v664 = vsel %vm215, %v323, 0
  %v667 = vsel %vm215, %v328, 0
  %v670 = vsel %vm215, %v333, 0
  %v673 = vsel %vm215, %v338, 0
  %v676 = vsel %vm215, %v343, 0
  %v679 = vsel %vm215, %v348, 0
  %v682 = vsel %vm215, %v353, 0
  %v685 = vsel %vm215, %v358, 0
  %687 = vmatprep.subr.mxu0 %v615
  %688 = vmatpush1.msra.mxu0 %v614
  %689 = vmatprep.subr.mxu0 %v617
  %690 = vmatpush1.msra.mxu0 %v616
  %691 = vmatprep.subr.mxu0 %v619
  %692 = vmatpush1.msra.mxu0 %v618
  %693 = vmatprep.subr.mxu0 %v621
  %694 = vmatpush1.msra.mxu0 %v620
  %695 = vmatprep.subr.mxu0 0.0
  %696 = vmatpush1.msra.mxu0 0.0
  %697 = vmatprep.subr.mxu0 0.0
  %698 = vmatpush1.msra.mxu0 0.0
  %699 = vmatprep.subr.mxu0 0.0
  %700 = vmatpush1.msra.mxu0 0.0
  %701 = vmatprep.subr.mxu0 0.0
  %702 = vmatpush1.msra.mxu0 0.0
  %703 = vmatprep.subr.mxu0 0.0
  %704 = vmatpush1.msra.mxu0 0.0
  %705 = vmatprep.subr.mxu0 0.0
  %706 = vmatpush1.msra.mxu0 0.0
  %707 = vmatprep.subr.mxu0 0.0
  %708 = vmatpush1.msra.mxu0 0.0
  %709 = vmatprep.subr.mxu0 0.0
  %710 = vmatpush1.msra.mxu0 0.0
  %711 = vmatprep.subr.mxu0 0.0
  %712 = vmatpush1.msra.mxu0 0.0
  %713 = vmatprep.subr.mxu0 0.0
  %714 = vmatpush1.msra.mxu0 0.0
  %715 = vmatprep.subr.mxu0 0.0
  %716 = vmatpush1.msra.mxu0 0.0
  %717 = vmatprep.subr.mxu0 0.0
  %718 = vmatpush1.msra.mxu0 0.0
  %719 = vmatprep.subr.mxu0 0.0
  %720 = vmatpush1.msra.mxu0 0.0
  %721 = vmatprep.subr.mxu0 0.0
  %722 = vmatpush1.msra.mxu0 0.0
  %723 = vmatprep.subr.mxu0 0.0
  %724 = vmatpush1.msra.mxu0 0.0
  %725 = vmatprep.subr.mxu0 0.0
  %726 = vmatpush1.msra.mxu0 0.0
  %727 = vmatprep.subr.mxu0 0.0
  %728 = vmatpush1.msra.mxu0 0.0
  %729 = vmatprep.subr.mxu0 0.0
  %730 = vmatpush1.msra.mxu0 0.0
  %731 = vmatprep.subr.mxu0 0.0
  %732 = vmatpush1.msra.mxu0 0.0
  %733 = vmatprep.subr.mxu0 0.0
  %734 = vmatpush1.msra.mxu0 0.0
  %735 = vmatprep.subr.mxu0 0.0
  %736 = vmatpush1.msra.mxu0 0.0
  %737 = vmatprep.subr.mxu0 0.0
  %738 = vmatpush1.msra.mxu0 0.0
  %739 = vmatprep.subr.mxu0 0.0
  %740 = vmatpush1.msra.mxu0 0.0
  %741 = vmatprep.subr.mxu0 0.0
  %742 = vmatpush1.msra.mxu0 0.0
  %743 = vmatprep.subr.mxu0 0.0
  %744 = vmatpush1.msra.mxu0 0.0
  %745 = vmatprep.subr.mxu0 0.0
  %746 = vmatpush1.msra.mxu0 0.0
  %747 = vmatprep.subr.mxu0 0.0
  %748 = vmatpush1.msra.mxu0 0.0
  %749 = vmatprep.subr.mxu0 0.0
  %750 = vmatpush1.msra.mxu0 0.0
  %751 = vmatprep.mubr.f32.mxu0 0.0
  %752 = vmatmul.mubr.f32.gmra.mrb[0].mxu0 %v658
  %v753 = vpop.f32.mrb[0].mxu0
  %v754 = vadd.f32 0.0, %v753
  %v755 = vpop.f32.mrb[0].mxu0
  %v756 = vadd.f32 0.0, %v755
  %757 = vmatprep.mubr.f32.mxu0 0.0
  %758 = vmatmul.mubr.f32.gmra.mrb[0].mxu0 %v661
  %v759 = vpop.f32.mrb[0].mxu0
  %v760 = vadd.f32 0.0, %v759
  %v761 = vpop.f32.mrb[0].mxu0
  %v762 = vadd.f32 0.0, %v761
  %763 = vmatprep.mubr.f32.mxu0 0.0
  %764 = vmatmul.mubr.f32.gmra.mrb[0].mxu0 %v664
  %v765 = vpop.f32.mrb[0].mxu0
  %v766 = vadd.f32 0.0, %v765
  %v767 = vpop.f32.mrb[0].mxu0
  %v768 = vadd.f32 0.0, %v767
  %769 = vmatprep.mubr.f32.mxu0 0.0
  %770 = vmatmul.mubr.f32.gmra.mrb[0].mxu0 %v667
  %v771 = vpop.f32.mrb[0].mxu0
  %v772 = vadd.f32 0.0, %v771
  %v773 = vpop.f32.mrb[0].mxu0
  %v774 = vadd.f32 0.0, %v773
  %775 = vmatprep.mubr.f32.mxu0 0.0
  %776 = vmatmul.mubr.f32.gmra.mrb[0].mxu0 %v670
  %v777 = vpop.f32.mrb[0].mxu0
  %v778 = vadd.f32 0.0, %v777
  %v779 = vpop.f32.mrb[0].mxu0
  %v780 = vadd.f32 0.0, %v779
  %781 = vmatprep.mubr.f32.mxu0 0.0
  %782 = vmatmul.mubr.f32.gmra.mrb[0].mxu0 %v673
  %v783 = vpop.f32.mrb[0].mxu0
  %v784 = vadd.f32 0.0, %v783
  %v785 = vpop.f32.mrb[0].mxu0
  %v786 = vadd.f32 0.0, %v785
  %787 = vmatprep.mubr.f32.mxu0 0.0
  %788 = vmatmul.mubr.f32.gmra.mrb[0].mxu0 %v676
  %v789 = vpop.f32.mrb[0].mxu0
  %v790 = vadd.f32 0.0, %v789
  %v791 = vpop.f32.mrb[0].mxu0
  %v792 = vadd.f32 0.0, %v791
  %793 = vmatprep.mubr.f32.mxu0 0.0
  %794 = vmatmul.mubr.f32.gmra.mrb[0].mxu0 %v679
  %v795 = vpop.f32.mrb[0].mxu0
  %v796 = vadd.f32 0.0, %v795
  %v797 = vpop.f32.mrb[0].mxu0
  %v798 = vadd.f32 0.0, %v797
  %799 = vmatprep.mubr.f32.mxu0 0.0
  %800 = vmatmul.mubr.f32.gmra.mrb[0].mxu0 %v682
  %v801 = vpop.f32.mrb[0].mxu0
  %v802 = vadd.f32 0.0, %v801
  %v803 = vpop.f32.mrb[0].mxu0
  %v804 = vadd.f32 0.0, %v803
  %805 = vmatprep.mubr.f32.mxu0 0.0
  %806 = vmatmul.mubr.f32.gmra.mrb[0].mxu0 %v685
  %v807 = vpop.f32.mrb[0].mxu0
  %v808 = vadd.f32 0.0, %v807
  %v809 = vpop.f32.mrb[0].mxu0
  %v810 = vadd.f32 0.0, %v809
  %811 = vdwg.mxu0
  %v812 = vmul.f32 %v754, 0.4204482
  %v813 = vmul.f32 %v760, 0.4204482
  %v814 = vmul.f32 %v766, 0.4204482
  %v815 = vmul.f32 %v772, 0.4204482
  %v816 = vmul.f32 %v778, 0.4204482
  %v817 = vmul.f32 %v784, 0.4204482
  %v818 = vmul.f32 %v790, 0.4204482
  %v819 = vmul.f32 %v796, 0.4204482
  %v820 = vmul.f32 %v802, 0.4204482
  %v821 = vmul.f32 %v808, 0.4204482
  %832 = vrot.lane.b32.xlu0 %v812, 64
  %v833 = vpop.permute.xlu0 %832
  %834 = vrot.lane.b32.xlu0 %v813, 64
  %v835 = vpop.permute.xlu0 %834
  %836 = vrot.lane.b32.xlu0 %v814, 64
  %v837 = vpop.permute.xlu0 %836
  %838 = vrot.lane.b32.xlu0 %v815, 64
  %v839 = vpop.permute.xlu0 %838
  %840 = vrot.lane.b32.xlu0 %v816, 64
  %v841 = vpop.permute.xlu0 %840
  %842 = vrot.lane.b32.xlu0 %v817, 64
  %v843 = vpop.permute.xlu0 %842
  %844 = vrot.lane.b32.xlu0 %v818, 64
  %v845 = vpop.permute.xlu0 %844
  %846 = vrot.lane.b32.xlu0 %v819, 64
  %v847 = vpop.permute.xlu0 %846
  %848 = vrot.lane.b32.xlu0 %v820, 64
  %v849 = vpop.permute.xlu0 %848
  %850 = vrot.lane.b32.xlu0 %v821, 64
  %v851 = vpop.permute.xlu0 %850
  %v852 = vsel %vm215, %v812, 0
  %v854 = vsel %vm215, %v813, 0
  %v856 = vsel %vm215, %v814, 0
  %v858 = vsel %vm215, %v815, 0
  %v860 = vsel %vm215, %v816, 0
  %v862 = vsel %vm215, %v817, 0
  %v864 = vsel %vm215, %v818, 0
  %v866 = vsel %vm215, %v819, 0
  %v868 = vsel %vm215, %v820, 0
  %v870 = vsel %vm215, %v821, 0
  %v872 = vsel %vm215, %v833, 0
  %v874 = vsel %vm215, %v835, 0
  %v876 = vsel %vm215, %v837, 0
  %v878 = vsel %vm215, %v839, 0
  %v880 = vsel %vm215, %v841, 0
  %v882 = vsel %vm215, %v843, 0
  %v884 = vsel %vm215, %v845, 0
  %v886 = vsel %vm215, %v847, 0
  %v888 = vsel %vm215, %v849, 0
  %v890 = vsel %vm215, %v851, 0
  %892 = vmatprep.subr.mxu0 0.0
  %893 = vmatpush1.xpose.msra.mxu0 %v872
  %894 = vmatprep.subr.mxu0 0.0
  %895 = vmatpush1.xpose.msra.mxu0 %v874
  %896 = vmatprep.subr.mxu0 0.0
  %897 = vmatpush1.xpose.msra.mxu0 %v876
  %898 = vmatprep.subr.mxu0 0.0
  %899 = vmatpush1.xpose.msra.mxu0 %v878
  %900 = vmatprep.subr.mxu0 0.0
  %901 = vmatpush1.xpose.msra.mxu0 %v880
  %902 = vmatprep.subr.mxu0 0.0
  %903 = vmatpush1.xpose.msra.mxu0 %v882
  %904 = vmatprep.subr.mxu0 0.0
  %905 = vmatpush1.xpose.msra.mxu0 %v884
  %906 = vmatprep.subr.mxu0 0.0
  %907 = vmatpush1.xpose.msra.mxu0 %v886
  %908 = vmatprep.subr.mxu0 0.0
  %909 = vmatpush1.xpose.msra.mxu0 %v888
  %910 = vmatprep.subr.mxu0 0.0
  %911 = vmatpush1.xpose.msra.mxu0 %v890
  %912 = vmatprep.subr.mxu0 0.0
  %913 = vmatpush1.xpose.msra.mxu0 0.0
  %914 = vmatprep.subr.mxu0 0.0
  %915 = vmatpush1.xpose.msra.mxu0 0.0
  %916 = vmatprep.subr.mxu0 0.0
  %917 = vmatpush1.xpose.msra.mxu0 0.0
  %918 = vmatprep.subr.mxu0 0.0
  %919 = vmatpush1.xpose.msra.mxu0 0.0
  %920 = vmatprep.subr.mxu0 0.0
  %921 = vmatpush1.xpose.msra.mxu0 0.0
  %922 = vmatprep.subr.mxu0 0.0
  %923 = vmatpush1.xpose.msra.mxu0 0.0
  %924 = vmatprep.subr.mxu0 0.0
  %925 = vmatpush1.xpose.msra.mxu0 0.0
  %926 = vmatprep.subr.mxu0 0.0
  %927 = vmatpush1.xpose.msra.mxu0 0.0
  %928 = vmatprep.subr.mxu0 0.0
  %929 = vmatpush1.xpose.msra.mxu0 0.0
  %930 = vmatprep.subr.mxu0 0.0
  %931 = vmatpush1.xpose.msra.mxu0 0.0
  %932 = vmatprep.subr.mxu0 0.0
  %933 = vmatpush1.xpose.msra.mxu0 0.0
  %934 = vmatprep.subr.mxu0 0.0
  %935 = vmatpush1.xpose.msra.mxu0 0.0
  %936 = vmatprep.subr.mxu0 0.0
  %937 = vmatpush1.xpose.msra.mxu0 0.0
  %938 = vmatprep.subr.mxu0 0.0
  %939 = vmatpush1.xpose.msra.mxu0 0.0
  %940 = vmatprep.subr.mxu0 0.0
  %941 = vmatpush1.xpose.msra.mxu0 0.0
  %942 = vmatprep.subr.mxu0 0.0
  %943 = vmatpush1.xpose.msra.mxu0 0.0
  %944 = vmatprep.subr.mxu0 0.0
  %945 = vmatpush1.xpose.msra.mxu0 0.0
  %946 = vmatprep.subr.mxu0 0.0
  %947 = vmatpush1.xpose.msra.mxu0 0.0
  %948 = vmatprep.subr.mxu0 0.0
  %949 = vmatpush1.xpose.msra.mxu0 0.0
  %950 = vmatprep.subr.mxu0 0.0
  %951 = vmatpush1.xpose.msra.mxu0 0.0
  %952 = vmatprep.subr.mxu0 0.0
  %953 = vmatpush1.xpose.msra.mxu0 0.0
  %954 = vmatprep.subr.mxu0 0.0
  %955 = vmatpush1.xpose.msra.mxu0 0.0
  %956 = vmatprep.mubr.f32.mxu0 0.0
  %957 = vmatmul.mubr.f32.gmra.mrb[0].mxu0 %v852
  %v958 = vpop.f32.mrb[0].mxu0
  %v959 = vadd.f32 %v604, %v958
  %v960 = vpop.f32.mrb[0].mxu0
  %961 = vmatprep.mubr.f32.mxu0 0.0
  %962 = vmatmul.mubr.f32.gmra.mrb[0].mxu0 %v854
  %v963 = vpop.f32.mrb[0].mxu0
  %v964 = vadd.f32 %v605, %v963
  %v965 = vpop.f32.mrb[0].mxu0
  %966 = vmatprep.mubr.f32.mxu0 0.0
  %967 = vmatmul.mubr.f32.gmra.mrb[0].mxu0 %v856
  %v968 = vpop.f32.mrb[0].mxu0
  %v969 = vadd.f32 %v606, %v968
  %v970 = vpop.f32.mrb[0].mxu0
  %971 = vmatprep.mubr.f32.mxu0 0.0
  %972 = vmatmul.mubr.f32.gmra.mrb[0].mxu0 %v858
  %v973 = vpop.f32.mrb[0].mxu0
  %v974 = vadd.f32 %v607, %v973
  %v975 = vpop.f32.mrb[0].mxu0
  %976 = vmatprep.mubr.f32.mxu0 0.0
  %977 = vmatmul.mubr.f32.gmra.mrb[0].mxu0 %v860
  %v978 = vpop.f32.mrb[0].mxu0
  %v979 = vadd.f32 %v608, %v978
  %v980 = vpop.f32.mrb[0].mxu0
  %981 = vmatprep.mubr.f32.mxu0 0.0
  %982 = vmatmul.mubr.f32.gmra.mrb[0].mxu0 %v862
  %v983 = vpop.f32.mrb[0].mxu0
  %v984 = vadd.f32 %v609, %v983
  %v985 = vpop.f32.mrb[0].mxu0
  %986 = vmatprep.mubr.f32.mxu0 0.0
  %987 = vmatmul.mubr.f32.gmra.mrb[0].mxu0 %v864
  %v988 = vpop.f32.mrb[0].mxu0
  %v989 = vadd.f32 %v610, %v988
  %v990 = vpop.f32.mrb[0].mxu0
  %991 = vmatprep.mubr.f32.mxu0 0.0
  %992 = vmatmul.mubr.f32.gmra.mrb[0].mxu0 %v866
  %v993 = vpop.f32.mrb[0].mxu0
  %v994 = vadd.f32 %v611, %v993
  %v995 = vpop.f32.mrb[0].mxu0
  %996 = vmatprep.mubr.f32.mxu0 0.0
  %997 = vmatmul.mubr.f32.gmra.mrb[0].mxu0 %v868
  %v998 = vpop.f32.mrb[0].mxu0
  %v999 = vadd.f32 %v612, %v998
  %v1000 = vpop.f32.mrb[0].mxu0
  %1001 = vmatprep.mubr.f32.mxu0 0.0
  %1002 = vmatmul.mubr.f32.gmra.mrb[0].mxu0 %v870
  %v1003 = vpop.f32.mrb[0].mxu0
  %v1004 = vadd.f32 %v613, %v1003
  %v1005 = vpop.f32.mrb[0].mxu0
  %1006 = vdwg.mxu0
  %vm1007 = vcmask 654336
  %v1008 = vsel %vm1007, %v959, -inf
  %1009 = vmax.xlane.f32.xlu0 %v1008
  %v1010 = vpop.xlane.xlu0 %1009
  %v1011 = vsel %vm1007, %v964, -inf
  %1012 = vmax.xlane.f32.xlu0 %v1011
  %v1013 = vpop.xlane.xlu0 %1012
  %v1014 = vsel %vm1007, %v969, -inf
  %1015 = vmax.xlane.f32.xlu0 %v1014
  %v1016 = vpop.xlane.xlu0 %1015
  %v1017 = vsel %vm1007, %v974, -inf
  %1018 = vmax.xlane.f32.xlu0 %v1017
  %v1019 = vpop.xlane.xlu0 %1018
  %v1020 = vsel %vm1007, %v979, -inf
  %1021 = vmax.xlane.f32.xlu0 %v1020
  %v1022 = vpop.xlane.xlu0 %1021
  %v1023 = vsel %vm1007, %v984, -inf
  %1024 = vmax.xlane.f32.xlu0 %v1023
  %v1025 = vpop.xlane.xlu0 %1024
  %v1026 = vsel %vm1007, %v989, -inf
  %1027 = vmax.xlane.f32.xlu0 %v1026
  %v1028 = vpop.xlane.xlu0 %1027
  %v1029 = vsel %vm1007, %v994, -inf
  %1030 = vmax.xlane.f32.xlu0 %v1029
  %v1031 = vpop.xlane.xlu0 %1030
  %v1032 = vsel %vm1007, %v999, -inf
  %1033 = vmax.xlane.f32.xlu0 %v1032
  %v1034 = vpop.xlane.xlu0 %1033
  %v1035 = vsel %vm1007, %v1004, -inf
  %1036 = vmax.xlane.f32.xlu0 %v1035
  %v1037 = vpop.xlane.xlu0 %1036
  %v1038 = vsub.f32 %v959, %v1010
  %v1039 = vsub.f32 %v964, %v1013
  %v1040 = vsub.f32 %v969, %v1016
  %v1041 = vsub.f32 %v974, %v1019
  %v1042 = vsub.f32 %v979, %v1022
  %v1043 = vsub.f32 %v984, %v1025
  %v1044 = vsub.f32 %v989, %v1028
  %v1045 = vsub.f32 %v994, %v1031
  %v1046 = vsub.f32 %v999, %v1034
  %v1047 = vsub.f32 %v1004, %v1037
  %v1048 = vmul.f32 %v1038, 1.442695
  %v1049 = vpow.pop %v1048
  %v1050 = vmul.f32 %v1039, 1.442695
  %v1051 = vpow.pop %v1050
  %v1052 = vmul.f32 %v1040, 1.442695
  %v1053 = vpow.pop %v1052
  %v1054 = vmul.f32 %v1041, 1.442695
  %v1055 = vpow.pop %v1054
  %v1056 = vmul.f32 %v1042, 1.442695
  %v1057 = vpow.pop %v1056
  %v1058 = vmul.f32 %v1043, 1.442695
  %v1059 = vpow.pop %v1058
  %v1060 = vmul.f32 %v1044, 1.442695
  %v1061 = vpow.pop %v1060
  %v1062 = vmul.f32 %v1045, 1.442695
  %v1063 = vpow.pop %v1062
  %v1064 = vmul.f32 %v1046, 1.442695
  %v1065 = vpow.pop %v1064
  %v1066 = vmul.f32 %v1047, 1.442695
  %v1067 = vpow.pop %v1066
  %v1068 = vsel %vm1007, %v1049, 0.0
  %1069 = vadd.xlane.f32.xlu0 %v1068
  %v1070 = vpop.xlane.xlu0 %1069
  %v1071 = vsel %vm1007, %v1051, 0.0
  %1072 = vadd.xlane.f32.xlu0 %v1071
  %v1073 = vpop.xlane.xlu0 %1072
  %v1074 = vsel %vm1007, %v1053, 0.0
  %1075 = vadd.xlane.f32.xlu0 %v1074
  %v1076 = vpop.xlane.xlu0 %1075
  %v1077 = vsel %vm1007, %v1055, 0.0
  %1078 = vadd.xlane.f32.xlu0 %v1077
  %v1079 = vpop.xlane.xlu0 %1078
  %v1080 = vsel %vm1007, %v1057, 0.0
  %1081 = vadd.xlane.f32.xlu0 %v1080
  %v1082 = vpop.xlane.xlu0 %1081
  %v1083 = vsel %vm1007, %v1059, 0.0
  %1084 = vadd.xlane.f32.xlu0 %v1083
  %v1085 = vpop.xlane.xlu0 %1084
  %v1086 = vsel %vm1007, %v1061, 0.0
  %1087 = vadd.xlane.f32.xlu0 %v1086
  %v1088 = vpop.xlane.xlu0 %1087
  %v1089 = vsel %vm1007, %v1063, 0.0
  %1090 = vadd.xlane.f32.xlu0 %v1089
  %v1091 = vpop.xlane.xlu0 %1090
  %v1092 = vsel %vm1007, %v1065, 0.0
  %1093 = vadd.xlane.f32.xlu0 %v1092
  %v1094 = vpop.xlane.xlu0 %1093
  %v1095 = vsel %vm1007, %v1067, 0.0
  %1096 = vadd.xlane.f32.xlu0 %v1095
  %v1097 = vpop.xlane.xlu0 %1096
  %v1098 = vrcp.pop %v1070
  %v1099 = vmul.f32 %v1049, %v1098
  %v1100 = vrcp.pop %v1073
  %v1101 = vmul.f32 %v1051, %v1100
  %v1102 = vrcp.pop %v1076
  %v1103 = vmul.f32 %v1053, %v1102
  %v1104 = vrcp.pop %v1079
  %v1105 = vmul.f32 %v1055, %v1104
  %v1106 = vrcp.pop %v1082
  %v1107 = vmul.f32 %v1057, %v1106
  %v1108 = vrcp.pop %v1085
  %v1109 = vmul.f32 %v1059, %v1108
  %v1110 = vrcp.pop %v1088
  %v1111 = vmul.f32 %v1061, %v1110
  %v1112 = vrcp.pop %v1091
  %v1113 = vmul.f32 %v1063, %v1112
  %v1114 = vrcp.pop %v1094
  %v1115 = vmul.f32 %v1065, %v1114
  %v1116 = vrcp.pop %v1097
  %v1117 = vmul.f32 %v1067, %v1116
  %v1119 = vsel %vm1007, %v1099, 0
  %v1122 = vsel %vm1007, %v1101, 0
  %v1125 = vsel %vm1007, %v1103, 0
  %v1128 = vsel %vm1007, %v1105, 0
  %v1131 = vsel %vm1007, %v1107, 0
  %v1134 = vsel %vm1007, %v1109, 0
  %v1137 = vsel %vm1007, %v1111, 0
  %v1140 = vsel %vm1007, %v1113, 0
  %v1143 = vsel %vm1007, %v1115, 0
  %v1146 = vsel %vm1007, %v1117, 0
  %1148 = vmatprep.subr.mxu0 0.0
  %1149 = vmatpush1.msra.mxu0 %v756
  %1150 = vmatprep.subr.mxu0 0.0
  %1151 = vmatpush1.msra.mxu0 %v762
  %1152 = vmatprep.subr.mxu0 0.0
  %1153 = vmatpush1.msra.mxu0 %v768
  %1154 = vmatprep.subr.mxu0 0.0
  %1155 = vmatpush1.msra.mxu0 %v774
  %1156 = vmatprep.subr.mxu0 0.0
  %1157 = vmatpush1.msra.mxu0 %v780
  %1158 = vmatprep.subr.mxu0 0.0
  %1159 = vmatpush1.msra.mxu0 %v786
  %1160 = vmatprep.subr.mxu0 0.0
  %1161 = vmatpush1.msra.mxu0 %v792
  %1162 = vmatprep.subr.mxu0 0.0
  %1163 = vmatpush1.msra.mxu0 %v798
  %1164 = vmatprep.subr.mxu0 0.0
  %1165 = vmatpush1.msra.mxu0 %v804
  %1166 = vmatprep.subr.mxu0 0.0
  %1167 = vmatpush1.msra.mxu0 %v810
  %1168 = vmatprep.subr.mxu0 0.0
  %1169 = vmatpush1.msra.mxu0 0.0
  %1170 = vmatprep.subr.mxu0 0.0
  %1171 = vmatpush1.msra.mxu0 0.0
  %1172 = vmatprep.subr.mxu0 0.0
  %1173 = vmatpush1.msra.mxu0 0.0
  %1174 = vmatprep.subr.mxu0 0.0
  %1175 = vmatpush1.msra.mxu0 0.0
  %1176 = vmatprep.subr.mxu0 0.0
  %1177 = vmatpush1.msra.mxu0 0.0
  %1178 = vmatprep.subr.mxu0 0.0
  %1179 = vmatpush1.msra.mxu0 0.0
  %1180 = vmatprep.subr.mxu0 0.0
  %1181 = vmatpush1.msra.mxu0 0.0
  %1182 = vmatprep.subr.mxu0 0.0
  %1183 = vmatpush1.msra.mxu0 0.0
  %1184 = vmatprep.subr.mxu0 0.0
  %1185 = vmatpush1.msra.mxu0 0.0
  %1186 = vmatprep.subr.mxu0 0.0
  %1187 = vmatpush1.msra.mxu0 0.0
  %1188 = vmatprep.subr.mxu0 0.0
  %1189 = vmatpush1.msra.mxu0 0.0
  %1190 = vmatprep.subr.mxu0 0.0
  %1191 = vmatpush1.msra.mxu0 0.0
  %1192 = vmatprep.subr.mxu0 0.0
  %1193 = vmatpush1.msra.mxu0 0.0
  %1194 = vmatprep.subr.mxu0 0.0
  %1195 = vmatpush1.msra.mxu0 0.0
  %1196 = vmatprep.subr.mxu0 0.0
  %1197 = vmatpush1.msra.mxu0 0.0
  %1198 = vmatprep.subr.mxu0 0.0
  %1199 = vmatpush1.msra.mxu0 0.0
  %1200 = vmatprep.subr.mxu0 0.0
  %1201 = vmatpush1.msra.mxu0 0.0
  %1202 = vmatprep.subr.mxu0 0.0
  %1203 = vmatpush1.msra.mxu0 0.0
  %1204 = vmatprep.subr.mxu0 0.0
  %1205 = vmatpush1.msra.mxu0 0.0
  %1206 = vmatprep.subr.mxu0 0.0
  %1207 = vmatpush1.msra.mxu0 0.0
  %1208 = vmatprep.subr.mxu0 0.0
  %1209 = vmatpush1.msra.mxu0 0.0
  %1210 = vmatprep.subr.mxu0 0.0
  %1211 = vmatpush1.msra.mxu0 0.0
  %1212 = vmatprep.mubr.f32.mxu0 0.0
  %1213 = vmatmul.mubr.f32.gmra.mrb[0].mxu0 %v1119
  %v1214 = vpop.f32.mrb[0].mxu0
  %v1215 = vadd.f32 0.0, %v1214
  %v1216 = vpop.f32.mrb[0].mxu0
  %1217 = vmatprep.mubr.f32.mxu0 0.0
  %1218 = vmatmul.mubr.f32.gmra.mrb[0].mxu0 %v1122
  %v1219 = vpop.f32.mrb[0].mxu0
  %v1220 = vadd.f32 0.0, %v1219
  %v1221 = vpop.f32.mrb[0].mxu0
  %1222 = vmatprep.mubr.f32.mxu0 0.0
  %1223 = vmatmul.mubr.f32.gmra.mrb[0].mxu0 %v1125
  %v1224 = vpop.f32.mrb[0].mxu0
  %v1225 = vadd.f32 0.0, %v1224
  %v1226 = vpop.f32.mrb[0].mxu0
  %1227 = vmatprep.mubr.f32.mxu0 0.0
  %1228 = vmatmul.mubr.f32.gmra.mrb[0].mxu0 %v1128
  %v1229 = vpop.f32.mrb[0].mxu0
  %v1230 = vadd.f32 0.0, %v1229
  %v1231 = vpop.f32.mrb[0].mxu0
  %1232 = vmatprep.mubr.f32.mxu0 0.0
  %1233 = vmatmul.mubr.f32.gmra.mrb[0].mxu0 %v1131
  %v1234 = vpop.f32.mrb[0].mxu0
  %v1235 = vadd.f32 0.0, %v1234
  %v1236 = vpop.f32.mrb[0].mxu0
  %1237 = vmatprep.mubr.f32.mxu0 0.0
  %1238 = vmatmul.mubr.f32.gmra.mrb[0].mxu0 %v1134
  %v1239 = vpop.f32.mrb[0].mxu0
  %v1240 = vadd.f32 0.0, %v1239
  %v1241 = vpop.f32.mrb[0].mxu0
  %1242 = vmatprep.mubr.f32.mxu0 0.0
  %1243 = vmatmul.mubr.f32.gmra.mrb[0].mxu0 %v1137
  %v1244 = vpop.f32.mrb[0].mxu0
  %v1245 = vadd.f32 0.0, %v1244
  %v1246 = vpop.f32.mrb[0].mxu0
  %1247 = vmatprep.mubr.f32.mxu0 0.0
  %1248 = vmatmul.mubr.f32.gmra.mrb[0].mxu0 %v1140
  %v1249 = vpop.f32.mrb[0].mxu0
  %v1250 = vadd.f32 0.0, %v1249
  %v1251 = vpop.f32.mrb[0].mxu0
  %1252 = vmatprep.mubr.f32.mxu0 0.0
  %1253 = vmatmul.mubr.f32.gmra.mrb[0].mxu0 %v1143
  %v1254 = vpop.f32.mrb[0].mxu0
  %v1255 = vadd.f32 0.0, %v1254
  %v1256 = vpop.f32.mrb[0].mxu0
  %1257 = vmatprep.mubr.f32.mxu0 0.0
  %1258 = vmatmul.mubr.f32.gmra.mrb[0].mxu0 %v1146
  %v1259 = vpop.f32.mrb[0].mxu0
  %v1260 = vadd.f32 0.0, %v1259
  %v1261 = vpop.f32.mrb[0].mxu0
  %1262 = vdwg.mxu0
  %1263 = vrot.lane.b32.xlu0 %v812, 96
  %v1264 = vpop.permute.xlu0 %1263
  %1265 = vrot.lane.b32.xlu0 %v813, 96
  %v1266 = vpop.permute.xlu0 %1265
  %1267 = vrot.lane.b32.xlu0 %v814, 96
  %v1268 = vpop.permute.xlu0 %1267
  %1269 = vrot.lane.b32.xlu0 %v815, 96
  %v1270 = vpop.permute.xlu0 %1269
  %1271 = vrot.lane.b32.xlu0 %v816, 96
  %v1272 = vpop.permute.xlu0 %1271
  %1273 = vrot.lane.b32.xlu0 %v817, 96
  %v1274 = vpop.permute.xlu0 %1273
  %1275 = vrot.lane.b32.xlu0 %v818, 96
  %v1276 = vpop.permute.xlu0 %1275
  %1277 = vrot.lane.b32.xlu0 %v819, 96
  %v1278 = vpop.permute.xlu0 %1277
  %1279 = vrot.lane.b32.xlu0 %v820, 96
  %v1280 = vpop.permute.xlu0 %1279
  %1281 = vrot.lane.b32.xlu0 %v821, 96
  %v1282 = vpop.permute.xlu0 %1281
  %1283 = vrot.lane.b32.xlu0 %v812, 32
  %v1284 = vpop.permute.xlu0 %1283
  %1285 = vrot.lane.b32.xlu0 %v813, 32
  %v1286 = vpop.permute.xlu0 %1285
  %1287 = vrot.lane.b32.xlu0 %v814, 32
  %v1288 = vpop.permute.xlu0 %1287
  %1289 = vrot.lane.b32.xlu0 %v815, 32
  %v1290 = vpop.permute.xlu0 %1289
  %1291 = vrot.lane.b32.xlu0 %v816, 32
  %v1292 = vpop.permute.xlu0 %1291
  %1293 = vrot.lane.b32.xlu0 %v817, 32
  %v1294 = vpop.permute.xlu0 %1293
  %1295 = vrot.lane.b32.xlu0 %v818, 32
  %v1296 = vpop.permute.xlu0 %1295
  %1297 = vrot.lane.b32.xlu0 %v819, 32
  %v1298 = vpop.permute.xlu0 %1297
  %1299 = vrot.lane.b32.xlu0 %v820, 32
  %v1300 = vpop.permute.xlu0 %1299
  %1301 = vrot.lane.b32.xlu0 %v821, 32
  %v1302 = vpop.permute.xlu0 %1301
  %v1303 = vsel %vm215, %v1264, 0
  %v1305 = vsel %vm215, %v1266, 0
  %v1307 = vsel %vm215, %v1268, 0
  %v1309 = vsel %vm215, %v1270, 0
  %v1311 = vsel %vm215, %v1272, 0
  %v1313 = vsel %vm215, %v1274, 0
  %v1315 = vsel %vm215, %v1276, 0
  %v1317 = vsel %vm215, %v1278, 0
  %v1319 = vsel %vm215, %v1280, 0
  %v1321 = vsel %vm215, %v1282, 0
  %v1323 = vsel %vm215, %v1284, 0
  %v1325 = vsel %vm215, %v1286, 0
  %v1327 = vsel %vm215, %v1288, 0
  %v1329 = vsel %vm215, %v1290, 0
  %v1331 = vsel %vm215, %v1292, 0
  %v1333 = vsel %vm215, %v1294, 0
  %v1335 = vsel %vm215, %v1296, 0
  %v1337 = vsel %vm215, %v1298, 0
  %v1339 = vsel %vm215, %v1300, 0
  %v1341 = vsel %vm215, %v1302, 0
  %1343 = vmatprep.subr.mxu0 0.0
  %1344 = vmatpush1.xpose.msra.mxu0 %v1323
  %1345 = vmatprep.subr.mxu0 0.0
  %1346 = vmatpush1.xpose.msra.mxu0 %v1325
  %1347 = vmatprep.subr.mxu0 0.0
  %1348 = vmatpush1.xpose.msra.mxu0 %v1327
  %1349 = vmatprep.subr.mxu0 0.0
  %1350 = vmatpush1.xpose.msra.mxu0 %v1329
  %1351 = vmatprep.subr.mxu0 0.0
  %1352 = vmatpush1.xpose.msra.mxu0 %v1331
  %1353 = vmatprep.subr.mxu0 0.0
  %1354 = vmatpush1.xpose.msra.mxu0 %v1333
  %1355 = vmatprep.subr.mxu0 0.0
  %1356 = vmatpush1.xpose.msra.mxu0 %v1335
  %1357 = vmatprep.subr.mxu0 0.0
  %1358 = vmatpush1.xpose.msra.mxu0 %v1337
  %1359 = vmatprep.subr.mxu0 0.0
  %1360 = vmatpush1.xpose.msra.mxu0 %v1339
  %1361 = vmatprep.subr.mxu0 0.0
  %1362 = vmatpush1.xpose.msra.mxu0 %v1341
  %1363 = vmatprep.subr.mxu0 0.0
  %1364 = vmatpush1.xpose.msra.mxu0 0.0
  %1365 = vmatprep.subr.mxu0 0.0
  %1366 = vmatpush1.xpose.msra.mxu0 0.0
  %1367 = vmatprep.subr.mxu0 0.0
  %1368 = vmatpush1.xpose.msra.mxu0 0.0
  %1369 = vmatprep.subr.mxu0 0.0
  %1370 = vmatpush1.xpose.msra.mxu0 0.0
  %1371 = vmatprep.subr.mxu0 0.0
  %1372 = vmatpush1.xpose.msra.mxu0 0.0
  %1373 = vmatprep.subr.mxu0 0.0
  %1374 = vmatpush1.xpose.msra.mxu0 0.0
  %1375 = vmatprep.subr.mxu0 0.0
  %1376 = vmatpush1.xpose.msra.mxu0 0.0
  %1377 = vmatprep.subr.mxu0 0.0
  %1378 = vmatpush1.xpose.msra.mxu0 0.0
  %1379 = vmatprep.subr.mxu0 0.0
  %1380 = vmatpush1.xpose.msra.mxu0 0.0
  %1381 = vmatprep.subr.mxu0 0.0
  %1382 = vmatpush1.xpose.msra.mxu0 0.0
  %1383 = vmatprep.subr.mxu0 0.0
  %1384 = vmatpush1.xpose.msra.mxu0 0.0
  %1385 = vmatprep.subr.mxu0 0.0
  %1386 = vmatpush1.xpose.msra.mxu0 0.0
  %1387 = vmatprep.subr.mxu0 0.0
  %1388 = vmatpush1.xpose.msra.mxu0 0.0
  %1389 = vmatprep.subr.mxu0 0.0
  %1390 = vmatpush1.xpose.msra.mxu0 0.0
  %1391 = vmatprep.subr.mxu0 0.0
  %1392 = vmatpush1.xpose.msra.mxu0 0.0
  %1393 = vmatprep.subr.mxu0 0.0
  %1394 = vmatpush1.xpose.msra.mxu0 0.0
  %1395 = vmatprep.subr.mxu0 0.0
  %1396 = vmatpush1.xpose.msra.mxu0 0.0
  %1397 = vmatprep.subr.mxu0 0.0
  %1398 = vmatpush1.xpose.msra.mxu0 0.0
  %1399 = vmatprep.subr.mxu0 0.0
  %1400 = vmatpush1.xpose.msra.mxu0 0.0
  %1401 = vmatprep.subr.mxu0 0.0
  %1402 = vmatpush1.xpose.msra.mxu0 0.0
  %1403 = vmatprep.subr.mxu0 0.0
  %1404 = vmatpush1.xpose.msra.mxu0 0.0
  %1405 = vmatprep.subr.mxu0 0.0
  %1406 = vmatpush1.xpose.msra.mxu0 0.0
  %1407 = vmatprep.mubr.f32.mxu0 0.0
  %1408 = vmatmul.mubr.f32.gmra.mrb[0].mxu0 %v1303
  %v1409 = vpop.f32.mrb[0].mxu0
  %v1410 = vadd.f32 %v604, %v1409
  %v1411 = vpop.f32.mrb[0].mxu0
  %1412 = vmatprep.mubr.f32.mxu0 0.0
  %1413 = vmatmul.mubr.f32.gmra.mrb[0].mxu0 %v1305
  %v1414 = vpop.f32.mrb[0].mxu0
  %v1415 = vadd.f32 %v605, %v1414
  %v1416 = vpop.f32.mrb[0].mxu0
  %1417 = vmatprep.mubr.f32.mxu0 0.0
  %1418 = vmatmul.mubr.f32.gmra.mrb[0].mxu0 %v1307
  %v1419 = vpop.f32.mrb[0].mxu0
  %v1420 = vadd.f32 %v606, %v1419
  %v1421 = vpop.f32.mrb[0].mxu0
  %1422 = vmatprep.mubr.f32.mxu0 0.0
  %1423 = vmatmul.mubr.f32.gmra.mrb[0].mxu0 %v1309
  %v1424 = vpop.f32.mrb[0].mxu0
  %v1425 = vadd.f32 %v607, %v1424
  %v1426 = vpop.f32.mrb[0].mxu0
  %1427 = vmatprep.mubr.f32.mxu0 0.0
  %1428 = vmatmul.mubr.f32.gmra.mrb[0].mxu0 %v1311
  %v1429 = vpop.f32.mrb[0].mxu0
  %v1430 = vadd.f32 %v608, %v1429
  %v1431 = vpop.f32.mrb[0].mxu0
  %1432 = vmatprep.mubr.f32.mxu0 0.0
  %1433 = vmatmul.mubr.f32.gmra.mrb[0].mxu0 %v1313
  %v1434 = vpop.f32.mrb[0].mxu0
  %v1435 = vadd.f32 %v609, %v1434
  %v1436 = vpop.f32.mrb[0].mxu0
  %1437 = vmatprep.mubr.f32.mxu0 0.0
  %1438 = vmatmul.mubr.f32.gmra.mrb[0].mxu0 %v1315
  %v1439 = vpop.f32.mrb[0].mxu0
  %v1440 = vadd.f32 %v610, %v1439
  %v1441 = vpop.f32.mrb[0].mxu0
  %1442 = vmatprep.mubr.f32.mxu0 0.0
  %1443 = vmatmul.mubr.f32.gmra.mrb[0].mxu0 %v1317
  %v1444 = vpop.f32.mrb[0].mxu0
  %v1445 = vadd.f32 %v611, %v1444
  %v1446 = vpop.f32.mrb[0].mxu0
  %1447 = vmatprep.mubr.f32.mxu0 0.0
  %1448 = vmatmul.mubr.f32.gmra.mrb[0].mxu0 %v1319
  %v1449 = vpop.f32.mrb[0].mxu0
  %v1450 = vadd.f32 %v612, %v1449
  %v1451 = vpop.f32.mrb[0].mxu0
  %1452 = vmatprep.mubr.f32.mxu0 0.0
  %1453 = vmatmul.mubr.f32.gmra.mrb[0].mxu0 %v1321
  %v1454 = vpop.f32.mrb[0].mxu0
  %v1455 = vadd.f32 %v613, %v1454
  %v1456 = vpop.f32.mrb[0].mxu0
  %1457 = vdwg.mxu0
  %v1458 = vsel %vm1007, %v1410, -inf
  %1459 = vmax.xlane.f32.xlu0 %v1458
  %v1460 = vpop.xlane.xlu0 %1459
  %v1461 = vsel %vm1007, %v1415, -inf
  %1462 = vmax.xlane.f32.xlu0 %v1461
  %v1463 = vpop.xlane.xlu0 %1462
  %v1464 = vsel %vm1007, %v1420, -inf
  %1465 = vmax.xlane.f32.xlu0 %v1464
  %v1466 = vpop.xlane.xlu0 %1465
  %v1467 = vsel %vm1007, %v1425, -inf
  %1468 = vmax.xlane.f32.xlu0 %v1467
  %v1469 = vpop.xlane.xlu0 %1468
  %v1470 = vsel %vm1007, %v1430, -inf
  %1471 = vmax.xlane.f32.xlu0 %v1470
  %v1472 = vpop.xlane.xlu0 %1471
  %v1473 = vsel %vm1007, %v1435, -inf
  %1474 = vmax.xlane.f32.xlu0 %v1473
  %v1475 = vpop.xlane.xlu0 %1474
  %v1476 = vsel %vm1007, %v1440, -inf
  %1477 = vmax.xlane.f32.xlu0 %v1476
  %v1478 = vpop.xlane.xlu0 %1477
  %v1479 = vsel %vm1007, %v1445, -inf
  %1480 = vmax.xlane.f32.xlu0 %v1479
  %v1481 = vpop.xlane.xlu0 %1480
  %v1482 = vsel %vm1007, %v1450, -inf
  %1483 = vmax.xlane.f32.xlu0 %v1482
  %v1484 = vpop.xlane.xlu0 %1483
  %v1485 = vsel %vm1007, %v1455, -inf
  %1486 = vmax.xlane.f32.xlu0 %v1485
  %v1487 = vpop.xlane.xlu0 %1486
  %v1488 = vsub.f32 %v1410, %v1460
  %v1489 = vsub.f32 %v1415, %v1463
  %v1490 = vsub.f32 %v1420, %v1466
  %v1491 = vsub.f32 %v1425, %v1469
  %v1492 = vsub.f32 %v1430, %v1472
  %v1493 = vsub.f32 %v1435, %v1475
  %v1494 = vsub.f32 %v1440, %v1478
  %v1495 = vsub.f32 %v1445, %v1481
  %v1496 = vsub.f32 %v1450, %v1484
  %v1497 = vsub.f32 %v1455, %v1487
  %v1498 = vmul.f32 %v1488, 1.442695
  %v1499 = vpow.pop %v1498
  %v1500 = vmul.f32 %v1489, 1.442695
  %v1501 = vpow.pop %v1500
  %v1502 = vmul.f32 %v1490, 1.442695
  %v1503 = vpow.pop %v1502
  %v1504 = vmul.f32 %v1491, 1.442695
  %v1505 = vpow.pop %v1504
  %v1506 = vmul.f32 %v1492, 1.442695
  %v1507 = vpow.pop %v1506
  %v1508 = vmul.f32 %v1493, 1.442695
  %v1509 = vpow.pop %v1508
  %v1510 = vmul.f32 %v1494, 1.442695
  %v1511 = vpow.pop %v1510
  %v1512 = vmul.f32 %v1495, 1.442695
  %v1513 = vpow.pop %v1512
  %v1514 = vmul.f32 %v1496, 1.442695
  %v1515 = vpow.pop %v1514
  %v1516 = vmul.f32 %v1497, 1.442695
  %v1517 = vpow.pop %v1516
  %v1518 = vsel %vm1007, %v1499, 0.0
  %1519 = vadd.xlane.f32.xlu0 %v1518
  %v1520 = vpop.xlane.xlu0 %1519
  %v1521 = vsel %vm1007, %v1501, 0.0
  %1522 = vadd.xlane.f32.xlu0 %v1521
  %v1523 = vpop.xlane.xlu0 %1522
  %v1524 = vsel %vm1007, %v1503, 0.0
  %1525 = vadd.xlane.f32.xlu0 %v1524
  %v1526 = vpop.xlane.xlu0 %1525
  %v1527 = vsel %vm1007, %v1505, 0.0
  %1528 = vadd.xlane.f32.xlu0 %v1527
  %v1529 = vpop.xlane.xlu0 %1528
  %v1530 = vsel %vm1007, %v1507, 0.0
  %1531 = vadd.xlane.f32.xlu0 %v1530
  %v1532 = vpop.xlane.xlu0 %1531
  %v1533 = vsel %vm1007, %v1509, 0.0
  %1534 = vadd.xlane.f32.xlu0 %v1533
  %v1535 = vpop.xlane.xlu0 %1534
  %v1536 = vsel %vm1007, %v1511, 0.0
  %1537 = vadd.xlane.f32.xlu0 %v1536
  %v1538 = vpop.xlane.xlu0 %1537
  %v1539 = vsel %vm1007, %v1513, 0.0
  %1540 = vadd.xlane.f32.xlu0 %v1539
  %v1541 = vpop.xlane.xlu0 %1540
  %v1542 = vsel %vm1007, %v1515, 0.0
  %1543 = vadd.xlane.f32.xlu0 %v1542
  %v1544 = vpop.xlane.xlu0 %1543
  %v1545 = vsel %vm1007, %v1517, 0.0
  %1546 = vadd.xlane.f32.xlu0 %v1545
  %v1547 = vpop.xlane.xlu0 %1546
  %v1548 = vrcp.pop %v1520
  %v1549 = vmul.f32 %v1499, %v1548
  %v1550 = vrcp.pop %v1523
  %v1551 = vmul.f32 %v1501, %v1550
  %v1552 = vrcp.pop %v1526
  %v1553 = vmul.f32 %v1503, %v1552
  %v1554 = vrcp.pop %v1529
  %v1555 = vmul.f32 %v1505, %v1554
  %v1556 = vrcp.pop %v1532
  %v1557 = vmul.f32 %v1507, %v1556
  %v1558 = vrcp.pop %v1535
  %v1559 = vmul.f32 %v1509, %v1558
  %v1560 = vrcp.pop %v1538
  %v1561 = vmul.f32 %v1511, %v1560
  %v1562 = vrcp.pop %v1541
  %v1563 = vmul.f32 %v1513, %v1562
  %v1564 = vrcp.pop %v1544
  %v1565 = vmul.f32 %v1515, %v1564
  %v1566 = vrcp.pop %v1547
  %v1567 = vmul.f32 %v1517, %v1566
  %1578 = vrot.lane.b32.xlu0 %v756, 96
  %v1579 = vpop.permute.xlu0 %1578
  %1580 = vrot.lane.b32.xlu0 %v762, 96
  %v1581 = vpop.permute.xlu0 %1580
  %1582 = vrot.lane.b32.xlu0 %v768, 96
  %v1583 = vpop.permute.xlu0 %1582
  %1584 = vrot.lane.b32.xlu0 %v774, 96
  %v1585 = vpop.permute.xlu0 %1584
  %1586 = vrot.lane.b32.xlu0 %v780, 96
  %v1587 = vpop.permute.xlu0 %1586
  %1588 = vrot.lane.b32.xlu0 %v786, 96
  %v1589 = vpop.permute.xlu0 %1588
  %1590 = vrot.lane.b32.xlu0 %v792, 96
  %v1591 = vpop.permute.xlu0 %1590
  %1592 = vrot.lane.b32.xlu0 %v798, 96
  %v1593 = vpop.permute.xlu0 %1592
  %1594 = vrot.lane.b32.xlu0 %v804, 96
  %v1595 = vpop.permute.xlu0 %1594
  %1596 = vrot.lane.b32.xlu0 %v810, 96
  %v1597 = vpop.permute.xlu0 %1596
  %v1609 = vsel %vm1007, %v1549, 0
  %v1612 = vsel %vm1007, %v1551, 0
  %v1615 = vsel %vm1007, %v1553, 0
  %v1618 = vsel %vm1007, %v1555, 0
  %v1621 = vsel %vm1007, %v1557, 0
  %v1624 = vsel %vm1007, %v1559, 0
  %v1627 = vsel %vm1007, %v1561, 0
  %v1630 = vsel %vm1007, %v1563, 0
  %v1633 = vsel %vm1007, %v1565, 0
  %v1636 = vsel %vm1007, %v1567, 0
  %1638 = vmatprep.subr.mxu0 0.0
  %1639 = vmatpush1.msra.mxu0 %v1579
  %1640 = vmatprep.subr.mxu0 0.0
  %1641 = vmatpush1.msra.mxu0 %v1581
  %1642 = vmatprep.subr.mxu0 0.0
  %1643 = vmatpush1.msra.mxu0 %v1583
  %1644 = vmatprep.subr.mxu0 0.0
  %1645 = vmatpush1.msra.mxu0 %v1585
  %1646 = vmatprep.subr.mxu0 0.0
  %1647 = vmatpush1.msra.mxu0 %v1587
  %1648 = vmatprep.subr.mxu0 0.0
  %1649 = vmatpush1.msra.mxu0 %v1589
  %1650 = vmatprep.subr.mxu0 0.0
  %1651 = vmatpush1.msra.mxu0 %v1591
  %1652 = vmatprep.subr.mxu0 0.0
  %1653 = vmatpush1.msra.mxu0 %v1593
  %1654 = vmatprep.subr.mxu0 0.0
  %1655 = vmatpush1.msra.mxu0 %v1595
  %1656 = vmatprep.subr.mxu0 0.0
  %1657 = vmatpush1.msra.mxu0 %v1597
  %1658 = vmatprep.subr.mxu0 0.0
  %1659 = vmatpush1.msra.mxu0 0.0
  %1660 = vmatprep.subr.mxu0 0.0
  %1661 = vmatpush1.msra.mxu0 0.0
  %1662 = vmatprep.subr.mxu0 0.0
  %1663 = vmatpush1.msra.mxu0 0.0
  %1664 = vmatprep.subr.mxu0 0.0
  %1665 = vmatpush1.msra.mxu0 0.0
  %1666 = vmatprep.subr.mxu0 0.0
  %1667 = vmatpush1.msra.mxu0 0.0
  %1668 = vmatprep.subr.mxu0 0.0
  %1669 = vmatpush1.msra.mxu0 0.0
  %1670 = vmatprep.subr.mxu0 0.0
  %1671 = vmatpush1.msra.mxu0 0.0
  %1672 = vmatprep.subr.mxu0 0.0
  %1673 = vmatpush1.msra.mxu0 0.0
  %1674 = vmatprep.subr.mxu0 0.0
  %1675 = vmatpush1.msra.mxu0 0.0
  %1676 = vmatprep.subr.mxu0 0.0
  %1677 = vmatpush1.msra.mxu0 0.0
  %1678 = vmatprep.subr.mxu0 0.0
  %1679 = vmatpush1.msra.mxu0 0.0
  %1680 = vmatprep.subr.mxu0 0.0
  %1681 = vmatpush1.msra.mxu0 0.0
  %1682 = vmatprep.subr.mxu0 0.0
  %1683 = vmatpush1.msra.mxu0 0.0
  %1684 = vmatprep.subr.mxu0 0.0
  %1685 = vmatpush1.msra.mxu0 0.0
  %1686 = vmatprep.subr.mxu0 0.0
  %1687 = vmatpush1.msra.mxu0 0.0
  %1688 = vmatprep.subr.mxu0 0.0
  %1689 = vmatpush1.msra.mxu0 0.0
  %1690 = vmatprep.subr.mxu0 0.0
  %1691 = vmatpush1.msra.mxu0 0.0
  %1692 = vmatprep.subr.mxu0 0.0
  %1693 = vmatpush1.msra.mxu0 0.0
  %1694 = vmatprep.subr.mxu0 0.0
  %1695 = vmatpush1.msra.mxu0 0.0
  %1696 = vmatprep.subr.mxu0 0.0
  %1697 = vmatpush1.msra.mxu0 0.0
  %1698 = vmatprep.subr.mxu0 0.0
  %1699 = vmatpush1.msra.mxu0 0.0
  %1700 = vmatprep.subr.mxu0 0.0
  %1701 = vmatpush1.msra.mxu0 0.0
  %1702 = vmatprep.mubr.f32.mxu0 0.0
  %1703 = vmatmul.mubr.f32.gmra.mrb[0].mxu0 %v1609
  %v1704 = vpop.f32.mrb[0].mxu0
  %v1705 = vadd.f32 0.0, %v1704
  %v1706 = vpop.f32.mrb[0].mxu0
  %1707 = vmatprep.mubr.f32.mxu0 0.0
  %1708 = vmatmul.mubr.f32.gmra.mrb[0].mxu0 %v1612
  %v1709 = vpop.f32.mrb[0].mxu0
  %v1710 = vadd.f32 0.0, %v1709
  %v1711 = vpop.f32.mrb[0].mxu0
  %1712 = vmatprep.mubr.f32.mxu0 0.0
  %1713 = vmatmul.mubr.f32.gmra.mrb[0].mxu0 %v1615
  %v1714 = vpop.f32.mrb[0].mxu0
  %v1715 = vadd.f32 0.0, %v1714
  %v1716 = vpop.f32.mrb[0].mxu0
  %1717 = vmatprep.mubr.f32.mxu0 0.0
  %1718 = vmatmul.mubr.f32.gmra.mrb[0].mxu0 %v1618
  %v1719 = vpop.f32.mrb[0].mxu0
  %v1720 = vadd.f32 0.0, %v1719
  %v1721 = vpop.f32.mrb[0].mxu0
  %1722 = vmatprep.mubr.f32.mxu0 0.0
  %1723 = vmatmul.mubr.f32.gmra.mrb[0].mxu0 %v1621
  %v1724 = vpop.f32.mrb[0].mxu0
  %v1725 = vadd.f32 0.0, %v1724
  %v1726 = vpop.f32.mrb[0].mxu0
  %1727 = vmatprep.mubr.f32.mxu0 0.0
  %1728 = vmatmul.mubr.f32.gmra.mrb[0].mxu0 %v1624
  %v1729 = vpop.f32.mrb[0].mxu0
  %v1730 = vadd.f32 0.0, %v1729
  %v1731 = vpop.f32.mrb[0].mxu0
  %1732 = vmatprep.mubr.f32.mxu0 0.0
  %1733 = vmatmul.mubr.f32.gmra.mrb[0].mxu0 %v1627
  %v1734 = vpop.f32.mrb[0].mxu0
  %v1735 = vadd.f32 0.0, %v1734
  %v1736 = vpop.f32.mrb[0].mxu0
  %1737 = vmatprep.mubr.f32.mxu0 0.0
  %1738 = vmatmul.mubr.f32.gmra.mrb[0].mxu0 %v1630
  %v1739 = vpop.f32.mrb[0].mxu0
  %v1740 = vadd.f32 0.0, %v1739
  %v1741 = vpop.f32.mrb[0].mxu0
  %1742 = vmatprep.mubr.f32.mxu0 0.0
  %1743 = vmatmul.mubr.f32.gmra.mrb[0].mxu0 %v1633
  %v1744 = vpop.f32.mrb[0].mxu0
  %v1745 = vadd.f32 0.0, %v1744
  %v1746 = vpop.f32.mrb[0].mxu0
  %1747 = vmatprep.mubr.f32.mxu0 0.0
  %1748 = vmatmul.mubr.f32.gmra.mrb[0].mxu0 %v1636
  %v1749 = vpop.f32.mrb[0].mxu0
  %v1750 = vadd.f32 0.0, %v1749
  %v1751 = vpop.f32.mrb[0].mxu0
  %1752 = vdwg.mxu0
  %v1754 = vsel %vm215, %v1705, 0
  %v1757 = vsel %vm215, %v1710, 0
  %v1760 = vsel %vm215, %v1715, 0
  %v1763 = vsel %vm215, %v1720, 0
  %v1766 = vsel %vm215, %v1725, 0
  %v1769 = vsel %vm215, %v1730, 0
  %v1772 = vsel %vm215, %v1735, 0
  %v1775 = vsel %vm215, %v1740, 0
  %v1778 = vsel %vm215, %v1745, 0
  %v1781 = vsel %vm215, %v1750, 0
  %1783 = vmatprep.subr.mxu0 0.0
  %1784 = vmatpush1.msra.mxu0 %v626
  %1785 = vmatprep.subr.mxu0 0.0
  %1786 = vmatpush1.msra.mxu0 %v627
  %1787 = vmatprep.subr.mxu0 0.0
  %1788 = vmatpush1.msra.mxu0 %v628
  %1789 = vmatprep.subr.mxu0 0.0
  %1790 = vmatpush1.msra.mxu0 %v629
  %1791 = vmatprep.subr.mxu0 0.0
  %1792 = vmatpush1.msra.mxu0 0.0
  %1793 = vmatprep.subr.mxu0 0.0
  %1794 = vmatpush1.msra.mxu0 0.0
  %1795 = vmatprep.subr.mxu0 0.0
  %1796 = vmatpush1.msra.mxu0 0.0
  %1797 = vmatprep.subr.mxu0 0.0
  %1798 = vmatpush1.msra.mxu0 0.0
  %1799 = vmatprep.subr.mxu0 0.0
  %1800 = vmatpush1.msra.mxu0 0.0
  %1801 = vmatprep.subr.mxu0 0.0
  %1802 = vmatpush1.msra.mxu0 0.0
  %1803 = vmatprep.subr.mxu0 0.0
  %1804 = vmatpush1.msra.mxu0 0.0
  %1805 = vmatprep.subr.mxu0 0.0
  %1806 = vmatpush1.msra.mxu0 0.0
  %1807 = vmatprep.subr.mxu0 0.0
  %1808 = vmatpush1.msra.mxu0 0.0
  %1809 = vmatprep.subr.mxu0 0.0
  %1810 = vmatpush1.msra.mxu0 0.0
  %1811 = vmatprep.subr.mxu0 0.0
  %1812 = vmatpush1.msra.mxu0 0.0
  %1813 = vmatprep.subr.mxu0 0.0
  %1814 = vmatpush1.msra.mxu0 0.0
  %1815 = vmatprep.subr.mxu0 0.0
  %1816 = vmatpush1.msra.mxu0 0.0
  %1817 = vmatprep.subr.mxu0 0.0
  %1818 = vmatpush1.msra.mxu0 0.0
  %1819 = vmatprep.subr.mxu0 0.0
  %1820 = vmatpush1.msra.mxu0 0.0
  %1821 = vmatprep.subr.mxu0 0.0
  %1822 = vmatpush1.msra.mxu0 0.0
  %1823 = vmatprep.subr.mxu0 0.0
  %1824 = vmatpush1.msra.mxu0 0.0
  %1825 = vmatprep.subr.mxu0 0.0
  %1826 = vmatpush1.msra.mxu0 0.0
  %1827 = vmatprep.subr.mxu0 0.0
  %1828 = vmatpush1.msra.mxu0 0.0
  %1829 = vmatprep.subr.mxu0 0.0
  %1830 = vmatpush1.msra.mxu0 0.0
  %1831 = vmatprep.subr.mxu0 0.0
  %1832 = vmatpush1.msra.mxu0 0.0
  %1833 = vmatprep.subr.mxu0 0.0
  %1834 = vmatpush1.msra.mxu0 0.0
  %1835 = vmatprep.subr.mxu0 0.0
  %1836 = vmatpush1.msra.mxu0 0.0
  %1837 = vmatprep.subr.mxu0 0.0
  %1838 = vmatpush1.msra.mxu0 0.0
  %1839 = vmatprep.subr.mxu0 0.0
  %1840 = vmatpush1.msra.mxu0 0.0
  %1841 = vmatprep.subr.mxu0 0.0
  %1842 = vmatpush1.msra.mxu0 0.0
  %1843 = vmatprep.subr.mxu0 0.0
  %1844 = vmatpush1.msra.mxu0 0.0
  %1845 = vmatprep.subr.mxu0 0.0
  %1846 = vmatpush1.msra.mxu0 0.0
  %1847 = vmatprep.mubr.f32.mxu0 0.0
  %1848 = vmatmul.mubr.f32.gmra.mrb[0].mxu0 %v1754
  %v1849 = vpop.f32.mrb[0].mxu0
  %v1850 = vadd.f32 0.0, %v1849
  %v1851 = vpop.f32.mrb[0].mxu0
  %1852 = vmatprep.mubr.f32.mxu0 0.0
  %1853 = vmatmul.mubr.f32.gmra.mrb[0].mxu0 %v1757
  %v1854 = vpop.f32.mrb[0].mxu0
  %v1855 = vadd.f32 0.0, %v1854
  %v1856 = vpop.f32.mrb[0].mxu0
  %1857 = vmatprep.mubr.f32.mxu0 0.0
  %1858 = vmatmul.mubr.f32.gmra.mrb[0].mxu0 %v1760
  %v1859 = vpop.f32.mrb[0].mxu0
  %v1860 = vadd.f32 0.0, %v1859
  %v1861 = vpop.f32.mrb[0].mxu0
  %1862 = vmatprep.mubr.f32.mxu0 0.0
  %1863 = vmatmul.mubr.f32.gmra.mrb[0].mxu0 %v1763
  %v1864 = vpop.f32.mrb[0].mxu0
  %v1865 = vadd.f32 0.0, %v1864
  %v1866 = vpop.f32.mrb[0].mxu0
  %1867 = vmatprep.mubr.f32.mxu0 0.0
  %1868 = vmatmul.mubr.f32.gmra.mrb[0].mxu0 %v1766
  %v1869 = vpop.f32.mrb[0].mxu0
  %v1870 = vadd.f32 0.0, %v1869
  %v1871 = vpop.f32.mrb[0].mxu0
  %1872 = vmatprep.mubr.f32.mxu0 0.0
  %1873 = vmatmul.mubr.f32.gmra.mrb[0].mxu0 %v1769
  %v1874 = vpop.f32.mrb[0].mxu0
  %v1875 = vadd.f32 0.0, %v1874
  %v1876 = vpop.f32.mrb[0].mxu0
  %1877 = vmatprep.mubr.f32.mxu0 0.0
  %1878 = vmatmul.mubr.f32.gmra.mrb[0].mxu0 %v1772
  %v1879 = vpop.f32.mrb[0].mxu0
  %v1880 = vadd.f32 0.0, %v1879
  %v1881 = vpop.f32.mrb[0].mxu0
  %1882 = vmatprep.mubr.f32.mxu0 0.0
  %1883 = vmatmul.mubr.f32.gmra.mrb[0].mxu0 %v1775
  %v1884 = vpop.f32.mrb[0].mxu0
  %v1885 = vadd.f32 0.0, %v1884
  %v1886 = vpop.f32.mrb[0].mxu0
  %1887 = vmatprep.mubr.f32.mxu0 0.0
  %1888 = vmatmul.mubr.f32.gmra.mrb[0].mxu0 %v1778
  %v1889 = vpop.f32.mrb[0].mxu0
  %v1890 = vadd.f32 0.0, %v1889
  %v1891 = vpop.f32.mrb[0].mxu0
  %1892 = vmatprep.mubr.f32.mxu0 0.0
  %1893 = vmatmul.mubr.f32.gmra.mrb[0].mxu0 %v1781
  %v1894 = vpop.f32.mrb[0].mxu0
  %v1895 = vadd.f32 0.0, %v1894
  %v1896 = vpop.f32.mrb[0].mxu0
  %1897 = vdwg.mxu0
  %v1899 = vsel %vm215, %v1215, 0
  %v1902 = vsel %vm215, %v1220, 0
  %v1905 = vsel %vm215, %v1225, 0
  %v1908 = vsel %vm215, %v1230, 0
  %v1911 = vsel %vm215, %v1235, 0
  %v1914 = vsel %vm215, %v1240, 0
  %v1917 = vsel %vm215, %v1245, 0
  %v1920 = vsel %vm215, %v1250, 0
  %v1923 = vsel %vm215, %v1255, 0
  %v1926 = vsel %vm215, %v1260, 0
  %1928 = vmatprep.subr.mxu0 0.0
  %1929 = vmatpush1.msra.mxu0 %v622
  %1930 = vmatprep.subr.mxu0 0.0
  %1931 = vmatpush1.msra.mxu0 %v623
  %1932 = vmatprep.subr.mxu0 0.0
  %1933 = vmatpush1.msra.mxu0 %v624
  %1934 = vmatprep.subr.mxu0 0.0
  %1935 = vmatpush1.msra.mxu0 %v625
  %1936 = vmatprep.subr.mxu0 0.0
  %1937 = vmatpush1.msra.mxu0 0.0
  %1938 = vmatprep.subr.mxu0 0.0
  %1939 = vmatpush1.msra.mxu0 0.0
  %1940 = vmatprep.subr.mxu0 0.0
  %1941 = vmatpush1.msra.mxu0 0.0
  %1942 = vmatprep.subr.mxu0 0.0
  %1943 = vmatpush1.msra.mxu0 0.0
  %1944 = vmatprep.subr.mxu0 0.0
  %1945 = vmatpush1.msra.mxu0 0.0
  %1946 = vmatprep.subr.mxu0 0.0
  %1947 = vmatpush1.msra.mxu0 0.0
  %1948 = vmatprep.subr.mxu0 0.0
  %1949 = vmatpush1.msra.mxu0 0.0
  %1950 = vmatprep.subr.mxu0 0.0
  %1951 = vmatpush1.msra.mxu0 0.0
  %1952 = vmatprep.subr.mxu0 0.0
  %1953 = vmatpush1.msra.mxu0 0.0
  %1954 = vmatprep.subr.mxu0 0.0
  %1955 = vmatpush1.msra.mxu0 0.0
  %1956 = vmatprep.subr.mxu0 0.0
  %1957 = vmatpush1.msra.mxu0 0.0
  %1958 = vmatprep.subr.mxu0 0.0
  %1959 = vmatpush1.msra.mxu0 0.0
  %1960 = vmatprep.subr.mxu0 0.0
  %1961 = vmatpush1.msra.mxu0 0.0
  %1962 = vmatprep.subr.mxu0 0.0
  %1963 = vmatpush1.msra.mxu0 0.0
  %1964 = vmatprep.subr.mxu0 0.0
  %1965 = vmatpush1.msra.mxu0 0.0
  %1966 = vmatprep.subr.mxu0 0.0
  %1967 = vmatpush1.msra.mxu0 0.0
  %1968 = vmatprep.subr.mxu0 0.0
  %1969 = vmatpush1.msra.mxu0 0.0
  %1970 = vmatprep.subr.mxu0 0.0
  %1971 = vmatpush1.msra.mxu0 0.0
  %1972 = vmatprep.subr.mxu0 0.0
  %1973 = vmatpush1.msra.mxu0 0.0
  %1974 = vmatprep.subr.mxu0 0.0
  %1975 = vmatpush1.msra.mxu0 0.0
  %1976 = vmatprep.subr.mxu0 0.0
  %1977 = vmatpush1.msra.mxu0 0.0
  %1978 = vmatprep.subr.mxu0 0.0
  %1979 = vmatpush1.msra.mxu0 0.0
  %1980 = vmatprep.subr.mxu0 0.0
  %1981 = vmatpush1.msra.mxu0 0.0
  %1982 = vmatprep.subr.mxu0 0.0
  %1983 = vmatpush1.msra.mxu0 0.0
  %1984 = vmatprep.subr.mxu0 0.0
  %1985 = vmatpush1.msra.mxu0 0.0
  %1986 = vmatprep.subr.mxu0 0.0
  %1987 = vmatpush1.msra.mxu0 0.0
  %1988 = vmatprep.subr.mxu0 0.0
  %1989 = vmatpush1.msra.mxu0 0.0
  %1990 = vmatprep.subr.mxu0 0.0
  %1991 = vmatpush1.msra.mxu0 0.0
  %1992 = vmatprep.mubr.f32.mxu0 0.0
  %1993 = vmatmul.mubr.f32.gmra.mrb[0].mxu0 %v1899
  %v1994 = vpop.f32.mrb[0].mxu0
  %v1995 = vadd.f32 %v1850, %v1994
  %v1996 = vpop.f32.mrb[0].mxu0
  %1997 = vmatprep.mubr.f32.mxu0 0.0
  %1998 = vmatmul.mubr.f32.gmra.mrb[0].mxu0 %v1902
  %v1999 = vpop.f32.mrb[0].mxu0
  %v2000 = vadd.f32 %v1855, %v1999
  %v2001 = vpop.f32.mrb[0].mxu0
  %2002 = vmatprep.mubr.f32.mxu0 0.0
  %2003 = vmatmul.mubr.f32.gmra.mrb[0].mxu0 %v1905
  %v2004 = vpop.f32.mrb[0].mxu0
  %v2005 = vadd.f32 %v1860, %v2004
  %v2006 = vpop.f32.mrb[0].mxu0
  %2007 = vmatprep.mubr.f32.mxu0 0.0
  %2008 = vmatmul.mubr.f32.gmra.mrb[0].mxu0 %v1908
  %v2009 = vpop.f32.mrb[0].mxu0
  %v2010 = vadd.f32 %v1865, %v2009
  %v2011 = vpop.f32.mrb[0].mxu0
  %2012 = vmatprep.mubr.f32.mxu0 0.0
  %2013 = vmatmul.mubr.f32.gmra.mrb[0].mxu0 %v1911
  %v2014 = vpop.f32.mrb[0].mxu0
  %v2015 = vadd.f32 %v1870, %v2014
  %v2016 = vpop.f32.mrb[0].mxu0
  %2017 = vmatprep.mubr.f32.mxu0 0.0
  %2018 = vmatmul.mubr.f32.gmra.mrb[0].mxu0 %v1914
  %v2019 = vpop.f32.mrb[0].mxu0
  %v2020 = vadd.f32 %v1875, %v2019
  %v2021 = vpop.f32.mrb[0].mxu0
  %2022 = vmatprep.mubr.f32.mxu0 0.0
  %2023 = vmatmul.mubr.f32.gmra.mrb[0].mxu0 %v1917
  %v2024 = vpop.f32.mrb[0].mxu0
  %v2025 = vadd.f32 %v1880, %v2024
  %v2026 = vpop.f32.mrb[0].mxu0
  %2027 = vmatprep.mubr.f32.mxu0 0.0
  %2028 = vmatmul.mubr.f32.gmra.mrb[0].mxu0 %v1920
  %v2029 = vpop.f32.mrb[0].mxu0
  %v2030 = vadd.f32 %v1885, %v2029
  %v2031 = vpop.f32.mrb[0].mxu0
  %2032 = vmatprep.mubr.f32.mxu0 0.0
  %2033 = vmatmul.mubr.f32.gmra.mrb[0].mxu0 %v1923
  %v2034 = vpop.f32.mrb[0].mxu0
  %v2035 = vadd.f32 %v1890, %v2034
  %v2036 = vpop.f32.mrb[0].mxu0
  %2037 = vmatprep.mubr.f32.mxu0 0.0
  %2038 = vmatmul.mubr.f32.gmra.mrb[0].mxu0 %v1926
  %v2039 = vpop.f32.mrb[0].mxu0
  %v2040 = vadd.f32 %v1895, %v2039
  %v2041 = vpop.f32.mrb[0].mxu0
  %2042 = vdwg.mxu0
  %v2043 = vlaneseq
  %v2044 = vshrl.u32 %v2043, 7
  %v2045 = vsub.s32 0, %v2044
  %v2046 = vrot.slane %v651, %v2045
  %v2047 = vadd.f32 %v1995, %v2046
  %v2048 = vadd.f32 %v2000, %v2046
  %v2049 = vadd.f32 %v2005, %v2046
  %v2050 = vadd.f32 %v2010, %v2046
  %v2051 = vadd.f32 %v2015, %v2046
  %v2052 = vadd.f32 %v2020, %v2046
  %v2053 = vadd.f32 %v2025, %v2046
  %v2054 = vadd.f32 %v2030, %v2046
  %v2055 = vadd.f32 %v2035, %v2046
  %v2056 = vadd.f32 %v2040, %v2046
  %v2057 = vadd.f32 %v2047, %v313
  %v2058 = vadd.f32 %v2048, %v318
  %v2059 = vadd.f32 %v2049, %v323
  %v2060 = vadd.f32 %v2050, %v328
  %v2061 = vadd.f32 %v2051, %v333
  %v2062 = vadd.f32 %v2052, %v338
  %v2063 = vadd.f32 %v2053, %v343
  %v2064 = vadd.f32 %v2054, %v348
  %v2065 = vadd.f32 %v2055, %v353
  %v2066 = vadd.f32 %v2056, %v358
  %v2067 = vsel %vm215, %v2057, 0.0
  %2068 = vadd.xlane.f32.xlu0 %v2067
  %v2069 = vpop.xlane.xlu0 %2068
  %v2070 = vsel %vm215, %v2058, 0.0
  %2071 = vadd.xlane.f32.xlu0 %v2070
  %v2072 = vpop.xlane.xlu0 %2071
  %v2073 = vsel %vm215, %v2059, 0.0
  %2074 = vadd.xlane.f32.xlu0 %v2073
  %v2075 = vpop.xlane.xlu0 %2074
  %v2076 = vsel %vm215, %v2060, 0.0
  %2077 = vadd.xlane.f32.xlu0 %v2076
  %v2078 = vpop.xlane.xlu0 %2077
  %v2079 = vsel %vm215, %v2061, 0.0
  %2080 = vadd.xlane.f32.xlu0 %v2079
  %v2081 = vpop.xlane.xlu0 %2080
  %v2082 = vsel %vm215, %v2062, 0.0
  %2083 = vadd.xlane.f32.xlu0 %v2082
  %v2084 = vpop.xlane.xlu0 %2083
  %v2085 = vsel %vm215, %v2063, 0.0
  %2086 = vadd.xlane.f32.xlu0 %v2085
  %v2087 = vpop.xlane.xlu0 %2086
  %v2088 = vsel %vm215, %v2064, 0.0
  %2089 = vadd.xlane.f32.xlu0 %v2088
  %v2090 = vpop.xlane.xlu0 %2089
  %v2091 = vsel %vm215, %v2065, 0.0
  %2092 = vadd.xlane.f32.xlu0 %v2091
  %v2093 = vpop.xlane.xlu0 %2092
  %v2094 = vsel %vm215, %v2066, 0.0
  %2095 = vadd.xlane.f32.xlu0 %v2094
  %v2096 = vpop.xlane.xlu0 %2095
  %v2097 = vrcp.pop 32.0
  %v2098 = vmul.f32 %v2069, %v2097
  %v2099 = vmul.f32 %v2072, %v2097
  %v2100 = vmul.f32 %v2075, %v2097
  %v2101 = vmul.f32 %v2078, %v2097
  %v2102 = vmul.f32 %v2081, %v2097
  %v2103 = vmul.f32 %v2084, %v2097
  %v2104 = vmul.f32 %v2087, %v2097
  %v2105 = vmul.f32 %v2090, %v2097
  %v2106 = vmul.f32 %v2093, %v2097
  %v2107 = vmul.f32 %v2096, %v2097
  %v2108 = vsub.f32 %v2057, %v2098
  %v2109 = vsub.f32 %v2058, %v2099
  %v2110 = vsub.f32 %v2059, %v2100
  %v2111 = vsub.f32 %v2060, %v2101
  %v2112 = vsub.f32 %v2061, %v2102
  %v2113 = vsub.f32 %v2062, %v2103
  %v2114 = vsub.f32 %v2063, %v2104
  %v2115 = vsub.f32 %v2064, %v2105
  %v2116 = vsub.f32 %v2065, %v2106
  %v2117 = vsub.f32 %v2066, %v2107
  %v2118 = vmul.f32 %v2108, %v2108
  %v2119 = vmul.f32 %v2109, %v2109
  %v2120 = vmul.f32 %v2110, %v2110
  %v2121 = vmul.f32 %v2111, %v2111
  %v2122 = vmul.f32 %v2112, %v2112
  %v2123 = vmul.f32 %v2113, %v2113
  %v2124 = vmul.f32 %v2114, %v2114
  %v2125 = vmul.f32 %v2115, %v2115
  %v2126 = vmul.f32 %v2116, %v2116
  %v2127 = vmul.f32 %v2117, %v2117
  %v2128 = vsel %vm215, %v2118, 0.0
  %2129 = vadd.xlane.f32.xlu0 %v2128
  %v2130 = vpop.xlane.xlu0 %2129
  %v2131 = vsel %vm215, %v2119, 0.0
  %2132 = vadd.xlane.f32.xlu0 %v2131
  %v2133 = vpop.xlane.xlu0 %2132
  %v2134 = vsel %vm215, %v2120, 0.0
  %2135 = vadd.xlane.f32.xlu0 %v2134
  %v2136 = vpop.xlane.xlu0 %2135
  %v2137 = vsel %vm215, %v2121, 0.0
  %2138 = vadd.xlane.f32.xlu0 %v2137
  %v2139 = vpop.xlane.xlu0 %2138
  %v2140 = vsel %vm215, %v2122, 0.0
  %2141 = vadd.xlane.f32.xlu0 %v2140
  %v2142 = vpop.xlane.xlu0 %2141
  %v2143 = vsel %vm215, %v2123, 0.0
  %2144 = vadd.xlane.f32.xlu0 %v2143
  %v2145 = vpop.xlane.xlu0 %2144
  %v2146 = vsel %vm215, %v2124, 0.0
  %2147 = vadd.xlane.f32.xlu0 %v2146
  %v2148 = vpop.xlane.xlu0 %2147
  %v2149 = vsel %vm215, %v2125, 0.0
  %2150 = vadd.xlane.f32.xlu0 %v2149
  %v2151 = vpop.xlane.xlu0 %2150
  %v2152 = vsel %vm215, %v2126, 0.0
  %2153 = vadd.xlane.f32.xlu0 %v2152
  %v2154 = vpop.xlane.xlu0 %2153
  %v2155 = vsel %vm215, %v2127, 0.0
  %2156 = vadd.xlane.f32.xlu0 %v2155
  %v2157 = vpop.xlane.xlu0 %2156
  %v2158 = vmul.f32 %v2130, %v2097
  %v2159 = vmul.f32 %v2133, %v2097
  %v2160 = vmul.f32 %v2136, %v2097
  %v2161 = vmul.f32 %v2139, %v2097
  %v2162 = vmul.f32 %v2142, %v2097
  %v2163 = vmul.f32 %v2145, %v2097
  %v2164 = vmul.f32 %v2148, %v2097
  %v2165 = vmul.f32 %v2151, %v2097
  %v2166 = vmul.f32 %v2154, %v2097
  %v2167 = vmul.f32 %v2157, %v2097
  %v2168 = vadd.f32 %v2158, 1e-05
  %v2169 = vadd.f32 %v2159, 1e-05
  %v2170 = vadd.f32 %v2160, 1e-05
  %v2171 = vadd.f32 %v2161, 1e-05
  %v2172 = vadd.f32 %v2162, 1e-05
  %v2173 = vadd.f32 %v2163, 1e-05
  %v2174 = vadd.f32 %v2164, 1e-05
  %v2175 = vadd.f32 %v2165, 1e-05
  %v2176 = vadd.f32 %v2166, 1e-05
  %v2177 = vadd.f32 %v2167, 1e-05
  %v2178 = vrsqrt.pop %v2168
  %v2179 = vrsqrt.pop %v2169
  %v2180 = vrsqrt.pop %v2170
  %v2181 = vrsqrt.pop %v2171
  %v2182 = vrsqrt.pop %v2172
  %v2183 = vrsqrt.pop %v2173
  %v2184 = vrsqrt.pop %v2174
  %v2185 = vrsqrt.pop %v2175
  %v2186 = vrsqrt.pop %v2176
  %v2187 = vrsqrt.pop %v2177
  %v2188 = vmul.f32 %v2108, %v2178
  %v2189 = vmul.f32 %v2109, %v2179
  %v2190 = vmul.f32 %v2110, %v2180
  %v2191 = vmul.f32 %v2111, %v2181
  %v2192 = vmul.f32 %v2112, %v2182
  %v2193 = vmul.f32 %v2113, %v2183
  %v2194 = vmul.f32 %v2114, %v2184
  %v2195 = vmul.f32 %v2115, %v2185
  %v2196 = vmul.f32 %v2116, %v2186
  %v2197 = vmul.f32 %v2117, %v2187
  %v2198 = vlaneseq
  %v2199 = vshrl.u32 %v2198, 7
  %v2200 = vsub.s32 0, %v2199
  %v2201 = vrot.slane %v652, %v2200
  %v2202 = vmul.f32 %v2188, %v2201
  %v2203 = vmul.f32 %v2189, %v2201
  %v2204 = vmul.f32 %v2190, %v2201
  %v2205 = vmul.f32 %v2191, %v2201
  %v2206 = vmul.f32 %v2192, %v2201
  %v2207 = vmul.f32 %v2193, %v2201
  %v2208 = vmul.f32 %v2194, %v2201
  %v2209 = vmul.f32 %v2195, %v2201
  %v2210 = vmul.f32 %v2196, %v2201
  %v2211 = vmul.f32 %v2197, %v2201
  %v2212 = vlaneseq
  %v2213 = vshrl.u32 %v2212, 7
  %v2214 = vsub.s32 0, %v2213
  %v2215 = vrot.slane %v653, %v2214
  %v2216 = vadd.f32 %v2202, %v2215
  %v2217 = vadd.f32 %v2203, %v2215
  %v2218 = vadd.f32 %v2204, %v2215
  %v2219 = vadd.f32 %v2205, %v2215
  %v2220 = vadd.f32 %v2206, %v2215
  %v2221 = vadd.f32 %v2207, %v2215
  %v2222 = vadd.f32 %v2208, %v2215
  %v2223 = vadd.f32 %v2209, %v2215
  %v2224 = vadd.f32 %v2210, %v2215
  %v2225 = vadd.f32 %v2211, %v2215
  %v2226 = vlaneseq
  %v2227 = vshrl.u32 %v2226, 7
  %v2228 = vsub.s32 0, %v2227
  %v2229 = vrot.slane %v650, %v2228
  %v2231 = vsel %vm215, %v2216, 0
  %v2234 = vsel %vm215, %v2217, 0
  %v2237 = vsel %vm215, %v2218, 0
  %v2240 = vsel %vm215, %v2219, 0
  %v2243 = vsel %vm215, %v2220, 0
  %v2246 = vsel %vm215, %v2221, 0
  %v2249 = vsel %vm215, %v2222, 0
  %v2252 = vsel %vm215, %v2223, 0
  %v2255 = vsel %vm215, %v2224, 0
  %v2258 = vsel %vm215, %v2225, 0
  %2260 = vmatprep.subr.mxu0 0.0
  %2261 = vmatpush1.msra.mxu0 %v630
  %2262 = vmatprep.subr.mxu0 0.0
  %2263 = vmatpush1.msra.mxu0 %v631
  %2264 = vmatprep.subr.mxu0 0.0
  %2265 = vmatpush1.msra.mxu0 %v632
  %2266 = vmatprep.subr.mxu0 0.0
  %2267 = vmatpush1.msra.mxu0 %v633
  %2268 = vmatprep.subr.mxu0 0.0
  %2269 = vmatpush1.msra.mxu0 0.0
  %2270 = vmatprep.subr.mxu0 0.0
  %2271 = vmatpush1.msra.mxu0 0.0
  %2272 = vmatprep.subr.mxu0 0.0
  %2273 = vmatpush1.msra.mxu0 0.0
  %2274 = vmatprep.subr.mxu0 0.0
  %2275 = vmatpush1.msra.mxu0 0.0
  %2276 = vmatprep.subr.mxu0 0.0
  %2277 = vmatpush1.msra.mxu0 0.0
  %2278 = vmatprep.subr.mxu0 0.0
  %2279 = vmatpush1.msra.mxu0 0.0
  %2280 = vmatprep.subr.mxu0 0.0
  %2281 = vmatpush1.msra.mxu0 0.0
  %2282 = vmatprep.subr.mxu0 0.0
  %2283 = vmatpush1.msra.mxu0 0.0
  %2284 = vmatprep.subr.mxu0 0.0
  %2285 = vmatpush1.msra.mxu0 0.0
  %2286 = vmatprep.subr.mxu0 0.0
  %2287 = vmatpush1.msra.mxu0 0.0
  %2288 = vmatprep.subr.mxu0 0.0
  %2289 = vmatpush1.msra.mxu0 0.0
  %2290 = vmatprep.subr.mxu0 0.0
  %2291 = vmatpush1.msra.mxu0 0.0
  %2292 = vmatprep.subr.mxu0 0.0
  %2293 = vmatpush1.msra.mxu0 0.0
  %2294 = vmatprep.subr.mxu0 0.0
  %2295 = vmatpush1.msra.mxu0 0.0
  %2296 = vmatprep.subr.mxu0 0.0
  %2297 = vmatpush1.msra.mxu0 0.0
  %2298 = vmatprep.subr.mxu0 0.0
  %2299 = vmatpush1.msra.mxu0 0.0
  %2300 = vmatprep.subr.mxu0 0.0
  %2301 = vmatpush1.msra.mxu0 0.0
  %2302 = vmatprep.subr.mxu0 0.0
  %2303 = vmatpush1.msra.mxu0 0.0
  %2304 = vmatprep.subr.mxu0 0.0
  %2305 = vmatpush1.msra.mxu0 0.0
  %2306 = vmatprep.subr.mxu0 0.0
  %2307 = vmatpush1.msra.mxu0 0.0
  %2308 = vmatprep.subr.mxu0 0.0
  %2309 = vmatpush1.msra.mxu0 0.0
  %2310 = vmatprep.subr.mxu0 0.0
  %2311 = vmatpush1.msra.mxu0 0.0
  %2312 = vmatprep.subr.mxu0 0.0
  %2313 = vmatpush1.msra.mxu0 0.0
  %2314 = vmatprep.subr.mxu0 0.0
  %2315 = vmatpush1.msra.mxu0 0.0
  %2316 = vmatprep.subr.mxu0 0.0
  %2317 = vmatpush1.msra.mxu0 0.0
  %2318 = vmatprep.subr.mxu0 0.0
  %2319 = vmatpush1.msra.mxu0 0.0
  %2320 = vmatprep.subr.mxu0 0.0
  %2321 = vmatpush1.msra.mxu0 0.0
  %2322 = vmatprep.subr.mxu0 0.0
  %2323 = vmatpush1.msra.mxu0 0.0
  %2324 = vmatprep.mubr.f32.mxu0 0.0
  %2325 = vmatmul.mubr.f32.gmra.mrb[0].mxu0 %v2231
  %v2326 = vpop.f32.mrb[0].mxu0
  %v2327 = vadd.f32 %v2229, %v2326
  %v2328 = vpop.f32.mrb[0].mxu0
  %2329 = vmatprep.mubr.f32.mxu0 0.0
  %2330 = vmatmul.mubr.f32.gmra.mrb[0].mxu0 %v2234
  %v2331 = vpop.f32.mrb[0].mxu0
  %v2332 = vadd.f32 %v2229, %v2331
  %v2333 = vpop.f32.mrb[0].mxu0
  %2334 = vmatprep.mubr.f32.mxu0 0.0
  %2335 = vmatmul.mubr.f32.gmra.mrb[0].mxu0 %v2237
  %v2336 = vpop.f32.mrb[0].mxu0
  %v2337 = vadd.f32 %v2229, %v2336
  %v2338 = vpop.f32.mrb[0].mxu0
  %2339 = vmatprep.mubr.f32.mxu0 0.0
  %2340 = vmatmul.mubr.f32.gmra.mrb[0].mxu0 %v2240
  %v2341 = vpop.f32.mrb[0].mxu0
  %v2342 = vadd.f32 %v2229, %v2341
  %v2343 = vpop.f32.mrb[0].mxu0
  %2344 = vmatprep.mubr.f32.mxu0 0.0
  %2345 = vmatmul.mubr.f32.gmra.mrb[0].mxu0 %v2243
  %v2346 = vpop.f32.mrb[0].mxu0
  %v2347 = vadd.f32 %v2229, %v2346
  %v2348 = vpop.f32.mrb[0].mxu0
  %2349 = vmatprep.mubr.f32.mxu0 0.0
  %2350 = vmatmul.mubr.f32.gmra.mrb[0].mxu0 %v2246
  %v2351 = vpop.f32.mrb[0].mxu0
  %v2352 = vadd.f32 %v2229, %v2351
  %v2353 = vpop.f32.mrb[0].mxu0
  %2354 = vmatprep.mubr.f32.mxu0 0.0
  %2355 = vmatmul.mubr.f32.gmra.mrb[0].mxu0 %v2249
  %v2356 = vpop.f32.mrb[0].mxu0
  %v2357 = vadd.f32 %v2229, %v2356
  %v2358 = vpop.f32.mrb[0].mxu0
  %2359 = vmatprep.mubr.f32.mxu0 0.0
  %2360 = vmatmul.mubr.f32.gmra.mrb[0].mxu0 %v2252
  %v2361 = vpop.f32.mrb[0].mxu0
  %v2362 = vadd.f32 %v2229, %v2361
  %v2363 = vpop.f32.mrb[0].mxu0
  %2364 = vmatprep.mubr.f32.mxu0 0.0
  %2365 = vmatmul.mubr.f32.gmra.mrb[0].mxu0 %v2255
  %v2366 = vpop.f32.mrb[0].mxu0
  %v2367 = vadd.f32 %v2229, %v2366
  %v2368 = vpop.f32.mrb[0].mxu0
  %2369 = vmatprep.mubr.f32.mxu0 0.0
  %2370 = vmatmul.mubr.f32.gmra.mrb[0].mxu0 %v2258
  %v2371 = vpop.f32.mrb[0].mxu0
  %v2372 = vadd.f32 %v2229, %v2371
  %v2373 = vpop.f32.mrb[0].mxu0
  %2374 = vdwg.mxu0
  %v2375 = vmax.f32 %v2327, 0.0
  %v2376 = vmax.f32 %v2332, 0.0
  %v2377 = vmax.f32 %v2337, 0.0
  %v2378 = vmax.f32 %v2342, 0.0
  %v2379 = vmax.f32 %v2347, 0.0
  %v2380 = vmax.f32 %v2352, 0.0
  %v2381 = vmax.f32 %v2357, 0.0
  %v2382 = vmax.f32 %v2362, 0.0
  %v2383 = vmax.f32 %v2367, 0.0
  %v2384 = vmax.f32 %v2372, 0.0
  %v2385 = vlaneseq
  %v2386 = vshrl.u32 %v2385, 7
  %v2387 = vsub.s32 0, %v2386
  %v2388 = vrot.slane %v654, %v2387
  %2389 = vmatprep.subr.mxu0 0.0
  %2390 = vmatpush1.msra.mxu0 %v634
  %2391 = vmatprep.subr.mxu0 0.0
  %2392 = vmatpush1.msra.mxu0 %v635
  %2393 = vmatprep.subr.mxu0 0.0
  %2394 = vmatpush1.msra.mxu0 %v636
  %2395 = vmatprep.subr.mxu0 0.0
  %2396 = vmatpush1.msra.mxu0 %v637
  %2397 = vmatprep.subr.mxu0 0.0
  %2398 = vmatpush1.msra.mxu0 %v638
  %2399 = vmatprep.subr.mxu0 0.0
  %2400 = vmatpush1.msra.mxu0 %v639
  %2401 = vmatprep.subr.mxu0 0.0
  %2402 = vmatpush1.msra.mxu0 %v640
  %2403 = vmatprep.subr.mxu0 0.0
  %2404 = vmatpush1.msra.mxu0 %v641
  %2405 = vmatprep.subr.mxu0 0.0
  %2406 = vmatpush1.msra.mxu0 %v642
  %2407 = vmatprep.subr.mxu0 0.0
  %2408 = vmatpush1.msra.mxu0 %v643
  %2409 = vmatprep.subr.mxu0 0.0
  %2410 = vmatpush1.msra.mxu0 %v644
  %2411 = vmatprep.subr.mxu0 0.0
  %2412 = vmatpush1.msra.mxu0 %v645
  %2413 = vmatprep.subr.mxu0 0.0
  %2414 = vmatpush1.msra.mxu0 %v646
  %2415 = vmatprep.subr.mxu0 0.0
  %2416 = vmatpush1.msra.mxu0 %v647
  %2417 = vmatprep.subr.mxu0 0.0
  %2418 = vmatpush1.msra.mxu0 %v648
  %2419 = vmatprep.subr.mxu0 0.0
  %2420 = vmatpush1.msra.mxu0 %v649
  %2421 = vmatprep.subr.mxu0 0.0
  %2422 = vmatpush1.msra.mxu0 0.0
  %2423 = vmatprep.subr.mxu0 0.0
  %2424 = vmatpush1.msra.mxu0 0.0
  %2425 = vmatprep.subr.mxu0 0.0
  %2426 = vmatpush1.msra.mxu0 0.0
  %2427 = vmatprep.subr.mxu0 0.0
  %2428 = vmatpush1.msra.mxu0 0.0
  %2429 = vmatprep.subr.mxu0 0.0
  %2430 = vmatpush1.msra.mxu0 0.0
  %2431 = vmatprep.subr.mxu0 0.0
  %2432 = vmatpush1.msra.mxu0 0.0
  %2433 = vmatprep.subr.mxu0 0.0
  %2434 = vmatpush1.msra.mxu0 0.0
  %2435 = vmatprep.subr.mxu0 0.0
  %2436 = vmatpush1.msra.mxu0 0.0
  %2437 = vmatprep.subr.mxu0 0.0
  %2438 = vmatpush1.msra.mxu0 0.0
  %2439 = vmatprep.subr.mxu0 0.0
  %2440 = vmatpush1.msra.mxu0 0.0
  %2441 = vmatprep.subr.mxu0 0.0
  %2442 = vmatpush1.msra.mxu0 0.0
  %2443 = vmatprep.subr.mxu0 0.0
  %2444 = vmatpush1.msra.mxu0 0.0
  %2445 = vmatprep.subr.mxu0 0.0
  %2446 = vmatpush1.msra.mxu0 0.0
  %2447 = vmatprep.subr.mxu0 0.0
  %2448 = vmatpush1.msra.mxu0 0.0
  %2449 = vmatprep.subr.mxu0 0.0
  %2450 = vmatpush1.msra.mxu0 0.0
  %2451 = vmatprep.subr.mxu0 0.0
  %2452 = vmatpush1.msra.mxu0 0.0
  %2453 = vmatprep.mubr.f32.mxu0 0.0
  %2454 = vmatmul.mubr.f32.gmra.mrb[0].mxu0 %v2375
  %v2455 = vpop.f32.mrb[0].mxu0
  %v2456 = vadd.f32 %v2388, %v2455
  %v2457 = vpop.f32.mrb[0].mxu0
  %2458 = vmatprep.mubr.f32.mxu0 0.0
  %2459 = vmatmul.mubr.f32.gmra.mrb[0].mxu0 %v2376
  %v2460 = vpop.f32.mrb[0].mxu0
  %v2461 = vadd.f32 %v2388, %v2460
  %v2462 = vpop.f32.mrb[0].mxu0
  %2463 = vmatprep.mubr.f32.mxu0 0.0
  %2464 = vmatmul.mubr.f32.gmra.mrb[0].mxu0 %v2377
  %v2465 = vpop.f32.mrb[0].mxu0
  %v2466 = vadd.f32 %v2388, %v2465
  %v2467 = vpop.f32.mrb[0].mxu0
  %2468 = vmatprep.mubr.f32.mxu0 0.0
  %2469 = vmatmul.mubr.f32.gmra.mrb[0].mxu0 %v2378
  %v2470 = vpop.f32.mrb[0].mxu0
  %v2471 = vadd.f32 %v2388, %v2470
  %v2472 = vpop.f32.mrb[0].mxu0
  %2473 = vmatprep.mubr.f32.mxu0 0.0
  %2474 = vmatmul.mubr.f32.gmra.mrb[0].mxu0 %v2379
  %v2475 = vpop.f32.mrb[0].mxu0
  %v2476 = vadd.f32 %v2388, %v2475
  %v2477 = vpop.f32.mrb[0].mxu0
  %2478 = vmatprep.mubr.f32.mxu0 0.0
  %2479 = vmatmul.mubr.f32.gmra.mrb[0].mxu0 %v2380
  %v2480 = vpop.f32.mrb[0].mxu0
  %v2481 = vadd.f32 %v2388, %v2480
  %v2482 = vpop.f32.mrb[0].mxu0
  %2483 = vmatprep.mubr.f32.mxu0 0.0
  %2484 = vmatmul.mubr.f32.gmra.mrb[0].mxu0 %v2381
  %v2485 = vpop.f32.mrb[0].mxu0
  %v2486 = vadd.f32 %v2388, %v2485
  %v2487 = vpop.f32.mrb[0].mxu0
  %2488 = vmatprep.mubr.f32.mxu0 0.0
  %2489 = vmatmul.mubr.f32.gmra.mrb[0].mxu0 %v2382
  %v2490 = vpop.f32.mrb[0].mxu0
  %v2491 = vadd.f32 %v2388, %v2490
  %v2492 = vpop.f32.mrb[0].mxu0
  %2493 = vmatprep.mubr.f32.mxu0 0.0
  %2494 = vmatmul.mubr.f32.gmra.mrb[0].mxu0 %v2383
  %v2495 = vpop.f32.mrb[0].mxu0
  %v2496 = vadd.f32 %v2388, %v2495
  %v2497 = vpop.f32.mrb[0].mxu0
  %2498 = vmatprep.mubr.f32.mxu0 0.0
  %2499 = vmatmul.mubr.f32.gmra.mrb[0].mxu0 %v2384
  %v2500 = vpop.f32.mrb[0].mxu0
  %v2501 = vadd.f32 %v2388, %v2500
  %v2502 = vpop.f32.mrb[0].mxu0
  %2503 = vdwg.mxu0
  %v2504 = vadd.f32 %v2456, %v2216
  %v2505 = vadd.f32 %v2461, %v2217
  %v2506 = vadd.f32 %v2466, %v2218
  %v2507 = vadd.f32 %v2471, %v2219
  %v2508 = vadd.f32 %v2476, %v2220
  %v2509 = vadd.f32 %v2481, %v2221
  %v2510 = vadd.f32 %v2486, %v2222
  %v2511 = vadd.f32 %v2491, %v2223
  %v2512 = vadd.f32 %v2496, %v2224
  %v2513 = vadd.f32 %v2501, %v2225
  %v2514 = vsel %vm215, %v2504, 0.0
  %2515 = vadd.xlane.f32.xlu0 %v2514
  %v2516 = vpop.xlane.xlu0 %2515
  %v2517 = vsel %vm215, %v2505, 0.0
  %2518 = vadd.xlane.f32.xlu0 %v2517
  %v2519 = vpop.xlane.xlu0 %2518
  %v2520 = vsel %vm215, %v2506, 0.0
  %2521 = vadd.xlane.f32.xlu0 %v2520
  %v2522 = vpop.xlane.xlu0 %2521
  %v2523 = vsel %vm215, %v2507, 0.0
  %2524 = vadd.xlane.f32.xlu0 %v2523
  %v2525 = vpop.xlane.xlu0 %2524
  %v2526 = vsel %vm215, %v2508, 0.0
  %2527 = vadd.xlane.f32.xlu0 %v2526
  %v2528 = vpop.xlane.xlu0 %2527
  %v2529 = vsel %vm215, %v2509, 0.0
  %2530 = vadd.xlane.f32.xlu0 %v2529
  %v2531 = vpop.xlane.xlu0 %2530
  %v2532 = vsel %vm215, %v2510, 0.0
  %2533 = vadd.xlane.f32.xlu0 %v2532
  %v2534 = vpop.xlane.xlu0 %2533
  %v2535 = vsel %vm215, %v2511, 0.0
  %2536 = vadd.xlane.f32.xlu0 %v2535
  %v2537 = vpop.xlane.xlu0 %2536
  %v2538 = vsel %vm215, %v2512, 0.0
  %2539 = vadd.xlane.f32.xlu0 %v2538
  %v2540 = vpop.xlane.xlu0 %2539
  %v2541 = vsel %vm215, %v2513, 0.0
  %2542 = vadd.xlane.f32.xlu0 %v2541
  %v2543 = vpop.xlane.xlu0 %2542
  %v2544 = vmul.f32 %v2516, %v2097
  %v2545 = vmul.f32 %v2519, %v2097
  %v2546 = vmul.f32 %v2522, %v2097
  %v2547 = vmul.f32 %v2525, %v2097
  %v2548 = vmul.f32 %v2528, %v2097
  %v2549 = vmul.f32 %v2531, %v2097
  %v2550 = vmul.f32 %v2534, %v2097
  %v2551 = vmul.f32 %v2537, %v2097
  %v2552 = vmul.f32 %v2540, %v2097
  %v2553 = vmul.f32 %v2543, %v2097
  %v2554 = vsub.f32 %v2504, %v2544
  %v2555 = vsub.f32 %v2505, %v2545
  %v2556 = vsub.f32 %v2506, %v2546
  %v2557 = vsub.f32 %v2507, %v2547
  %v2558 = vsub.f32 %v2508, %v2548
  %v2559 = vsub.f32 %v2509, %v2549
  %v2560 = vsub.f32 %v2510, %v2550
  %v2561 = vsub.f32 %v2511, %v2551
  %v2562 = vsub.f32 %v2512, %v2552
  %v2563 = vsub.f32 %v2513, %v2553
  %v2564 = vmul.f32 %v2554, %v2554
  %v2565 = vmul.f32 %v2555, %v2555
  %v2566 = vmul.f32 %v2556, %v2556
  %v2567 = vmul.f32 %v2557, %v2557
  %v2568 = vmul.f32 %v2558, %v2558
  %v2569 = vmul.f32 %v2559, %v2559
  %v2570 = vmul.f32 %v2560, %v2560
  %v2571 = vmul.f32 %v2561, %v2561
  %v2572 = vmul.f32 %v2562, %v2562
  %v2573 = vmul.f32 %v2563, %v2563
  %v2574 = vsel %vm215, %v2564, 0.0
  %2575 = vadd.xlane.f32.xlu0 %v2574
  %v2576 = vpop.xlane.xlu0 %2575
  %v2577 = vsel %vm215, %v2565, 0.0
  %2578 = vadd.xlane.f32.xlu0 %v2577
  %v2579 = vpop.xlane.xlu0 %2578
  %v2580 = vsel %vm215, %v2566, 0.0
  %2581 = vadd.xlane.f32.xlu0 %v2580
  %v2582 = vpop.xlane.xlu0 %2581
  %v2583 = vsel %vm215, %v2567, 0.0
  %2584 = vadd.xlane.f32.xlu0 %v2583
  %v2585 = vpop.xlane.xlu0 %2584
  %v2586 = vsel %vm215, %v2568, 0.0
  %2587 = vadd.xlane.f32.xlu0 %v2586
  %v2588 = vpop.xlane.xlu0 %2587
  %v2589 = vsel %vm215, %v2569, 0.0
  %2590 = vadd.xlane.f32.xlu0 %v2589
  %v2591 = vpop.xlane.xlu0 %2590
  %v2592 = vsel %vm215, %v2570, 0.0
  %2593 = vadd.xlane.f32.xlu0 %v2592
  %v2594 = vpop.xlane.xlu0 %2593
  %v2595 = vsel %vm215, %v2571, 0.0
  %2596 = vadd.xlane.f32.xlu0 %v2595
  %v2597 = vpop.xlane.xlu0 %2596
  %v2598 = vsel %vm215, %v2572, 0.0
  %2599 = vadd.xlane.f32.xlu0 %v2598
  %v2600 = vpop.xlane.xlu0 %2599
  %v2601 = vsel %vm215, %v2573, 0.0
  %2602 = vadd.xlane.f32.xlu0 %v2601
  %v2603 = vpop.xlane.xlu0 %2602
  %v2604 = vmul.f32 %v2576, %v2097
  %v2605 = vmul.f32 %v2579, %v2097
  %v2606 = vmul.f32 %v2582, %v2097
  %v2607 = vmul.f32 %v2585, %v2097
  %v2608 = vmul.f32 %v2588, %v2097
  %v2609 = vmul.f32 %v2591, %v2097
  %v2610 = vmul.f32 %v2594, %v2097
  %v2611 = vmul.f32 %v2597, %v2097
  %v2612 = vmul.f32 %v2600, %v2097
  %v2613 = vmul.f32 %v2603, %v2097
  %v2614 = vadd.f32 %v2604, 1e-05
  %v2615 = vadd.f32 %v2605, 1e-05
  %v2616 = vadd.f32 %v2606, 1e-05
  %v2617 = vadd.f32 %v2607, 1e-05
  %v2618 = vadd.f32 %v2608, 1e-05
  %v2619 = vadd.f32 %v2609, 1e-05
  %v2620 = vadd.f32 %v2610, 1e-05
  %v2621 = vadd.f32 %v2611, 1e-05
  %v2622 = vadd.f32 %v2612, 1e-05
  %v2623 = vadd.f32 %v2613, 1e-05
  %v2624 = vrsqrt.pop %v2614
  %v2625 = vrsqrt.pop %v2615
  %v2626 = vrsqrt.pop %v2616
  %v2627 = vrsqrt.pop %v2617
  %v2628 = vrsqrt.pop %v2618
  %v2629 = vrsqrt.pop %v2619
  %v2630 = vrsqrt.pop %v2620
  %v2631 = vrsqrt.pop %v2621
  %v2632 = vrsqrt.pop %v2622
  %v2633 = vrsqrt.pop %v2623
  %v2634 = vmul.f32 %v2554, %v2624
  %v2635 = vmul.f32 %v2555, %v2625
  %v2636 = vmul.f32 %v2556, %v2626
  %v2637 = vmul.f32 %v2557, %v2627
  %v2638 = vmul.f32 %v2558, %v2628
  %v2639 = vmul.f32 %v2559, %v2629
  %v2640 = vmul.f32 %v2560, %v2630
  %v2641 = vmul.f32 %v2561, %v2631
  %v2642 = vmul.f32 %v2562, %v2632
  %v2643 = vmul.f32 %v2563, %v2633
  %v2644 = vlaneseq
  %v2645 = vshrl.u32 %v2644, 7
  %v2646 = vsub.s32 0, %v2645
  %v2647 = vrot.slane %v655, %v2646
  %v2648 = vmul.f32 %v2634, %v2647
  %v2649 = vmul.f32 %v2635, %v2647
  %v2650 = vmul.f32 %v2636, %v2647
  %v2651 = vmul.f32 %v2637, %v2647
  %v2652 = vmul.f32 %v2638, %v2647
  %v2653 = vmul.f32 %v2639, %v2647
  %v2654 = vmul.f32 %v2640, %v2647
  %v2655 = vmul.f32 %v2641, %v2647
  %v2656 = vmul.f32 %v2642, %v2647
  %v2657 = vmul.f32 %v2643, %v2647
  %v2658 = vlaneseq
  %v2659 = vshrl.u32 %v2658, 7
  %v2660 = vsub.s32 0, %v2659
  %v2661 = vrot.slane %v656, %v2660
  %v2662 = vadd.f32 %v2648, %v2661
  %v2663 = vadd.f32 %v2649, %v2661
  %v2664 = vadd.f32 %v2650, %v2661
  %v2665 = vadd.f32 %v2651, %v2661
  %v2666 = vadd.f32 %v2652, %v2661
  %v2667 = vadd.f32 %v2653, %v2661
  %v2668 = vadd.f32 %v2654, %v2661
  %v2669 = vadd.f32 %v2655, %v2661
  %v2670 = vadd.f32 %v2656, %v2661
  %v2671 = vadd.f32 %v2657, %v2661
  %s2672 = scalar_lea.vmem %s4, 64
  %v2673 = vld [vmem:[%s2672] sm:$0xff]
  %v2674 = vld [vmem:[%s2672 + $0x8] sm:$0xff]
  %v2675 = vld [vmem:[%s2672 + $0x10] sm:$0xff]
  %v2676 = vld [vmem:[%s2672 + $0x18] sm:$0xff]
  %v2677 = vld [vmem:[%s2672 + $0x20] sm:$0xff]
  %v2678 = vld [vmem:[%s2672 + $0x28] sm:$0xff]
  %v2679 = vld [vmem:[%s2672 + $0x30] sm:$0xff]
  %v2680 = vld [vmem:[%s2672 + $0x38] sm:$0xff]
  %s2681 = scalar_lea.vmem %s5, 64
  %v2682 = vld [vmem:[%s2681] sm:$0xff]
  %v2683 = vld [vmem:[%s2681 + $0x8] sm:$0xff]
  %v2684 = vld [vmem:[%s2681 + $0x10] sm:$0xff]
  %v2685 = vld [vmem:[%s2681 + $0x18] sm:$0xff]
  %v2686 = vld [vmem:[%s2681 + $0x20] sm:$0xff]
  %v2687 = vld [vmem:[%s2681 + $0x28] sm:$0xff]
  %v2688 = vld [vmem:[%s2681 + $0x30] sm:$0xff]
  %v2689 = vld [vmem:[%s2681 + $0x38] sm:$0xff]
  %s2690 = scalar_lea.vmem %s6, 32
  %v2691 = vld [vmem:[%s2690] sm:$0xff]
  %v2692 = vld [vmem:[%s2690 + $0x8] sm:$0xff]
  %v2693 = vld [vmem:[%s2690 + $0x10] sm:$0xff]
  %v2694 = vld [vmem:[%s2690 + $0x18] sm:$0xff]
  %s2695 = scalar_lea.vmem %s7, 128
  %v2696 = vld [vmem:[%s2695] sm:$0xff]
  %v2697 = vld [vmem:[%s2695 + $0x8] sm:$0xff]
  %v2698 = vld [vmem:[%s2695 + $0x10] sm:$0xff]
  %v2699 = vld [vmem:[%s2695 + $0x18] sm:$0xff]
  %v2700 = vld [vmem:[%s2695 + $0x20] sm:$0xff]
  %v2701 = vld [vmem:[%s2695 + $0x28] sm:$0xff]
  %v2702 = vld [vmem:[%s2695 + $0x30] sm:$0xff]
  %v2703 = vld [vmem:[%s2695 + $0x38] sm:$0xff]
  %v2704 = vld [vmem:[%s2695 + $0x40] sm:$0xff]
  %v2705 = vld [vmem:[%s2695 + $0x48] sm:$0xff]
  %v2706 = vld [vmem:[%s2695 + $0x50] sm:$0xff]
  %v2707 = vld [vmem:[%s2695 + $0x58] sm:$0xff]
  %v2708 = vld [vmem:[%s2695 + $0x60] sm:$0xff]
  %v2709 = vld [vmem:[%s2695 + $0x68] sm:$0xff]
  %v2710 = vld [vmem:[%s2695 + $0x70] sm:$0xff]
  %v2711 = vld [vmem:[%s2695 + $0x78] sm:$0xff]
  %v2712 = vld [vmem:[%s9 + $0x1] sm:$0x1]
  %v2713 = vld [vmem:[%s8 + $0x9] sm:$0x1]
  %v2714 = vld [vmem:[%s8 + $0xa] sm:$0x1]
  %v2715 = vld [vmem:[%s8 + $0xb] sm:$0x1]
  %v2716 = vld [vmem:[%s8 + $0xc] sm:$0x1]
  %v2717 = vld [vmem:[%s8 + $0xd] sm:$0x1]
  %v2718 = vld [vmem:[%s8 + $0xe] sm:$0x1]
  %v2720 = vsel %vm215, %v2662, 0
  %v2723 = vsel %vm215, %v2663, 0
  %v2726 = vsel %vm215, %v2664, 0
  %v2729 = vsel %vm215, %v2665, 0
  %v2732 = vsel %vm215, %v2666, 0
  %v2735 = vsel %vm215, %v2667, 0
  %v2738 = vsel %vm215, %v2668, 0
  %v2741 = vsel %vm215, %v2669, 0
  %v2744 = vsel %vm215, %v2670, 0
  %v2747 = vsel %vm215, %v2671, 0
  %2749 = vmatprep.subr.mxu0 %v2674
  %2750 = vmatpush1.msra.mxu0 %v2673
  %2751 = vmatprep.subr.mxu0 %v2676
  %2752 = vmatpush1.msra.mxu0 %v2675
  %2753 = vmatprep.subr.mxu0 %v2678
  %2754 = vmatpush1.msra.mxu0 %v2677
  %2755 = vmatprep.subr.mxu0 %v2680
  %2756 = vmatpush1.msra.mxu0 %v2679
  %2757 = vmatprep.subr.mxu0 0.0
  %2758 = vmatpush1.msra.mxu0 0.0
  %2759 = vmatprep.subr.mxu0 0.0
  %2760 = vmatpush1.msra.mxu0 0.0
  %2761 = vmatprep.subr.mxu0 0.0
  %2762 = vmatpush1.msra.mxu0 0.0
  %2763 = vmatprep.subr.mxu0 0.0
  %2764 = vmatpush1.msra.mxu0 0.0
  %2765 = vmatprep.subr.mxu0 0.0
  %2766 = vmatpush1.msra.mxu0 0.0
  %2767 = vmatprep.subr.mxu0 0.0
  %2768 = vmatpush1.msra.mxu0 0.0
  %2769 = vmatprep.subr.mxu0 0.0
  %2770 = vmatpush1.msra.mxu0 0.0
  %2771 = vmatprep.subr.mxu0 0.0
  %2772 = vmatpush1.msra.mxu0 0.0
  %2773 = vmatprep.subr.mxu0 0.0
  %2774 = vmatpush1.msra.mxu0 0.0
  %2775 = vmatprep.subr.mxu0 0.0
  %2776 = vmatpush1.msra.mxu0 0.0
  %2777 = vmatprep.subr.mxu0 0.0
  %2778 = vmatpush1.msra.mxu0 0.0
  %2779 = vmatprep.subr.mxu0 0.0
  %2780 = vmatpush1.msra.mxu0 0.0
  %2781 = vmatprep.subr.mxu0 0.0
  %2782 = vmatpush1.msra.mxu0 0.0
  %2783 = vmatprep.subr.mxu0 0.0
  %2784 = vmatpush1.msra.mxu0 0.0
  %2785 = vmatprep.subr.mxu0 0.0
  %2786 = vmatpush1.msra.mxu0 0.0
  %2787 = vmatprep.subr.mxu0 0.0
  %2788 = vmatpush1.msra.mxu0 0.0
  %2789 = vmatprep.subr.mxu0 0.0
  %2790 = vmatpush1.msra.mxu0 0.0
  %2791 = vmatprep.subr.mxu0 0.0
  %2792 = vmatpush1.msra.mxu0 0.0
  %2793 = vmatprep.subr.mxu0 0.0
  %2794 = vmatpush1.msra.mxu0 0.0
  %2795 = vmatprep.subr.mxu0 0.0
  %2796 = vmatpush1.msra.mxu0 0.0
  %2797 = vmatprep.subr.mxu0 0.0
  %2798 = vmatpush1.msra.mxu0 0.0
  %2799 = vmatprep.subr.mxu0 0.0
  %2800 = vmatpush1.msra.mxu0 0.0
  %2801 = vmatprep.subr.mxu0 0.0
  %2802 = vmatpush1.msra.mxu0 0.0
  %2803 = vmatprep.subr.mxu0 0.0
  %2804 = vmatpush1.msra.mxu0 0.0
  %2805 = vmatprep.subr.mxu0 0.0
  %2806 = vmatpush1.msra.mxu0 0.0
  %2807 = vmatprep.subr.mxu0 0.0
  %2808 = vmatpush1.msra.mxu0 0.0
  %2809 = vmatprep.subr.mxu0 0.0
  %2810 = vmatpush1.msra.mxu0 0.0
  %2811 = vmatprep.subr.mxu0 0.0
  %2812 = vmatpush1.msra.mxu0 0.0
  %2813 = vmatprep.mubr.f32.mxu0 0.0
  %2814 = vmatmul.mubr.f32.gmra.mrb[0].mxu0 %v2720
  %v2815 = vpop.f32.mrb[0].mxu0
  %v2816 = vadd.f32 0.0, %v2815
  %v2817 = vpop.f32.mrb[0].mxu0
  %v2818 = vadd.f32 0.0, %v2817
  %2819 = vmatprep.mubr.f32.mxu0 0.0
  %2820 = vmatmul.mubr.f32.gmra.mrb[0].mxu0 %v2723
  %v2821 = vpop.f32.mrb[0].mxu0
  %v2822 = vadd.f32 0.0, %v2821
  %v2823 = vpop.f32.mrb[0].mxu0
  %v2824 = vadd.f32 0.0, %v2823
  %2825 = vmatprep.mubr.f32.mxu0 0.0
  %2826 = vmatmul.mubr.f32.gmra.mrb[0].mxu0 %v2726
  %v2827 = vpop.f32.mrb[0].mxu0
  %v2828 = vadd.f32 0.0, %v2827
  %v2829 = vpop.f32.mrb[0].mxu0
  %v2830 = vadd.f32 0.0, %v2829
  %2831 = vmatprep.mubr.f32.mxu0 0.0
  %2832 = vmatmul.mubr.f32.gmra.mrb[0].mxu0 %v2729
  %v2833 = vpop.f32.mrb[0].mxu0
  %v2834 = vadd.f32 0.0, %v2833
  %v2835 = vpop.f32.mrb[0].mxu0
  %v2836 = vadd.f32 0.0, %v2835
  %2837 = vmatprep.mubr.f32.mxu0 0.0
  %2838 = vmatmul.mubr.f32.gmra.mrb[0].mxu0 %v2732
  %v2839 = vpop.f32.mrb[0].mxu0
  %v2840 = vadd.f32 0.0, %v2839
  %v2841 = vpop.f32.mrb[0].mxu0
  %v2842 = vadd.f32 0.0, %v2841
  %2843 = vmatprep.mubr.f32.mxu0 0.0
  %2844 = vmatmul.mubr.f32.gmra.mrb[0].mxu0 %v2735
  %v2845 = vpop.f32.mrb[0].mxu0
  %v2846 = vadd.f32 0.0, %v2845
  %v2847 = vpop.f32.mrb[0].mxu0
  %v2848 = vadd.f32 0.0, %v2847
  %2849 = vmatprep.mubr.f32.mxu0 0.0
  %2850 = vmatmul.mubr.f32.gmra.mrb[0].mxu0 %v2738
  %v2851 = vpop.f32.mrb[0].mxu0
  %v2852 = vadd.f32 0.0, %v2851
  %v2853 = vpop.f32.mrb[0].mxu0
  %v2854 = vadd.f32 0.0, %v2853
  %2855 = vmatprep.mubr.f32.mxu0 0.0
  %2856 = vmatmul.mubr.f32.gmra.mrb[0].mxu0 %v2741
  %v2857 = vpop.f32.mrb[0].mxu0
  %v2858 = vadd.f32 0.0, %v2857
  %v2859 = vpop.f32.mrb[0].mxu0
  %v2860 = vadd.f32 0.0, %v2859
  %2861 = vmatprep.mubr.f32.mxu0 0.0
  %2862 = vmatmul.mubr.f32.gmra.mrb[0].mxu0 %v2744
  %v2863 = vpop.f32.mrb[0].mxu0
  %v2864 = vadd.f32 0.0, %v2863
  %v2865 = vpop.f32.mrb[0].mxu0
  %v2866 = vadd.f32 0.0, %v2865
  %2867 = vmatprep.mubr.f32.mxu0 0.0
  %2868 = vmatmul.mubr.f32.gmra.mrb[0].mxu0 %v2747
  %v2869 = vpop.f32.mrb[0].mxu0
  %v2870 = vadd.f32 0.0, %v2869
  %v2871 = vpop.f32.mrb[0].mxu0
  %v2872 = vadd.f32 0.0, %v2871
  %2873 = vdwg.mxu0
  %v2874 = vmul.f32 %v2816, 0.4204482
  %v2875 = vmul.f32 %v2822, 0.4204482
  %v2876 = vmul.f32 %v2828, 0.4204482
  %v2877 = vmul.f32 %v2834, 0.4204482
  %v2878 = vmul.f32 %v2840, 0.4204482
  %v2879 = vmul.f32 %v2846, 0.4204482
  %v2880 = vmul.f32 %v2852, 0.4204482
  %v2881 = vmul.f32 %v2858, 0.4204482
  %v2882 = vmul.f32 %v2864, 0.4204482
  %v2883 = vmul.f32 %v2870, 0.4204482
  %2894 = vrot.lane.b32.xlu0 %v2874, 64
  %v2895 = vpop.permute.xlu0 %2894
  %2896 = vrot.lane.b32.xlu0 %v2875, 64
  %v2897 = vpop.permute.xlu0 %2896
  %2898 = vrot.lane.b32.xlu0 %v2876, 64
  %v2899 = vpop.permute.xlu0 %2898
  %2900 = vrot.lane.b32.xlu0 %v2877, 64
  %v2901 = vpop.permute.xlu0 %2900
  %2902 = vrot.lane.b32.xlu0 %v2878, 64
  %v2903 = vpop.permute.xlu0 %2902
  %2904 = vrot.lane.b32.xlu0 %v2879, 64
  %v2905 = vpop.permute.xlu0 %2904
  %2906 = vrot.lane.b32.xlu0 %v2880, 64
  %v2907 = vpop.permute.xlu0 %2906
  %2908 = vrot.lane.b32.xlu0 %v2881, 64
  %v2909 = vpop.permute.xlu0 %2908
  %2910 = vrot.lane.b32.xlu0 %v2882, 64
  %v2911 = vpop.permute.xlu0 %2910
  %2912 = vrot.lane.b32.xlu0 %v2883, 64
  %v2913 = vpop.permute.xlu0 %2912
  %v2914 = vsel %vm215, %v2874, 0
  %v2916 = vsel %vm215, %v2875, 0
  %v2918 = vsel %vm215, %v2876, 0
  %v2920 = vsel %vm215, %v2877, 0
  %v2922 = vsel %vm215, %v2878, 0
  %v2924 = vsel %vm215, %v2879, 0
  %v2926 = vsel %vm215, %v2880, 0
  %v2928 = vsel %vm215, %v2881, 0
  %v2930 = vsel %vm215, %v2882, 0
  %v2932 = vsel %vm215, %v2883, 0
  %v2934 = vsel %vm215, %v2895, 0
  %v2936 = vsel %vm215, %v2897, 0
  %v2938 = vsel %vm215, %v2899, 0
  %v2940 = vsel %vm215, %v2901, 0
  %v2942 = vsel %vm215, %v2903, 0
  %v2944 = vsel %vm215, %v2905, 0
  %v2946 = vsel %vm215, %v2907, 0
  %v2948 = vsel %vm215, %v2909, 0
  %v2950 = vsel %vm215, %v2911, 0
  %v2952 = vsel %vm215, %v2913, 0
  %2954 = vmatprep.subr.mxu0 0.0
  %2955 = vmatpush1.xpose.msra.mxu0 %v2934
  %2956 = vmatprep.subr.mxu0 0.0
  %2957 = vmatpush1.xpose.msra.mxu0 %v2936
  %2958 = vmatprep.subr.mxu0 0.0
  %2959 = vmatpush1.xpose.msra.mxu0 %v2938
  %2960 = vmatprep.subr.mxu0 0.0
  %2961 = vmatpush1.xpose.msra.mxu0 %v2940
  %2962 = vmatprep.subr.mxu0 0.0
  %2963 = vmatpush1.xpose.msra.mxu0 %v2942
  %2964 = vmatprep.subr.mxu0 0.0
  %2965 = vmatpush1.xpose.msra.mxu0 %v2944
  %2966 = vmatprep.subr.mxu0 0.0
  %2967 = vmatpush1.xpose.msra.mxu0 %v2946
  %2968 = vmatprep.subr.mxu0 0.0
  %2969 = vmatpush1.xpose.msra.mxu0 %v2948
  %2970 = vmatprep.subr.mxu0 0.0
  %2971 = vmatpush1.xpose.msra.mxu0 %v2950
  %2972 = vmatprep.subr.mxu0 0.0
  %2973 = vmatpush1.xpose.msra.mxu0 %v2952
  %2974 = vmatprep.subr.mxu0 0.0
  %2975 = vmatpush1.xpose.msra.mxu0 0.0
  %2976 = vmatprep.subr.mxu0 0.0
  %2977 = vmatpush1.xpose.msra.mxu0 0.0
  %2978 = vmatprep.subr.mxu0 0.0
  %2979 = vmatpush1.xpose.msra.mxu0 0.0
  %2980 = vmatprep.subr.mxu0 0.0
  %2981 = vmatpush1.xpose.msra.mxu0 0.0
  %2982 = vmatprep.subr.mxu0 0.0
  %2983 = vmatpush1.xpose.msra.mxu0 0.0
  %2984 = vmatprep.subr.mxu0 0.0
  %2985 = vmatpush1.xpose.msra.mxu0 0.0
  %2986 = vmatprep.subr.mxu0 0.0
  %2987 = vmatpush1.xpose.msra.mxu0 0.0
  %2988 = vmatprep.subr.mxu0 0.0
  %2989 = vmatpush1.xpose.msra.mxu0 0.0
  %2990 = vmatprep.subr.mxu0 0.0
  %2991 = vmatpush1.xpose.msra.mxu0 0.0
  %2992 = vmatprep.subr.mxu0 0.0
  %2993 = vmatpush1.xpose.msra.mxu0 0.0
  %2994 = vmatprep.subr.mxu0 0.0
  %2995 = vmatpush1.xpose.msra.mxu0 0.0
  %2996 = vmatprep.subr.mxu0 0.0
  %2997 = vmatpush1.xpose.msra.mxu0 0.0
  %2998 = vmatprep.subr.mxu0 0.0
  %2999 = vmatpush1.xpose.msra.mxu0 0.0
  %3000 = vmatprep.subr.mxu0 0.0
  %3001 = vmatpush1.xpose.msra.mxu0 0.0
  %3002 = vmatprep.subr.mxu0 0.0
  %3003 = vmatpush1.xpose.msra.mxu0 0.0
  %3004 = vmatprep.subr.mxu0 0.0
  %3005 = vmatpush1.xpose.msra.mxu0 0.0
  %3006 = vmatprep.subr.mxu0 0.0
  %3007 = vmatpush1.xpose.msra.mxu0 0.0
  %3008 = vmatprep.subr.mxu0 0.0
  %3009 = vmatpush1.xpose.msra.mxu0 0.0
  %3010 = vmatprep.subr.mxu0 0.0
  %3011 = vmatpush1.xpose.msra.mxu0 0.0
  %3012 = vmatprep.subr.mxu0 0.0
  %3013 = vmatpush1.xpose.msra.mxu0 0.0
  %3014 = vmatprep.subr.mxu0 0.0
  %3015 = vmatpush1.xpose.msra.mxu0 0.0
  %3016 = vmatprep.subr.mxu0 0.0
  %3017 = vmatpush1.xpose.msra.mxu0 0.0
  %3018 = vmatprep.mubr.f32.mxu0 0.0
  %3019 = vmatmul.mubr.f32.gmra.mrb[0].mxu0 %v2914
  %v3020 = vpop.f32.mrb[0].mxu0
  %v3021 = vadd.f32 %v604, %v3020
  %v3022 = vpop.f32.mrb[0].mxu0
  %3023 = vmatprep.mubr.f32.mxu0 0.0
  %3024 = vmatmul.mubr.f32.gmra.mrb[0].mxu0 %v2916
  %v3025 = vpop.f32.mrb[0].mxu0
  %v3026 = vadd.f32 %v605, %v3025
  %v3027 = vpop.f32.mrb[0].mxu0
  %3028 = vmatprep.mubr.f32.mxu0 0.0
  %3029 = vmatmul.mubr.f32.gmra.mrb[0].mxu0 %v2918
  %v3030 = vpop.f32.mrb[0].mxu0
  %v3031 = vadd.f32 %v606, %v3030
  %v3032 = vpop.f32.mrb[0].mxu0
  %3033 = vmatprep.mubr.f32.mxu0 0.0
  %3034 = vmatmul.mubr.f32.gmra.mrb[0].mxu0 %v2920
  %v3035 = vpop.f32.mrb[0].mxu0
  %v3036 = vadd.f32 %v607, %v3035
  %v3037 = vpop.f32.mrb[0].mxu0
  %3038 = vmatprep.mubr.f32.mxu0 0.0
  %3039 = vmatmul.mubr.f32.gmra.mrb[0].mxu0 %v2922
  %v3040 = vpop.f32.mrb[0].mxu0
  %v3041 = vadd.f32 %v608, %v3040
  %v3042 = vpop.f32.mrb[0].mxu0
  %3043 = vmatprep.mubr.f32.mxu0 0.0
  %3044 = vmatmul.mubr.f32.gmra.mrb[0].mxu0 %v2924
  %v3045 = vpop.f32.mrb[0].mxu0
  %v3046 = vadd.f32 %v609, %v3045
  %v3047 = vpop.f32.mrb[0].mxu0
  %3048 = vmatprep.mubr.f32.mxu0 0.0
  %3049 = vmatmul.mubr.f32.gmra.mrb[0].mxu0 %v2926
  %v3050 = vpop.f32.mrb[0].mxu0
  %v3051 = vadd.f32 %v610, %v3050
  %v3052 = vpop.f32.mrb[0].mxu0
  %3053 = vmatprep.mubr.f32.mxu0 0.0
  %3054 = vmatmul.mubr.f32.gmra.mrb[0].mxu0 %v2928
  %v3055 = vpop.f32.mrb[0].mxu0
  %v3056 = vadd.f32 %v611, %v3055
  %v3057 = vpop.f32.mrb[0].mxu0
  %3058 = vmatprep.mubr.f32.mxu0 0.0
  %3059 = vmatmul.mubr.f32.gmra.mrb[0].mxu0 %v2930
  %v3060 = vpop.f32.mrb[0].mxu0
  %v3061 = vadd.f32 %v612, %v3060
  %v3062 = vpop.f32.mrb[0].mxu0
  %3063 = vmatprep.mubr.f32.mxu0 0.0
  %3064 = vmatmul.mubr.f32.gmra.mrb[0].mxu0 %v2932
  %v3065 = vpop.f32.mrb[0].mxu0
  %v3066 = vadd.f32 %v613, %v3065
  %v3067 = vpop.f32.mrb[0].mxu0
  %3068 = vdwg.mxu0
  %v3069 = vsel %vm1007, %v3021, -inf
  %3070 = vmax.xlane.f32.xlu0 %v3069
  %v3071 = vpop.xlane.xlu0 %3070
  %v3072 = vsel %vm1007, %v3026, -inf
  %3073 = vmax.xlane.f32.xlu0 %v3072
  %v3074 = vpop.xlane.xlu0 %3073
  %v3075 = vsel %vm1007, %v3031, -inf
  %3076 = vmax.xlane.f32.xlu0 %v3075
  %v3077 = vpop.xlane.xlu0 %3076
  %v3078 = vsel %vm1007, %v3036, -inf
  %3079 = vmax.xlane.f32.xlu0 %v3078
  %v3080 = vpop.xlane.xlu0 %3079
  %v3081 = vsel %vm1007, %v3041, -inf
  %3082 = vmax.xlane.f32.xlu0 %v3081
  %v3083 = vpop.xlane.xlu0 %3082
  %v3084 = vsel %vm1007, %v3046, -inf
  %3085 = vmax.xlane.f32.xlu0 %v3084
  %v3086 = vpop.xlane.xlu0 %3085
  %v3087 = vsel %vm1007, %v3051, -inf
  %3088 = vmax.xlane.f32.xlu0 %v3087
  %v3089 = vpop.xlane.xlu0 %3088
  %v3090 = vsel %vm1007, %v3056, -inf
  %3091 = vmax.xlane.f32.xlu0 %v3090
  %v3092 = vpop.xlane.xlu0 %3091
  %v3093 = vsel %vm1007, %v3061, -inf
  %3094 = vmax.xlane.f32.xlu0 %v3093
  %v3095 = vpop.xlane.xlu0 %3094
  %v3096 = vsel %vm1007, %v3066, -inf
  %3097 = vmax.xlane.f32.xlu0 %v3096
  %v3098 = vpop.xlane.xlu0 %3097
  %v3099 = vsub.f32 %v3021, %v3071
  %v3100 = vsub.f32 %v3026, %v3074
  %v3101 = vsub.f32 %v3031, %v3077
  %v3102 = vsub.f32 %v3036, %v3080
  %v3103 = vsub.f32 %v3041, %v3083
  %v3104 = vsub.f32 %v3046, %v3086
  %v3105 = vsub.f32 %v3051, %v3089
  %v3106 = vsub.f32 %v3056, %v3092
  %v3107 = vsub.f32 %v3061, %v3095
  %v3108 = vsub.f32 %v3066, %v3098
  %v3109 = vmul.f32 %v3099, 1.442695
  %v3110 = vpow.pop %v3109
  %v3111 = vmul.f32 %v3100, 1.442695
  %v3112 = vpow.pop %v3111
  %v3113 = vmul.f32 %v3101, 1.442695
  %v3114 = vpow.pop %v3113
  %v3115 = vmul.f32 %v3102, 1.442695
  %v3116 = vpow.pop %v3115
  %v3117 = vmul.f32 %v3103, 1.442695
  %v3118 = vpow.pop %v3117
  %v3119 = vmul.f32 %v3104, 1.442695
  %v3120 = vpow.pop %v3119
  %v3121 = vmul.f32 %v3105, 1.442695
  %v3122 = vpow.pop %v3121
  %v3123 = vmul.f32 %v3106, 1.442695
  %v3124 = vpow.pop %v3123
  %v3125 = vmul.f32 %v3107, 1.442695
  %v3126 = vpow.pop %v3125
  %v3127 = vmul.f32 %v3108, 1.442695
  %v3128 = vpow.pop %v3127
  %v3129 = vsel %vm1007, %v3110, 0.0
  %3130 = vadd.xlane.f32.xlu0 %v3129
  %v3131 = vpop.xlane.xlu0 %3130
  %v3132 = vsel %vm1007, %v3112, 0.0
  %3133 = vadd.xlane.f32.xlu0 %v3132
  %v3134 = vpop.xlane.xlu0 %3133
  %v3135 = vsel %vm1007, %v3114, 0.0
  %3136 = vadd.xlane.f32.xlu0 %v3135
  %v3137 = vpop.xlane.xlu0 %3136
  %v3138 = vsel %vm1007, %v3116, 0.0
  %3139 = vadd.xlane.f32.xlu0 %v3138
  %v3140 = vpop.xlane.xlu0 %3139
  %v3141 = vsel %vm1007, %v3118, 0.0
  %3142 = vadd.xlane.f32.xlu0 %v3141
  %v3143 = vpop.xlane.xlu0 %3142
  %v3144 = vsel %vm1007, %v3120, 0.0
  %3145 = vadd.xlane.f32.xlu0 %v3144
  %v3146 = vpop.xlane.xlu0 %3145
  %v3147 = vsel %vm1007, %v3122, 0.0
  %3148 = vadd.xlane.f32.xlu0 %v3147
  %v3149 = vpop.xlane.xlu0 %3148
  %v3150 = vsel %vm1007, %v3124, 0.0
  %3151 = vadd.xlane.f32.xlu0 %v3150
  %v3152 = vpop.xlane.xlu0 %3151
  %v3153 = vsel %vm1007, %v3126, 0.0
  %3154 = vadd.xlane.f32.xlu0 %v3153
  %v3155 = vpop.xlane.xlu0 %3154
  %v3156 = vsel %vm1007, %v3128, 0.0
  %3157 = vadd.xlane.f32.xlu0 %v3156
  %v3158 = vpop.xlane.xlu0 %3157
  %v3159 = vrcp.pop %v3131
  %v3160 = vmul.f32 %v3110, %v3159
  %v3161 = vrcp.pop %v3134
  %v3162 = vmul.f32 %v3112, %v3161
  %v3163 = vrcp.pop %v3137
  %v3164 = vmul.f32 %v3114, %v3163
  %v3165 = vrcp.pop %v3140
  %v3166 = vmul.f32 %v3116, %v3165
  %v3167 = vrcp.pop %v3143
  %v3168 = vmul.f32 %v3118, %v3167
  %v3169 = vrcp.pop %v3146
  %v3170 = vmul.f32 %v3120, %v3169
  %v3171 = vrcp.pop %v3149
  %v3172 = vmul.f32 %v3122, %v3171
  %v3173 = vrcp.pop %v3152
  %v3174 = vmul.f32 %v3124, %v3173
  %v3175 = vrcp.pop %v3155
  %v3176 = vmul.f32 %v3126, %v3175
  %v3177 = vrcp.pop %v3158
  %v3178 = vmul.f32 %v3128, %v3177
  %v3180 = vsel %vm1007, %v3160, 0
  %v3183 = vsel %vm1007, %v3162, 0
  %v3186 = vsel %vm1007, %v3164, 0
  %v3189 = vsel %vm1007, %v3166, 0
  %v3192 = vsel %vm1007, %v3168, 0
  %v3195 = vsel %vm1007, %v3170, 0
  %v3198 = vsel %vm1007, %v3172, 0
  %v3201 = vsel %vm1007, %v3174, 0
  %v3204 = vsel %vm1007, %v3176, 0
  %v3207 = vsel %vm1007, %v3178, 0
  %3209 = vmatprep.subr.mxu0 0.0
  %3210 = vmatpush1.msra.mxu0 %v2818
  %3211 = vmatprep.subr.mxu0 0.0
  %3212 = vmatpush1.msra.mxu0 %v2824
  %3213 = vmatprep.subr.mxu0 0.0
  %3214 = vmatpush1.msra.mxu0 %v2830
  %3215 = vmatprep.subr.mxu0 0.0
  %3216 = vmatpush1.msra.mxu0 %v2836
  %3217 = vmatprep.subr.mxu0 0.0
  %3218 = vmatpush1.msra.mxu0 %v2842
  %3219 = vmatprep.subr.mxu0 0.0
  %3220 = vmatpush1.msra.mxu0 %v2848
  %3221 = vmatprep.subr.mxu0 0.0
  %3222 = vmatpush1.msra.mxu0 %v2854
  %3223 = vmatprep.subr.mxu0 0.0
  %3224 = vmatpush1.msra.mxu0 %v2860
  %3225 = vmatprep.subr.mxu0 0.0
  %3226 = vmatpush1.msra.mxu0 %v2866
  %3227 = vmatprep.subr.mxu0 0.0
  %3228 = vmatpush1.msra.mxu0 %v2872
  %3229 = vmatprep.subr.mxu0 0.0
  %3230 = vmatpush1.msra.mxu0 0.0
  %3231 = vmatprep.subr.mxu0 0.0
  %3232 = vmatpush1.msra.mxu0 0.0
  %3233 = vmatprep.subr.mxu0 0.0
  %3234 = vmatpush1.msra.mxu0 0.0
  %3235 = vmatprep.subr.mxu0 0.0
  %3236 = vmatpush1.msra.mxu0 0.0
  %3237 = vmatprep.subr.mxu0 0.0
  %3238 = vmatpush1.msra.mxu0 0.0
  %3239 = vmatprep.subr.mxu0 0.0
  %3240 = vmatpush1.msra.mxu0 0.0
  %3241 = vmatprep.subr.mxu0 0.0
  %3242 = vmatpush1.msra.mxu0 0.0
  %3243 = vmatprep.subr.mxu0 0.0
  %3244 = vmatpush1.msra.mxu0 0.0
  %3245 = vmatprep.subr.mxu0 0.0
  %3246 = vmatpush1.msra.mxu0 0.0
  %3247 = vmatprep.subr.mxu0 0.0
  %3248 = vmatpush1.msra.mxu0 0.0
  %3249 = vmatprep.subr.mxu0 0.0
  %3250 = vmatpush1.msra.mxu0 0.0
  %3251 = vmatprep.subr.mxu0 0.0
  %3252 = vmatpush1.msra.mxu0 0.0
  %3253 = vmatprep.subr.mxu0 0.0
  %3254 = vmatpush1.msra.mxu0 0.0
  %3255 = vmatprep.subr.mxu0 0.0
  %3256 = vmatpush1.msra.mxu0 0.0
  %3257 = vmatprep.subr.mxu0 0.0
  %3258 = vmatpush1.msra.mxu0 0.0
  %3259 = vmatprep.subr.mxu0 0.0
  %3260 = vmatpush1.msra.mxu0 0.0
  %3261 = vmatprep.subr.mxu0 0.0
  %3262 = vmatpush1.msra.mxu0 0.0
  %3263 = vmatprep.subr.mxu0 0.0
  %3264 = vmatpush1.msra.mxu0 0.0
  %3265 = vmatprep.subr.mxu0 0.0
  %3266 = vmatpush1.msra.mxu0 0.0
  %3267 = vmatprep.subr.mxu0 0.0
  %3268 = vmatpush1.msra.mxu0 0.0
  %3269 = vmatprep.subr.mxu0 0.0
  %3270 = vmatpush1.msra.mxu0 0.0
  %3271 = vmatprep.subr.mxu0 0.0
  %3272 = vmatpush1.msra.mxu0 0.0
  %3273 = vmatprep.mubr.f32.mxu0 0.0
  %3274 = vmatmul.mubr.f32.gmra.mrb[0].mxu0 %v3180
  %v3275 = vpop.f32.mrb[0].mxu0
  %v3276 = vadd.f32 0.0, %v3275
  %v3277 = vpop.f32.mrb[0].mxu0
  %3278 = vmatprep.mubr.f32.mxu0 0.0
  %3279 = vmatmul.mubr.f32.gmra.mrb[0].mxu0 %v3183
  %v3280 = vpop.f32.mrb[0].mxu0
  %v3281 = vadd.f32 0.0, %v3280
  %v3282 = vpop.f32.mrb[0].mxu0
  %3283 = vmatprep.mubr.f32.mxu0 0.0
  %3284 = vmatmul.mubr.f32.gmra.mrb[0].mxu0 %v3186
  %v3285 = vpop.f32.mrb[0].mxu0
  %v3286 = vadd.f32 0.0, %v3285
  %v3287 = vpop.f32.mrb[0].mxu0
  %3288 = vmatprep.mubr.f32.mxu0 0.0
  %3289 = vmatmul.mubr.f32.gmra.mrb[0].mxu0 %v3189
  %v3290 = vpop.f32.mrb[0].mxu0
  %v3291 = vadd.f32 0.0, %v3290
  %v3292 = vpop.f32.mrb[0].mxu0
  %3293 = vmatprep.mubr.f32.mxu0 0.0
  %3294 = vmatmul.mubr.f32.gmra.mrb[0].mxu0 %v3192
  %v3295 = vpop.f32.mrb[0].mxu0
  %v3296 = vadd.f32 0.0, %v3295
  %v3297 = vpop.f32.mrb[0].mxu0
  %3298 = vmatprep.mubr.f32.mxu0 0.0
  %3299 = vmatmul.mubr.f32.gmra.mrb[0].mxu0 %v3195
  %v3300 = vpop.f32.mrb[0].mxu0
  %v3301 = vadd.f32 0.0, %v3300
  %v3302 = vpop.f32.mrb[0].mxu0
  %3303 = vmatprep.mubr.f32.mxu0 0.0
  %3304 = vmatmul.mubr.f32.gmra.mrb[0].mxu0 %v3198
  %v3305 = vpop.f32.mrb[0].mxu0
  %v3306 = vadd.f32 0.0, %v3305
  %v3307 = vpop.f32.mrb[0].mxu0
  %3308 = vmatprep.mubr.f32.mxu0 0.0
  %3309 = vmatmul.mubr.f32.gmra.mrb[0].mxu0 %v3201
  %v3310 = vpop.f32.mrb[0].mxu0
  %v3311 = vadd.f32 0.0, %v3310
  %v3312 = vpop.f32.mrb[0].mxu0
  %3313 = vmatprep.mubr.f32.mxu0 0.0
  %3314 = vmatmul.mubr.f32.gmra.mrb[0].mxu0 %v3204
  %v3315 = vpop.f32.mrb[0].mxu0
  %v3316 = vadd.f32 0.0, %v3315
  %v3317 = vpop.f32.mrb[0].mxu0
  %3318 = vmatprep.mubr.f32.mxu0 0.0
  %3319 = vmatmul.mubr.f32.gmra.mrb[0].mxu0 %v3207
  %v3320 = vpop.f32.mrb[0].mxu0
  %v3321 = vadd.f32 0.0, %v3320
  %v3322 = vpop.f32.mrb[0].mxu0
  %3323 = vdwg.mxu0
  %3324 = vrot.lane.b32.xlu0 %v2874, 96
  %v3325 = vpop.permute.xlu0 %3324
  %3326 = vrot.lane.b32.xlu0 %v2875, 96
  %v3327 = vpop.permute.xlu0 %3326
  %3328 = vrot.lane.b32.xlu0 %v2876, 96
  %v3329 = vpop.permute.xlu0 %3328
  %3330 = vrot.lane.b32.xlu0 %v2877, 96
  %v3331 = vpop.permute.xlu0 %3330
  %3332 = vrot.lane.b32.xlu0 %v2878, 96
  %v3333 = vpop.permute.xlu0 %3332
  %3334 = vrot.lane.b32.xlu0 %v2879, 96
  %v3335 = vpop.permute.xlu0 %3334
  %3336 = vrot.lane.b32.xlu0 %v2880, 96
  %v3337 = vpop.permute.xlu0 %3336
  %3338 = vrot.lane.b32.xlu0 %v2881, 96
  %v3339 = vpop.permute.xlu0 %3338
  %3340 = vrot.lane.b32.xlu0 %v2882, 96
  %v3341 = vpop.permute.xlu0 %3340
  %3342 = vrot.lane.b32.xlu0 %v2883, 96
  %v3343 = vpop.permute.xlu0 %3342
  %3344 = vrot.lane.b32.xlu0 %v2874, 32
  %v3345 = vpop.permute.xlu0 %3344
  %3346 = vrot.lane.b32.xlu0 %v2875, 32
  %v3347 = vpop.permute.xlu0 %3346
  %3348 = vrot.lane.b32.xlu0 %v2876, 32
  %v3349 = vpop.permute.xlu0 %3348
  %3350 = vrot.lane.b32.xlu0 %v2877, 32
  %v3351 = vpop.permute.xlu0 %3350
  %3352 = vrot.lane.b32.xlu0 %v2878, 32
  %v3353 = vpop.permute.xlu0 %3352
  %3354 = vrot.lane.b32.xlu0 %v2879, 32
  %v3355 = vpop.permute.xlu0 %3354
  %3356 = vrot.lane.b32.xlu0 %v2880, 32
  %v3357 = vpop.permute.xlu0 %3356
  %3358 = vrot.lane.b32.xlu0 %v2881, 32
  %v3359 = vpop.permute.xlu0 %3358
  %3360 = vrot.lane.b32.xlu0 %v2882, 32
  %v3361 = vpop.permute.xlu0 %3360
  %3362 = vrot.lane.b32.xlu0 %v2883, 32
  %v3363 = vpop.permute.xlu0 %3362
  %v3364 = vsel %vm215, %v3325, 0
  %v3366 = vsel %vm215, %v3327, 0
  %v3368 = vsel %vm215, %v3329, 0
  %v3370 = vsel %vm215, %v3331, 0
  %v3372 = vsel %vm215, %v3333, 0
  %v3374 = vsel %vm215, %v3335, 0
  %v3376 = vsel %vm215, %v3337, 0
  %v3378 = vsel %vm215, %v3339, 0
  %v3380 = vsel %vm215, %v3341, 0
  %v3382 = vsel %vm215, %v3343, 0
  %v3384 = vsel %vm215, %v3345, 0
  %v3386 = vsel %vm215, %v3347, 0
  %v3388 = vsel %vm215, %v3349, 0
  %v3390 = vsel %vm215, %v3351, 0
  %v3392 = vsel %vm215, %v3353, 0
  %v3394 = vsel %vm215, %v3355, 0
  %v3396 = vsel %vm215, %v3357, 0
  %v3398 = vsel %vm215, %v3359, 0
  %v3400 = vsel %vm215, %v3361, 0
  %v3402 = vsel %vm215, %v3363, 0
  %3404 = vmatprep.subr.mxu0 0.0
  %3405 = vmatpush1.xpose.msra.mxu0 %v3384
  %3406 = vmatprep.subr.mxu0 0.0
  %3407 = vmatpush1.xpose.msra.mxu0 %v3386
  %3408 = vmatprep.subr.mxu0 0.0
  %3409 = vmatpush1.xpose.msra.mxu0 %v3388
  %3410 = vmatprep.subr.mxu0 0.0
  %3411 = vmatpush1.xpose.msra.mxu0 %v3390
  %3412 = vmatprep.subr.mxu0 0.0
  %3413 = vmatpush1.xpose.msra.mxu0 %v3392
  %3414 = vmatprep.subr.mxu0 0.0
  %3415 = vmatpush1.xpose.msra.mxu0 %v3394
  %3416 = vmatprep.subr.mxu0 0.0
  %3417 = vmatpush1.xpose.msra.mxu0 %v3396
  %3418 = vmatprep.subr.mxu0 0.0
  %3419 = vmatpush1.xpose.msra.mxu0 %v3398
  %3420 = vmatprep.subr.mxu0 0.0
  %3421 = vmatpush1.xpose.msra.mxu0 %v3400
  %3422 = vmatprep.subr.mxu0 0.0
  %3423 = vmatpush1.xpose.msra.mxu0 %v3402
  %3424 = vmatprep.subr.mxu0 0.0
  %3425 = vmatpush1.xpose.msra.mxu0 0.0
  %3426 = vmatprep.subr.mxu0 0.0
  %3427 = vmatpush1.xpose.msra.mxu0 0.0
  %3428 = vmatprep.subr.mxu0 0.0
  %3429 = vmatpush1.xpose.msra.mxu0 0.0
  %3430 = vmatprep.subr.mxu0 0.0
  %3431 = vmatpush1.xpose.msra.mxu0 0.0
  %3432 = vmatprep.subr.mxu0 0.0
  %3433 = vmatpush1.xpose.msra.mxu0 0.0
  %3434 = vmatprep.subr.mxu0 0.0
  %3435 = vmatpush1.xpose.msra.mxu0 0.0
  %3436 = vmatprep.subr.mxu0 0.0
  %3437 = vmatpush1.xpose.msra.mxu0 0.0
  %3438 = vmatprep.subr.mxu0 0.0
  %3439 = vmatpush1.xpose.msra.mxu0 0.0
  %3440 = vmatprep.subr.mxu0 0.0
  %3441 = vmatpush1.xpose.msra.mxu0 0.0
  %3442 = vmatprep.subr.mxu0 0.0
  %3443 = vmatpush1.xpose.msra.mxu0 0.0
  %3444 = vmatprep.subr.mxu0 0.0
  %3445 = vmatpush1.xpose.msra.mxu0 0.0
  %3446 = vmatprep.subr.mxu0 0.0
  %3447 = vmatpush1.xpose.msra.mxu0 0.0
  %3448 = vmatprep.subr.mxu0 0.0
  %3449 = vmatpush1.xpose.msra.mxu0 0.0
  %3450 = vmatprep.subr.mxu0 0.0
  %3451 = vmatpush1.xpose.msra.mxu0 0.0
  %3452 = vmatprep.subr.mxu0 0.0
  %3453 = vmatpush1.xpose.msra.mxu0 0.0
  %3454 = vmatprep.subr.mxu0 0.0
  %3455 = vmatpush1.xpose.msra.mxu0 0.0
  %3456 = vmatprep.subr.mxu0 0.0
  %3457 = vmatpush1.xpose.msra.mxu0 0.0
  %3458 = vmatprep.subr.mxu0 0.0
  %3459 = vmatpush1.xpose.msra.mxu0 0.0
  %3460 = vmatprep.subr.mxu0 0.0
  %3461 = vmatpush1.xpose.msra.mxu0 0.0
  %3462 = vmatprep.subr.mxu0 0.0
  %3463 = vmatpush1.xpose.msra.mxu0 0.0
  %3464 = vmatprep.subr.mxu0 0.0
  %3465 = vmatpush1.xpose.msra.mxu0 0.0
  %3466 = vmatprep.subr.mxu0 0.0
  %3467 = vmatpush1.xpose.msra.mxu0 0.0
  %3468 = vmatprep.mubr.f32.mxu0 0.0
  %3469 = vmatmul.mubr.f32.gmra.mrb[0].mxu0 %v3364
  %v3470 = vpop.f32.mrb[0].mxu0
  %v3471 = vadd.f32 %v604, %v3470
  %v3472 = vpop.f32.mrb[0].mxu0
  %3473 = vmatprep.mubr.f32.mxu0 0.0
  %3474 = vmatmul.mubr.f32.gmra.mrb[0].mxu0 %v3366
  %v3475 = vpop.f32.mrb[0].mxu0
  %v3476 = vadd.f32 %v605, %v3475
  %v3477 = vpop.f32.mrb[0].mxu0
  %3478 = vmatprep.mubr.f32.mxu0 0.0
  %3479 = vmatmul.mubr.f32.gmra.mrb[0].mxu0 %v3368
  %v3480 = vpop.f32.mrb[0].mxu0
  %v3481 = vadd.f32 %v606, %v3480
  %v3482 = vpop.f32.mrb[0].mxu0
  %3483 = vmatprep.mubr.f32.mxu0 0.0
  %3484 = vmatmul.mubr.f32.gmra.mrb[0].mxu0 %v3370
  %v3485 = vpop.f32.mrb[0].mxu0
  %v3486 = vadd.f32 %v607, %v3485
  %v3487 = vpop.f32.mrb[0].mxu0
  %3488 = vmatprep.mubr.f32.mxu0 0.0
  %3489 = vmatmul.mubr.f32.gmra.mrb[0].mxu0 %v3372
  %v3490 = vpop.f32.mrb[0].mxu0
  %v3491 = vadd.f32 %v608, %v3490
  %v3492 = vpop.f32.mrb[0].mxu0
  %3493 = vmatprep.mubr.f32.mxu0 0.0
  %3494 = vmatmul.mubr.f32.gmra.mrb[0].mxu0 %v3374
  %v3495 = vpop.f32.mrb[0].mxu0
  %v3496 = vadd.f32 %v609, %v3495
  %v3497 = vpop.f32.mrb[0].mxu0
  %3498 = vmatprep.mubr.f32.mxu0 0.0
  %3499 = vmatmul.mubr.f32.gmra.mrb[0].mxu0 %v3376
  %v3500 = vpop.f32.mrb[0].mxu0
  %v3501 = vadd.f32 %v610, %v3500
  %v3502 = vpop.f32.mrb[0].mxu0
  %3503 = vmatprep.mubr.f32.mxu0 0.0
  %3504 = vmatmul.mubr.f32.gmra.mrb[0].mxu0 %v3378
  %v3505 = vpop.f32.mrb[0].mxu0
  %v3506 = vadd.f32 %v611, %v3505
  %v3507 = vpop.f32.mrb[0].mxu0
  %3508 = vmatprep.mubr.f32.mxu0 0.0
  %3509 = vmatmul.mubr.f32.gmra.mrb[0].mxu0 %v3380
  %v3510 = vpop.f32.mrb[0].mxu0
  %v3511 = vadd.f32 %v612, %v3510
  %v3512 = vpop.f32.mrb[0].mxu0
  %3513 = vmatprep.mubr.f32.mxu0 0.0
  %3514 = vmatmul.mubr.f32.gmra.mrb[0].mxu0 %v3382
  %v3515 = vpop.f32.mrb[0].mxu0
  %v3516 = vadd.f32 %v613, %v3515
  %v3517 = vpop.f32.mrb[0].mxu0
  %3518 = vdwg.mxu0
  %v3519 = vsel %vm1007, %v3471, -inf
  %3520 = vmax.xlane.f32.xlu0 %v3519
  %v3521 = vpop.xlane.xlu0 %3520
  %v3522 = vsel %vm1007, %v3476, -inf
  %3523 = vmax.xlane.f32.xlu0 %v3522
  %v3524 = vpop.xlane.xlu0 %3523
  %v3525 = vsel %vm1007, %v3481, -inf
  %3526 = vmax.xlane.f32.xlu0 %v3525
  %v3527 = vpop.xlane.xlu0 %3526
  %v3528 = vsel %vm1007, %v3486, -inf
  %3529 = vmax.xlane.f32.xlu0 %v3528
  %v3530 = vpop.xlane.xlu0 %3529
  %v3531 = vsel %vm1007, %v3491, -inf
  %3532 = vmax.xlane.f32.xlu0 %v3531
  %v3533 = vpop.xlane.xlu0 %3532
  %v3534 = vsel %vm1007, %v3496, -inf
  %3535 = vmax.xlane.f32.xlu0 %v3534
  %v3536 = vpop.xlane.xlu0 %3535
  %v3537 = vsel %vm1007, %v3501, -inf
  %3538 = vmax.xlane.f32.xlu0 %v3537
  %v3539 = vpop.xlane.xlu0 %3538
  %v3540 = vsel %vm1007, %v3506, -inf
  %3541 = vmax.xlane.f32.xlu0 %v3540
  %v3542 = vpop.xlane.xlu0 %3541
  %v3543 = vsel %vm1007, %v3511, -inf
  %3544 = vmax.xlane.f32.xlu0 %v3543
  %v3545 = vpop.xlane.xlu0 %3544
  %v3546 = vsel %vm1007, %v3516, -inf
  %3547 = vmax.xlane.f32.xlu0 %v3546
  %v3548 = vpop.xlane.xlu0 %3547
  %v3549 = vsub.f32 %v3471, %v3521
  %v3550 = vsub.f32 %v3476, %v3524
  %v3551 = vsub.f32 %v3481, %v3527
  %v3552 = vsub.f32 %v3486, %v3530
  %v3553 = vsub.f32 %v3491, %v3533
  %v3554 = vsub.f32 %v3496, %v3536
  %v3555 = vsub.f32 %v3501, %v3539
  %v3556 = vsub.f32 %v3506, %v3542
  %v3557 = vsub.f32 %v3511, %v3545
  %v3558 = vsub.f32 %v3516, %v3548
  %v3559 = vmul.f32 %v3549, 1.442695
  %v3560 = vpow.pop %v3559
  %v3561 = vmul.f32 %v3550, 1.442695
  %v3562 = vpow.pop %v3561
  %v3563 = vmul.f32 %v3551, 1.442695
  %v3564 = vpow.pop %v3563
  %v3565 = vmul.f32 %v3552, 1.442695
  %v3566 = vpow.pop %v3565
  %v3567 = vmul.f32 %v3553, 1.442695
  %v3568 = vpow.pop %v3567
  %v3569 = vmul.f32 %v3554, 1.442695
  %v3570 = vpow.pop %v3569
  %v3571 = vmul.f32 %v3555, 1.442695
  %v3572 = vpow.pop %v3571
  %v3573 = vmul.f32 %v3556, 1.442695
  %v3574 = vpow.pop %v3573
  %v3575 = vmul.f32 %v3557, 1.442695
  %v3576 = vpow.pop %v3575
  %v3577 = vmul.f32 %v3558, 1.442695
  %v3578 = vpow.pop %v3577
  %v3579 = vsel %vm1007, %v3560, 0.0
  %3580 = vadd.xlane.f32.xlu0 %v3579
  %v3581 = vpop.xlane.xlu0 %3580
  %v3582 = vsel %vm1007, %v3562, 0.0
  %3583 = vadd.xlane.f32.xlu0 %v3582
  %v3584 = vpop.xlane.xlu0 %3583
  %v3585 = vsel %vm1007, %v3564, 0.0
  %3586 = vadd.xlane.f32.xlu0 %v3585
  %v3587 = vpop.xlane.xlu0 %3586
  %v3588 = vsel %vm1007, %v3566, 0.0
  %3589 = vadd.xlane.f32.xlu0 %v3588
  %v3590 = vpop.xlane.xlu0 %3589
  %v3591 = vsel %vm1007, %v3568, 0.0
  %3592 = vadd.xlane.f32.xlu0 %v3591
  %v3593 = vpop.xlane.xlu0 %3592
  %v3594 = vsel %vm1007, %v3570, 0.0
  %3595 = vadd.xlane.f32.xlu0 %v3594
  %v3596 = vpop.xlane.xlu0 %3595
  %v3597 = vsel %vm1007, %v3572, 0.0
  %3598 = vadd.xlane.f32.xlu0 %v3597
  %v3599 = vpop.xlane.xlu0 %3598
  %v3600 = vsel %vm1007, %v3574, 0.0
  %3601 = vadd.xlane.f32.xlu0 %v3600
  %v3602 = vpop.xlane.xlu0 %3601
  %v3603 = vsel %vm1007, %v3576, 0.0
  %3604 = vadd.xlane.f32.xlu0 %v3603
  %v3605 = vpop.xlane.xlu0 %3604
  %v3606 = vsel %vm1007, %v3578, 0.0
  %3607 = vadd.xlane.f32.xlu0 %v3606
  %v3608 = vpop.xlane.xlu0 %3607
  %v3609 = vrcp.pop %v3581
  %v3610 = vmul.f32 %v3560, %v3609
  %v3611 = vrcp.pop %v3584
  %v3612 = vmul.f32 %v3562, %v3611
  %v3613 = vrcp.pop %v3587
  %v3614 = vmul.f32 %v3564, %v3613
  %v3615 = vrcp.pop %v3590
  %v3616 = vmul.f32 %v3566, %v3615
  %v3617 = vrcp.pop %v3593
  %v3618 = vmul.f32 %v3568, %v3617
  %v3619 = vrcp.pop %v3596
  %v3620 = vmul.f32 %v3570, %v3619
  %v3621 = vrcp.pop %v3599
  %v3622 = vmul.f32 %v3572, %v3621
  %v3623 = vrcp.pop %v3602
  %v3624 = vmul.f32 %v3574, %v3623
  %v3625 = vrcp.pop %v3605
  %v3626 = vmul.f32 %v3576, %v3625
  %v3627 = vrcp.pop %v3608
  %v3628 = vmul.f32 %v3578, %v3627
  %3639 = vrot.lane.b32.xlu0 %v2818, 96
  %v3640 = vpop.permute.xlu0 %3639
  %3641 = vrot.lane.b32.xlu0 %v2824, 96
  %v3642 = vpop.permute.xlu0 %3641
  %3643 = vrot.lane.b32.xlu0 %v2830, 96
  %v3644 = vpop.permute.xlu0 %3643
  %3645 = vrot.lane.b32.xlu0 %v2836, 96
  %v3646 = vpop.permute.xlu0 %3645
  %3647 = vrot.lane.b32.xlu0 %v2842, 96
  %v3648 = vpop.permute.xlu0 %3647
  %3649 = vrot.lane.b32.xlu0 %v2848, 96
  %v3650 = vpop.permute.xlu0 %3649
  %3651 = vrot.lane.b32.xlu0 %v2854, 96
  %v3652 = vpop.permute.xlu0 %3651
  %3653 = vrot.lane.b32.xlu0 %v2860, 96
  %v3654 = vpop.permute.xlu0 %3653
  %3655 = vrot.lane.b32.xlu0 %v2866, 96
  %v3656 = vpop.permute.xlu0 %3655
  %3657 = vrot.lane.b32.xlu0 %v2872, 96
  %v3658 = vpop.permute.xlu0 %3657
  %v3670 = vsel %vm1007, %v3610, 0
  %v3673 = vsel %vm1007, %v3612, 0
  %v3676 = vsel %vm1007, %v3614, 0
  %v3679 = vsel %vm1007, %v3616, 0
  %v3682 = vsel %vm1007, %v3618, 0
  %v3685 = vsel %vm1007, %v3620, 0
  %v3688 = vsel %vm1007, %v3622, 0
  %v3691 = vsel %vm1007, %v3624, 0
  %v3694 = vsel %vm1007, %v3626, 0
  %v3697 = vsel %vm1007, %v3628, 0
  %3699 = vmatprep.subr.mxu0 0.0
  %3700 = vmatpush1.msra.mxu0 %v3640
  %3701 = vmatprep.subr.mxu0 0.0
  %3702 = vmatpush1.msra.mxu0 %v3642
  %3703 = vmatprep.subr.mxu0 0.0
  %3704 = vmatpush1.msra.mxu0 %v3644
  %3705 = vmatprep.subr.mxu0 0.0
  %3706 = vmatpush1.msra.mxu0 %v3646
  %3707 = vmatprep.subr.mxu0 0.0
  %3708 = vmatpush1.msra.mxu0 %v3648
  %3709 = vmatprep.subr.mxu0 0.0
  %3710 = vmatpush1.msra.mxu0 %v3650
  %3711 = vmatprep.subr.mxu0 0.0
  %3712 = vmatpush1.msra.mxu0 %v3652
  %3713 = vmatprep.subr.mxu0 0.0
  %3714 = vmatpush1.msra.mxu0 %v3654
  %3715 = vmatprep.subr.mxu0 0.0
  %3716 = vmatpush1.msra.mxu0 %v3656
  %3717 = vmatprep.subr.mxu0 0.0
  %3718 = vmatpush1.msra.mxu0 %v3658
  %3719 = vmatprep.subr.mxu0 0.0
  %3720 = vmatpush1.msra.mxu0 0.0
  %3721 = vmatprep.subr.mxu0 0.0
  %3722 = vmatpush1.msra.mxu0 0.0
  %3723 = vmatprep.subr.mxu0 0.0
  %3724 = vmatpush1.msra.mxu0 0.0
  %3725 = vmatprep.subr.mxu0 0.0
  %3726 = vmatpush1.msra.mxu0 0.0
  %3727 = vmatprep.subr.mxu0 0.0
  %3728 = vmatpush1.msra.mxu0 0.0
  %3729 = vmatprep.subr.mxu0 0.0
  %3730 = vmatpush1.msra.mxu0 0.0
  %3731 = vmatprep.subr.mxu0 0.0
  %3732 = vmatpush1.msra.mxu0 0.0
  %3733 = vmatprep.subr.mxu0 0.0
  %3734 = vmatpush1.msra.mxu0 0.0
  %3735 = vmatprep.subr.mxu0 0.0
  %3736 = vmatpush1.msra.mxu0 0.0
  %3737 = vmatprep.subr.mxu0 0.0
  %3738 = vmatpush1.msra.mxu0 0.0
  %3739 = vmatprep.subr.mxu0 0.0
  %3740 = vmatpush1.msra.mxu0 0.0
  %3741 = vmatprep.subr.mxu0 0.0
  %3742 = vmatpush1.msra.mxu0 0.0
  %3743 = vmatprep.subr.mxu0 0.0
  %3744 = vmatpush1.msra.mxu0 0.0
  %3745 = vmatprep.subr.mxu0 0.0
  %3746 = vmatpush1.msra.mxu0 0.0
  %3747 = vmatprep.subr.mxu0 0.0
  %3748 = vmatpush1.msra.mxu0 0.0
  %3749 = vmatprep.subr.mxu0 0.0
  %3750 = vmatpush1.msra.mxu0 0.0
  %3751 = vmatprep.subr.mxu0 0.0
  %3752 = vmatpush1.msra.mxu0 0.0
  %3753 = vmatprep.subr.mxu0 0.0
  %3754 = vmatpush1.msra.mxu0 0.0
  %3755 = vmatprep.subr.mxu0 0.0
  %3756 = vmatpush1.msra.mxu0 0.0
  %3757 = vmatprep.subr.mxu0 0.0
  %3758 = vmatpush1.msra.mxu0 0.0
  %3759 = vmatprep.subr.mxu0 0.0
  %3760 = vmatpush1.msra.mxu0 0.0
  %3761 = vmatprep.subr.mxu0 0.0
  %3762 = vmatpush1.msra.mxu0 0.0
  %3763 = vmatprep.mubr.f32.mxu0 0.0
  %3764 = vmatmul.mubr.f32.gmra.mrb[0].mxu0 %v3670
  %v3765 = vpop.f32.mrb[0].mxu0
  %v3766 = vadd.f32 0.0, %v3765
  %v3767 = vpop.f32.mrb[0].mxu0
  %3768 = vmatprep.mubr.f32.mxu0 0.0
  %3769 = vmatmul.mubr.f32.gmra.mrb[0].mxu0 %v3673
  %v3770 = vpop.f32.mrb[0].mxu0
  %v3771 = vadd.f32 0.0, %v3770
  %v3772 = vpop.f32.mrb[0].mxu0
  %3773 = vmatprep.mubr.f32.mxu0 0.0
  %3774 = vmatmul.mubr.f32.gmra.mrb[0].mxu0 %v3676
  %v3775 = vpop.f32.mrb[0].mxu0
  %v3776 = vadd.f32 0.0, %v3775
  %v3777 = vpop.f32.mrb[0].mxu0
  %3778 = vmatprep.mubr.f32.mxu0 0.0
  %3779 = vmatmul.mubr.f32.gmra.mrb[0].mxu0 %v3679
  %v3780 = vpop.f32.mrb[0].mxu0
  %v3781 = vadd.f32 0.0, %v3780
  %v3782 = vpop.f32.mrb[0].mxu0
  %3783 = vmatprep.mubr.f32.mxu0 0.0
  %3784 = vmatmul.mubr.f32.gmra.mrb[0].mxu0 %v3682
  %v3785 = vpop.f32.mrb[0].mxu0
  %v3786 = vadd.f32 0.0, %v3785
  %v3787 = vpop.f32.mrb[0].mxu0
  %3788 = vmatprep.mubr.f32.mxu0 0.0
  %3789 = vmatmul.mubr.f32.gmra.mrb[0].mxu0 %v3685
  %v3790 = vpop.f32.mrb[0].mxu0
  %v3791 = vadd.f32 0.0, %v3790
  %v3792 = vpop.f32.mrb[0].mxu0
  %3793 = vmatprep.mubr.f32.mxu0 0.0
  %3794 = vmatmul.mubr.f32.gmra.mrb[0].mxu0 %v3688
  %v3795 = vpop.f32.mrb[0].mxu0
  %v3796 = vadd.f32 0.0, %v3795
  %v3797 = vpop.f32.mrb[0].mxu0
  %3798 = vmatprep.mubr.f32.mxu0 0.0
  %3799 = vmatmul.mubr.f32.gmra.mrb[0].mxu0 %v3691
  %v3800 = vpop.f32.mrb[0].mxu0
  %v3801 = vadd.f32 0.0, %v3800
  %v3802 = vpop.f32.mrb[0].mxu0
  %3803 = vmatprep.mubr.f32.mxu0 0.0
  %3804 = vmatmul.mubr.f32.gmra.mrb[0].mxu0 %v3694
  %v3805 = vpop.f32.mrb[0].mxu0
  %v3806 = vadd.f32 0.0, %v3805
  %v3807 = vpop.f32.mrb[0].mxu0
  %3808 = vmatprep.mubr.f32.mxu0 0.0
  %3809 = vmatmul.mubr.f32.gmra.mrb[0].mxu0 %v3697
  %v3810 = vpop.f32.mrb[0].mxu0
  %v3811 = vadd.f32 0.0, %v3810
  %v3812 = vpop.f32.mrb[0].mxu0
  %3813 = vdwg.mxu0
  %v3815 = vsel %vm215, %v3766, 0
  %v3818 = vsel %vm215, %v3771, 0
  %v3821 = vsel %vm215, %v3776, 0
  %v3824 = vsel %vm215, %v3781, 0
  %v3827 = vsel %vm215, %v3786, 0
  %v3830 = vsel %vm215, %v3791, 0
  %v3833 = vsel %vm215, %v3796, 0
  %v3836 = vsel %vm215, %v3801, 0
  %v3839 = vsel %vm215, %v3806, 0
  %v3842 = vsel %vm215, %v3811, 0
  %3844 = vmatprep.subr.mxu0 0.0
  %3845 = vmatpush1.msra.mxu0 %v2686
  %3846 = vmatprep.subr.mxu0 0.0
  %3847 = vmatpush1.msra.mxu0 %v2687
  %3848 = vmatprep.subr.mxu0 0.0
  %3849 = vmatpush1.msra.mxu0 %v2688
  %3850 = vmatprep.subr.mxu0 0.0
  %3851 = vmatpush1.msra.mxu0 %v2689
  %3852 = vmatprep.subr.mxu0 0.0
  %3853 = vmatpush1.msra.mxu0 0.0
  %3854 = vmatprep.subr.mxu0 0.0
  %3855 = vmatpush1.msra.mxu0 0.0
  %3856 = vmatprep.subr.mxu0 0.0
  %3857 = vmatpush1.msra.mxu0 0.0
  %3858 = vmatprep.subr.mxu0 0.0
  %3859 = vmatpush1.msra.mxu0 0.0
  %3860 = vmatprep.subr.mxu0 0.0
  %3861 = vmatpush1.msra.mxu0 0.0
  %3862 = vmatprep.subr.mxu0 0.0
  %3863 = vmatpush1.msra.mxu0 0.0
  %3864 = vmatprep.subr.mxu0 0.0
  %3865 = vmatpush1.msra.mxu0 0.0
  %3866 = vmatprep.subr.mxu0 0.0
  %3867 = vmatpush1.msra.mxu0 0.0
  %3868 = vmatprep.subr.mxu0 0.0
  %3869 = vmatpush1.msra.mxu0 0.0
  %3870 = vmatprep.subr.mxu0 0.0
  %3871 = vmatpush1.msra.mxu0 0.0
  %3872 = vmatprep.subr.mxu0 0.0
  %3873 = vmatpush1.msra.mxu0 0.0
  %3874 = vmatprep.subr.mxu0 0.0
  %3875 = vmatpush1.msra.mxu0 0.0
  %3876 = vmatprep.subr.mxu0 0.0
  %3877 = vmatpush1.msra.mxu0 0.0
  %3878 = vmatprep.subr.mxu0 0.0
  %3879 = vmatpush1.msra.mxu0 0.0
  %3880 = vmatprep.subr.mxu0 0.0
  %3881 = vmatpush1.msra.mxu0 0.0
  %3882 = vmatprep.subr.mxu0 0.0
  %3883 = vmatpush1.msra.mxu0 0.0
  %3884 = vmatprep.subr.mxu0 0.0
  %3885 = vmatpush1.msra.mxu0 0.0
  %3886 = vmatprep.subr.mxu0 0.0
  %3887 = vmatpush1.msra.mxu0 0.0
  %3888 = vmatprep.subr.mxu0 0.0
  %3889 = vmatpush1.msra.mxu0 0.0
  %3890 = vmatprep.subr.mxu0 0.0
  %3891 = vmatpush1.msra.mxu0 0.0
  %3892 = vmatprep.subr.mxu0 0.0
  %3893 = vmatpush1.msra.mxu0 0.0
  %3894 = vmatprep.subr.mxu0 0.0
  %3895 = vmatpush1.msra.mxu0 0.0
  %3896 = vmatprep.subr.mxu0 0.0
  %3897 = vmatpush1.msra.mxu0 0.0
  %3898 = vmatprep.subr.mxu0 0.0
  %3899 = vmatpush1.msra.mxu0 0.0
  %3900 = vmatprep.subr.mxu0 0.0
  %3901 = vmatpush1.msra.mxu0 0.0
  %3902 = vmatprep.subr.mxu0 0.0
  %3903 = vmatpush1.msra.mxu0 0.0
  %3904 = vmatprep.subr.mxu0 0.0
  %3905 = vmatpush1.msra.mxu0 0.0
  %3906 = vmatprep.subr.mxu0 0.0
  %3907 = vmatpush1.msra.mxu0 0.0
  %3908 = vmatprep.mubr.f32.mxu0 0.0
  %3909 = vmatmul.mubr.f32.gmra.mrb[0].mxu0 %v3815
  %v3910 = vpop.f32.mrb[0].mxu0
  %v3911 = vadd.f32 0.0, %v3910
  %v3912 = vpop.f32.mrb[0].mxu0
  %3913 = vmatprep.mubr.f32.mxu0 0.0
  %3914 = vmatmul.mubr.f32.gmra.mrb[0].mxu0 %v3818
  %v3915 = vpop.f32.mrb[0].mxu0
  %v3916 = vadd.f32 0.0, %v3915
  %v3917 = vpop.f32.mrb[0].mxu0
  %3918 = vmatprep.mubr.f32.mxu0 0.0
  %3919 = vmatmul.mubr.f32.gmra.mrb[0].mxu0 %v3821
  %v3920 = vpop.f32.mrb[0].mxu0
  %v3921 = vadd.f32 0.0, %v3920
  %v3922 = vpop.f32.mrb[0].mxu0
  %3923 = vmatprep.mubr.f32.mxu0 0.0
  %3924 = vmatmul.mubr.f32.gmra.mrb[0].mxu0 %v3824
  %v3925 = vpop.f32.mrb[0].mxu0
  %v3926 = vadd.f32 0.0, %v3925
  %v3927 = vpop.f32.mrb[0].mxu0
  %3928 = vmatprep.mubr.f32.mxu0 0.0
  %3929 = vmatmul.mubr.f32.gmra.mrb[0].mxu0 %v3827
  %v3930 = vpop.f32.mrb[0].mxu0
  %v3931 = vadd.f32 0.0, %v3930
  %v3932 = vpop.f32.mrb[0].mxu0
  %3933 = vmatprep.mubr.f32.mxu0 0.0
  %3934 = vmatmul.mubr.f32.gmra.mrb[0].mxu0 %v3830
  %v3935 = vpop.f32.mrb[0].mxu0
  %v3936 = vadd.f32 0.0, %v3935
  %v3937 = vpop.f32.mrb[0].mxu0
  %3938 = vmatprep.mubr.f32.mxu0 0.0
  %3939 = vmatmul.mubr.f32.gmra.mrb[0].mxu0 %v3833
  %v3940 = vpop.f32.mrb[0].mxu0
  %v3941 = vadd.f32 0.0, %v3940
  %v3942 = vpop.f32.mrb[0].mxu0
  %3943 = vmatprep.mubr.f32.mxu0 0.0
  %3944 = vmatmul.mubr.f32.gmra.mrb[0].mxu0 %v3836
  %v3945 = vpop.f32.mrb[0].mxu0
  %v3946 = vadd.f32 0.0, %v3945
  %v3947 = vpop.f32.mrb[0].mxu0
  %3948 = vmatprep.mubr.f32.mxu0 0.0
  %3949 = vmatmul.mubr.f32.gmra.mrb[0].mxu0 %v3839
  %v3950 = vpop.f32.mrb[0].mxu0
  %v3951 = vadd.f32 0.0, %v3950
  %v3952 = vpop.f32.mrb[0].mxu0
  %3953 = vmatprep.mubr.f32.mxu0 0.0
  %3954 = vmatmul.mubr.f32.gmra.mrb[0].mxu0 %v3842
  %v3955 = vpop.f32.mrb[0].mxu0
  %v3956 = vadd.f32 0.0, %v3955
  %v3957 = vpop.f32.mrb[0].mxu0
  %3958 = vdwg.mxu0
  %v3960 = vsel %vm215, %v3276, 0
  %v3963 = vsel %vm215, %v3281, 0
  %v3966 = vsel %vm215, %v3286, 0
  %v3969 = vsel %vm215, %v3291, 0
  %v3972 = vsel %vm215, %v3296, 0
  %v3975 = vsel %vm215, %v3301, 0
  %v3978 = vsel %vm215, %v3306, 0
  %v3981 = vsel %vm215, %v3311, 0
  %v3984 = vsel %vm215, %v3316, 0
  %v3987 = vsel %vm215, %v3321, 0
  %3989 = vmatprep.subr.mxu0 0.0
  %3990 = vmatpush1.msra.mxu0 %v2682
  %3991 = vmatprep.subr.mxu0 0.0
  %3992 = vmatpush1.msra.mxu0 %v2683
  %3993 = vmatprep.subr.mxu0 0.0
  %3994 = vmatpush1.msra.mxu0 %v2684
  %3995 = vmatprep.subr.mxu0 0.0
  %3996 = vmatpush1.msra.mxu0 %v2685
  %3997 = vmatprep.subr.mxu0 0.0
  %3998 = vmatpush1.msra.mxu0 0.0
  %3999 = vmatprep.subr.mxu0 0.0
  %4000 = vmatpush1.msra.mxu0 0.0
  %4001 = vmatprep.subr.mxu0 0.0
  %4002 = vmatpush1.msra.mxu0 0.0
  %4003 = vmatprep.subr.mxu0 0.0
  %4004 = vmatpush1.msra.mxu0 0.0
  %4005 = vmatprep.subr.mxu0 0.0
  %4006 = vmatpush1.msra.mxu0 0.0
  %4007 = vmatprep.subr.mxu0 0.0
  %4008 = vmatpush1.msra.mxu0 0.0
  %4009 = vmatprep.subr.mxu0 0.0
  %4010 = vmatpush1.msra.mxu0 0.0
  %4011 = vmatprep.subr.mxu0 0.0
  %4012 = vmatpush1.msra.mxu0 0.0
  %4013 = vmatprep.subr.mxu0 0.0
  %4014 = vmatpush1.msra.mxu0 0.0
  %4015 = vmatprep.subr.mxu0 0.0
  %4016 = vmatpush1.msra.mxu0 0.0
  %4017 = vmatprep.subr.mxu0 0.0
  %4018 = vmatpush1.msra.mxu0 0.0
  %4019 = vmatprep.subr.mxu0 0.0
  %4020 = vmatpush1.msra.mxu0 0.0
  %4021 = vmatprep.subr.mxu0 0.0
  %4022 = vmatpush1.msra.mxu0 0.0
  %4023 = vmatprep.subr.mxu0 0.0
  %4024 = vmatpush1.msra.mxu0 0.0
  %4025 = vmatprep.subr.mxu0 0.0
  %4026 = vmatpush1.msra.mxu0 0.0
  %4027 = vmatprep.subr.mxu0 0.0
  %4028 = vmatpush1.msra.mxu0 0.0
  %4029 = vmatprep.subr.mxu0 0.0
  %4030 = vmatpush1.msra.mxu0 0.0
  %4031 = vmatprep.subr.mxu0 0.0
  %4032 = vmatpush1.msra.mxu0 0.0
  %4033 = vmatprep.subr.mxu0 0.0
  %4034 = vmatpush1.msra.mxu0 0.0
  %4035 = vmatprep.subr.mxu0 0.0
  %4036 = vmatpush1.msra.mxu0 0.0
  %4037 = vmatprep.subr.mxu0 0.0
  %4038 = vmatpush1.msra.mxu0 0.0
  %4039 = vmatprep.subr.mxu0 0.0
  %4040 = vmatpush1.msra.mxu0 0.0
  %4041 = vmatprep.subr.mxu0 0.0
  %4042 = vmatpush1.msra.mxu0 0.0
  %4043 = vmatprep.subr.mxu0 0.0
  %4044 = vmatpush1.msra.mxu0 0.0
  %4045 = vmatprep.subr.mxu0 0.0
  %4046 = vmatpush1.msra.mxu0 0.0
  %4047 = vmatprep.subr.mxu0 0.0
  %4048 = vmatpush1.msra.mxu0 0.0
  %4049 = vmatprep.subr.mxu0 0.0
  %4050 = vmatpush1.msra.mxu0 0.0
  %4051 = vmatprep.subr.mxu0 0.0
  %4052 = vmatpush1.msra.mxu0 0.0
  %4053 = vmatprep.mubr.f32.mxu0 0.0
  %4054 = vmatmul.mubr.f32.gmra.mrb[0].mxu0 %v3960
  %v4055 = vpop.f32.mrb[0].mxu0
  %v4056 = vadd.f32 %v3911, %v4055
  %v4057 = vpop.f32.mrb[0].mxu0
  %4058 = vmatprep.mubr.f32.mxu0 0.0
  %4059 = vmatmul.mubr.f32.gmra.mrb[0].mxu0 %v3963
  %v4060 = vpop.f32.mrb[0].mxu0
  %v4061 = vadd.f32 %v3916, %v4060
  %v4062 = vpop.f32.mrb[0].mxu0
  %4063 = vmatprep.mubr.f32.mxu0 0.0
  %4064 = vmatmul.mubr.f32.gmra.mrb[0].mxu0 %v3966
  %v4065 = vpop.f32.mrb[0].mxu0
  %v4066 = vadd.f32 %v3921, %v4065
  %v4067 = vpop.f32.mrb[0].mxu0
  %4068 = vmatprep.mubr.f32.mxu0 0.0
  %4069 = vmatmul.mubr.f32.gmra.mrb[0].mxu0 %v3969
  %v4070 = vpop.f32.mrb[0].mxu0
  %v4071 = vadd.f32 %v3926, %v4070
  %v4072 = vpop.f32.mrb[0].mxu0
  %4073 = vmatprep.mubr.f32.mxu0 0.0
  %4074 = vmatmul.mubr.f32.gmra.mrb[0].mxu0 %v3972
  %v4075 = vpop.f32.mrb[0].mxu0
  %v4076 = vadd.f32 %v3931, %v4075
  %v4077 = vpop.f32.mrb[0].mxu0
  %4078 = vmatprep.mubr.f32.mxu0 0.0
  %4079 = vmatmul.mubr.f32.gmra.mrb[0].mxu0 %v3975
  %v4080 = vpop.f32.mrb[0].mxu0
  %v4081 = vadd.f32 %v3936, %v4080
  %v4082 = vpop.f32.mrb[0].mxu0
  %4083 = vmatprep.mubr.f32.mxu0 0.0
  %4084 = vmatmul.mubr.f32.gmra.mrb[0].mxu0 %v3978
  %v4085 = vpop.f32.mrb[0].mxu0
  %v4086 = vadd.f32 %v3941, %v4085
  %v4087 = vpop.f32.mrb[0].mxu0
  %4088 = vmatprep.mubr.f32.mxu0 0.0
  %4089 = vmatmul.mubr.f32.gmra.mrb[0].mxu0 %v3981
  %v4090 = vpop.f32.mrb[0].mxu0
  %v4091 = vadd.f32 %v3946, %v4090
  %v4092 = vpop.f32.mrb[0].mxu0
  %4093 = vmatprep.mubr.f32.mxu0 0.0
  %4094 = vmatmul.mubr.f32.gmra.mrb[0].mxu0 %v3984
  %v4095 = vpop.f32.mrb[0].mxu0
  %v4096 = vadd.f32 %v3951, %v4095
  %v4097 = vpop.f32.mrb[0].mxu0
  %4098 = vmatprep.mubr.f32.mxu0 0.0
  %4099 = vmatmul.mubr.f32.gmra.mrb[0].mxu0 %v3987
  %v4100 = vpop.f32.mrb[0].mxu0
  %v4101 = vadd.f32 %v3956, %v4100
  %v4102 = vpop.f32.mrb[0].mxu0
  %4103 = vdwg.mxu0
  %v4104 = vlaneseq
  %v4105 = vshrl.u32 %v4104, 7
  %v4106 = vsub.s32 0, %v4105
  %v4107 = vrot.slane %v2713, %v4106
  %v4108 = vadd.f32 %v4056, %v4107
  %v4109 = vadd.f32 %v4061, %v4107
  %v4110 = vadd.f32 %v4066, %v4107
  %v4111 = vadd.f32 %v4071, %v4107
  %v4112 = vadd.f32 %v4076, %v4107
  %v4113 = vadd.f32 %v4081, %v4107
  %v4114 = vadd.f32 %v4086, %v4107
  %v4115 = vadd.f32 %v4091, %v4107
  %v4116 = vadd.f32 %v4096, %v4107
  %v4117 = vadd.f32 %v4101, %v4107
  %v4118 = vadd.f32 %v4108, %v2662
  %v4119 = vadd.f32 %v4109, %v2663
  %v4120 = vadd.f32 %v4110, %v2664
  %v4121 = vadd.f32 %v4111, %v2665
  %v4122 = vadd.f32 %v4112, %v2666
  %v4123 = vadd.f32 %v4113, %v2667
  %v4124 = vadd.f32 %v4114, %v2668
  %v4125 = vadd.f32 %v4115, %v2669
  %v4126 = vadd.f32 %v4116, %v2670
  %v4127 = vadd.f32 %v4117, %v2671
  %v4128 = vsel %vm215, %v4118, 0.0
  %4129 = vadd.xlane.f32.xlu0 %v4128
  %v4130 = vpop.xlane.xlu0 %4129
  %v4131 = vsel %vm215, %v4119, 0.0
  %4132 = vadd.xlane.f32.xlu0 %v4131
  %v4133 = vpop.xlane.xlu0 %4132
  %v4134 = vsel %vm215, %v4120, 0.0
  %4135 = vadd.xlane.f32.xlu0 %v4134
  %v4136 = vpop.xlane.xlu0 %4135
  %v4137 = vsel %vm215, %v4121, 0.0
  %4138 = vadd.xlane.f32.xlu0 %v4137
  %v4139 = vpop.xlane.xlu0 %4138
  %v4140 = vsel %vm215, %v4122, 0.0
  %4141 = vadd.xlane.f32.xlu0 %v4140
  %v4142 = vpop.xlane.xlu0 %4141
  %v4143 = vsel %vm215, %v4123, 0.0
  %4144 = vadd.xlane.f32.xlu0 %v4143
  %v4145 = vpop.xlane.xlu0 %4144
  %v4146 = vsel %vm215, %v4124, 0.0
  %4147 = vadd.xlane.f32.xlu0 %v4146
  %v4148 = vpop.xlane.xlu0 %4147
  %v4149 = vsel %vm215, %v4125, 0.0
  %4150 = vadd.xlane.f32.xlu0 %v4149
  %v4151 = vpop.xlane.xlu0 %4150
  %v4152 = vsel %vm215, %v4126, 0.0
  %4153 = vadd.xlane.f32.xlu0 %v4152
  %v4154 = vpop.xlane.xlu0 %4153
  %v4155 = vsel %vm215, %v4127, 0.0
  %4156 = vadd.xlane.f32.xlu0 %v4155
  %v4157 = vpop.xlane.xlu0 %4156
  %v4158 = vmul.f32 %v4130, %v2097
  %v4159 = vmul.f32 %v4133, %v2097
  %v4160 = vmul.f32 %v4136, %v2097
  %v4161 = vmul.f32 %v4139, %v2097
  %v4162 = vmul.f32 %v4142, %v2097
  %v4163 = vmul.f32 %v4145, %v2097
  %v4164 = vmul.f32 %v4148, %v2097
  %v4165 = vmul.f32 %v4151, %v2097
  %v4166 = vmul.f32 %v4154, %v2097
  %v4167 = vmul.f32 %v4157, %v2097
  %v4168 = vsub.f32 %v4118, %v4158
  %v4169 = vsub.f32 %v4119, %v4159
  %v4170 = vsub.f32 %v4120, %v4160
  %v4171 = vsub.f32 %v4121, %v4161
  %v4172 = vsub.f32 %v4122, %v4162
  %v4173 = vsub.f32 %v4123, %v4163
  %v4174 = vsub.f32 %v4124, %v4164
  %v4175 = vsub.f32 %v4125, %v4165
  %v4176 = vsub.f32 %v4126, %v4166
  %v4177 = vsub.f32 %v4127, %v4167
  %v4178 = vmul.f32 %v4168, %v4168
  %v4179 = vmul.f32 %v4169, %v4169
  %v4180 = vmul.f32 %v4170, %v4170
  %v4181 = vmul.f32 %v4171, %v4171
  %v4182 = vmul.f32 %v4172, %v4172
  %v4183 = vmul.f32 %v4173, %v4173
  %v4184 = vmul.f32 %v4174, %v4174
  %v4185 = vmul.f32 %v4175, %v4175
  %v4186 = vmul.f32 %v4176, %v4176
  %v4187 = vmul.f32 %v4177, %v4177
  %v4188 = vsel %vm215, %v4178, 0.0
  %4189 = vadd.xlane.f32.xlu0 %v4188
  %v4190 = vpop.xlane.xlu0 %4189
  %v4191 = vsel %vm215, %v4179, 0.0
  %4192 = vadd.xlane.f32.xlu0 %v4191
  %v4193 = vpop.xlane.xlu0 %4192
  %v4194 = vsel %vm215, %v4180, 0.0
  %4195 = vadd.xlane.f32.xlu0 %v4194
  %v4196 = vpop.xlane.xlu0 %4195
  %v4197 = vsel %vm215, %v4181, 0.0
  %4198 = vadd.xlane.f32.xlu0 %v4197
  %v4199 = vpop.xlane.xlu0 %4198
  %v4200 = vsel %vm215, %v4182, 0.0
  %4201 = vadd.xlane.f32.xlu0 %v4200
  %v4202 = vpop.xlane.xlu0 %4201
  %v4203 = vsel %vm215, %v4183, 0.0
  %4204 = vadd.xlane.f32.xlu0 %v4203
  %v4205 = vpop.xlane.xlu0 %4204
  %v4206 = vsel %vm215, %v4184, 0.0
  %4207 = vadd.xlane.f32.xlu0 %v4206
  %v4208 = vpop.xlane.xlu0 %4207
  %v4209 = vsel %vm215, %v4185, 0.0
  %4210 = vadd.xlane.f32.xlu0 %v4209
  %v4211 = vpop.xlane.xlu0 %4210
  %v4212 = vsel %vm215, %v4186, 0.0
  %4213 = vadd.xlane.f32.xlu0 %v4212
  %v4214 = vpop.xlane.xlu0 %4213
  %v4215 = vsel %vm215, %v4187, 0.0
  %4216 = vadd.xlane.f32.xlu0 %v4215
  %v4217 = vpop.xlane.xlu0 %4216
  %v4218 = vmul.f32 %v4190, %v2097
  %v4219 = vmul.f32 %v4193, %v2097
  %v4220 = vmul.f32 %v4196, %v2097
  %v4221 = vmul.f32 %v4199, %v2097
  %v4222 = vmul.f32 %v4202, %v2097
  %v4223 = vmul.f32 %v4205, %v2097
  %v4224 = vmul.f32 %v4208, %v2097
  %v4225 = vmul.f32 %v4211, %v2097
  %v4226 = vmul.f32 %v4214, %v2097
  %v4227 = vmul.f32 %v4217, %v2097
  %v4228 = vadd.f32 %v4218, 1e-05
  %v4229 = vadd.f32 %v4219, 1e-05
  %v4230 = vadd.f32 %v4220, 1e-05
  %v4231 = vadd.f32 %v4221, 1e-05
  %v4232 = vadd.f32 %v4222, 1e-05
  %v4233 = vadd.f32 %v4223, 1e-05
  %v4234 = vadd.f32 %v4224, 1e-05
  %v4235 = vadd.f32 %v4225, 1e-05
  %v4236 = vadd.f32 %v4226, 1e-05
  %v4237 = vadd.f32 %v4227, 1e-05
  %v4238 = vrsqrt.pop %v4228
  %v4239 = vrsqrt.pop %v4229
  %v4240 = vrsqrt.pop %v4230
  %v4241 = vrsqrt.pop %v4231
  %v4242 = vrsqrt.pop %v4232
  %v4243 = vrsqrt.pop %v4233
  %v4244 = vrsqrt.pop %v4234
  %v4245 = vrsqrt.pop %v4235
  %v4246 = vrsqrt.pop %v4236
  %v4247 = vrsqrt.pop %v4237
  %v4248 = vmul.f32 %v4168, %v4238
  %v4249 = vmul.f32 %v4169, %v4239
  %v4250 = vmul.f32 %v4170, %v4240
  %v4251 = vmul.f32 %v4171, %v4241
  %v4252 = vmul.f32 %v4172, %v4242
  %v4253 = vmul.f32 %v4173, %v4243
  %v4254 = vmul.f32 %v4174, %v4244
  %v4255 = vmul.f32 %v4175, %v4245
  %v4256 = vmul.f32 %v4176, %v4246
  %v4257 = vmul.f32 %v4177, %v4247
  %v4258 = vlaneseq
  %v4259 = vshrl.u32 %v4258, 7
  %v4260 = vsub.s32 0, %v4259
  %v4261 = vrot.slane %v2714, %v4260
  %v4262 = vmul.f32 %v4248, %v4261
  %v4263 = vmul.f32 %v4249, %v4261
  %v4264 = vmul.f32 %v4250, %v4261
  %v4265 = vmul.f32 %v4251, %v4261
  %v4266 = vmul.f32 %v4252, %v4261
  %v4267 = vmul.f32 %v4253, %v4261
  %v4268 = vmul.f32 %v4254, %v4261
  %v4269 = vmul.f32 %v4255, %v4261
  %v4270 = vmul.f32 %v4256, %v4261
  %v4271 = vmul.f32 %v4257, %v4261
  %v4272 = vlaneseq
  %v4273 = vshrl.u32 %v4272, 7
  %v4274 = vsub.s32 0, %v4273
  %v4275 = vrot.slane %v2715, %v4274
  %v4276 = vadd.f32 %v4262, %v4275
  %v4277 = vadd.f32 %v4263, %v4275
  %v4278 = vadd.f32 %v4264, %v4275
  %v4279 = vadd.f32 %v4265, %v4275
  %v4280 = vadd.f32 %v4266, %v4275
  %v4281 = vadd.f32 %v4267, %v4275
  %v4282 = vadd.f32 %v4268, %v4275
  %v4283 = vadd.f32 %v4269, %v4275
  %v4284 = vadd.f32 %v4270, %v4275
  %v4285 = vadd.f32 %v4271, %v4275
  %v4286 = vlaneseq
  %v4287 = vshrl.u32 %v4286, 7
  %v4288 = vsub.s32 0, %v4287
  %v4289 = vrot.slane %v2712, %v4288
  %v4291 = vsel %vm215, %v4276, 0
  %v4294 = vsel %vm215, %v4277, 0
  %v4297 = vsel %vm215, %v4278, 0
  %v4300 = vsel %vm215, %v4279, 0
  %v4303 = vsel %vm215, %v4280, 0
  %v4306 = vsel %vm215, %v4281, 0
  %v4309 = vsel %vm215, %v4282, 0
  %v4312 = vsel %vm215, %v4283, 0
  %v4315 = vsel %vm215, %v4284, 0
  %v4318 = vsel %vm215, %v4285, 0
  %4320 = vmatprep.subr.mxu0 0.0
  %4321 = vmatpush1.msra.mxu0 %v2691
  %4322 = vmatprep.subr.mxu0 0.0
  %4323 = vmatpush1.msra.mxu0 %v2692
  %4324 = vmatprep.subr.mxu0 0.0
  %4325 = vmatpush1.msra.mxu0 %v2693
  %4326 = vmatprep.subr.mxu0 0.0
  %4327 = vmatpush1.msra.mxu0 %v2694
  %4328 = vmatprep.subr.mxu0 0.0
  %4329 = vmatpush1.msra.mxu0 0.0
  %4330 = vmatprep.subr.mxu0 0.0
  %4331 = vmatpush1.msra.mxu0 0.0
  %4332 = vmatprep.subr.mxu0 0.0
  %4333 = vmatpush1.msra.mxu0 0.0
  %4334 = vmatprep.subr.mxu0 0.0
  %4335 = vmatpush1.msra.mxu0 0.0
  %4336 = vmatprep.subr.mxu0 0.0
  %4337 = vmatpush1.msra.mxu0 0.0
  %4338 = vmatprep.subr.mxu0 0.0
  %4339 = vmatpush1.msra.mxu0 0.0
  %4340 = vmatprep.subr.mxu0 0.0
  %4341 = vmatpush1.msra.mxu0 0.0
  %4342 = vmatprep.subr.mxu0 0.0
  %4343 = vmatpush1.msra.mxu0 0.0
  %4344 = vmatprep.subr.mxu0 0.0
  %4345 = vmatpush1.msra.mxu0 0.0
  %4346 = vmatprep.subr.mxu0 0.0
  %4347 = vmatpush1.msra.mxu0 0.0
  %4348 = vmatprep.subr.mxu0 0.0
  %4349 = vmatpush1.msra.mxu0 0.0
  %4350 = vmatprep.subr.mxu0 0.0
  %4351 = vmatpush1.msra.mxu0 0.0
  %4352 = vmatprep.subr.mxu0 0.0
  %4353 = vmatpush1.msra.mxu0 0.0
  %4354 = vmatprep.subr.mxu0 0.0
  %4355 = vmatpush1.msra.mxu0 0.0
  %4356 = vmatprep.subr.mxu0 0.0
  %4357 = vmatpush1.msra.mxu0 0.0
  %4358 = vmatprep.subr.mxu0 0.0
  %4359 = vmatpush1.msra.mxu0 0.0
  %4360 = vmatprep.subr.mxu0 0.0
  %4361 = vmatpush1.msra.mxu0 0.0
  %4362 = vmatprep.subr.mxu0 0.0
  %4363 = vmatpush1.msra.mxu0 0.0
  %4364 = vmatprep.subr.mxu0 0.0
  %4365 = vmatpush1.msra.mxu0 0.0
  %4366 = vmatprep.subr.mxu0 0.0
  %4367 = vmatpush1.msra.mxu0 0.0
  %4368 = vmatprep.subr.mxu0 0.0
  %4369 = vmatpush1.msra.mxu0 0.0
  %4370 = vmatprep.subr.mxu0 0.0
  %4371 = vmatpush1.msra.mxu0 0.0
  %4372 = vmatprep.subr.mxu0 0.0
  %4373 = vmatpush1.msra.mxu0 0.0
  %4374 = vmatprep.subr.mxu0 0.0
  %4375 = vmatpush1.msra.mxu0 0.0
  %4376 = vmatprep.subr.mxu0 0.0
  %4377 = vmatpush1.msra.mxu0 0.0
  %4378 = vmatprep.subr.mxu0 0.0
  %4379 = vmatpush1.msra.mxu0 0.0
  %4380 = vmatprep.subr.mxu0 0.0
  %4381 = vmatpush1.msra.mxu0 0.0
  %4382 = vmatprep.subr.mxu0 0.0
  %4383 = vmatpush1.msra.mxu0 0.0
  %4384 = vmatprep.mubr.f32.mxu0 0.0
  %4385 = vmatmul.mubr.f32.gmra.mrb[0].mxu0 %v4291
  %v4386 = vpop.f32.mrb[0].mxu0
  %v4387 = vadd.f32 %v4289, %v4386
  %v4388 = vpop.f32.mrb[0].mxu0
  %4389 = vmatprep.mubr.f32.mxu0 0.0
  %4390 = vmatmul.mubr.f32.gmra.mrb[0].mxu0 %v4294
  %v4391 = vpop.f32.mrb[0].mxu0
  %v4392 = vadd.f32 %v4289, %v4391
  %v4393 = vpop.f32.mrb[0].mxu0
  %4394 = vmatprep.mubr.f32.mxu0 0.0
  %4395 = vmatmul.mubr.f32.gmra.mrb[0].mxu0 %v4297
  %v4396 = vpop.f32.mrb[0].mxu0
  %v4397 = vadd.f32 %v4289, %v4396
  %v4398 = vpop.f32.mrb[0].mxu0
  %4399 = vmatprep.mubr.f32.mxu0 0.0
  %4400 = vmatmul.mubr.f32.gmra.mrb[0].mxu0 %v4300
  %v4401 = vpop.f32.mrb[0].mxu0
  %v4402 = vadd.f32 %v4289, %v4401
  %v4403 = vpop.f32.mrb[0].mxu0
  %4404 = vmatprep.mubr.f32.mxu0 0.0
  %4405 = vmatmul.mubr.f32.gmra.mrb[0].mxu0 %v4303
  %v4406 = vpop.f32.mrb[0].mxu0
  %v4407 = vadd.f32 %v4289, %v4406
  %v4408 = vpop.f32.mrb[0].mxu0
  %4409 = vmatprep.mubr.f32.mxu0 0.0
  %4410 = vmatmul.mubr.f32.gmra.mrb[0].mxu0 %v4306
  %v4411 = vpop.f32.mrb[0].mxu0
  %v4412 = vadd.f32 %v4289, %v4411
  %v4413 = vpop.f32.mrb[0].mxu0
  %4414 = vmatprep.mubr.f32.mxu0 0.0
  %4415 = vmatmul.mubr.f32.gmra.mrb[0].mxu0 %v4309
  %v4416 = vpop.f32.mrb[0].mxu0
  %v4417 = vadd.f32 %v4289, %v4416
  %v4418 = vpop.f32.mrb[0].mxu0
  %4419 = vmatprep.mubr.f32.mxu0 0.0
  %4420 = vmatmul.mubr.f32.gmra.mrb[0].mxu0 %v4312
  %v4421 = vpop.f32.mrb[0].mxu0
  %v4422 = vadd.f32 %v4289, %v4421
  %v4423 = vpop.f32.mrb[0].mxu0
  %4424 = vmatprep.mubr.f32.mxu0 0.0
  %4425 = vmatmul.mubr.f32.gmra.mrb[0].mxu0 %v4315
  %v4426 = vpop.f32.mrb[0].mxu0
  %v4427 = vadd.f32 %v4289, %v4426
  %v4428 = vpop.f32.mrb[0].mxu0
  %4429 = vmatprep.mubr.f32.mxu0 0.0
  %4430 = vmatmul.mubr.f32.gmra.mrb[0].mxu0 %v4318
  %v4431 = vpop.f32.mrb[0].mxu0
  %v4432 = vadd.f32 %v4289, %v4431
  %v4433 = vpop.f32.mrb[0].mxu0
  %4434 = vdwg.mxu0
  %v4435 = vmax.f32 %v4387, 0.0
  %v4436 = vmax.f32 %v4392, 0.0
  %v4437 = vmax.f32 %v4397, 0.0
  %v4438 = vmax.f32 %v4402, 0.0
  %v4439 = vmax.f32 %v4407, 0.0
  %v4440 = vmax.f32 %v4412, 0.0
  %v4441 = vmax.f32 %v4417, 0.0
  %v4442 = vmax.f32 %v4422, 0.0
  %v4443 = vmax.f32 %v4427, 0.0
  %v4444 = vmax.f32 %v4432, 0.0
  %v4445 = vlaneseq
  %v4446 = vshrl.u32 %v4445, 7
  %v4447 = vsub.s32 0, %v4446
  %v4448 = vrot.slane %v2716, %v4447
  %4449 = vmatprep.subr.mxu0 0.0
  %4450 = vmatpush1.msra.mxu0 %v2696
  %4451 = vmatprep.subr.mxu0 0.0
  %4452 = vmatpush1.msra.mxu0 %v2697
  %4453 = vmatprep.subr.mxu0 0.0
  %4454 = vmatpush1.msra.mxu0 %v2698
  %4455 = vmatprep.subr.mxu0 0.0
  %4456 = vmatpush1.msra.mxu0 %v2699
  %4457 = vmatprep.subr.mxu0 0.0
  %4458 = vmatpush1.msra.mxu0 %v2700
  %4459 = vmatprep.subr.mxu0 0.0
  %4460 = vmatpush1.msra.mxu0 %v2701
  %4461 = vmatprep.subr.mxu0 0.0
  %4462 = vmatpush1.msra.mxu0 %v2702
  %4463 = vmatprep.subr.mxu0 0.0
  %4464 = vmatpush1.msra.mxu0 %v2703
  %4465 = vmatprep.subr.mxu0 0.0
  %4466 = vmatpush1.msra.mxu0 %v2704
  %4467 = vmatprep.subr.mxu0 0.0
  %4468 = vmatpush1.msra.mxu0 %v2705
  %4469 = vmatprep.subr.mxu0 0.0
  %4470 = vmatpush1.msra.mxu0 %v2706
  %4471 = vmatprep.subr.mxu0 0.0
  %4472 = vmatpush1.msra.mxu0 %v2707
  %4473 = vmatprep.subr.mxu0 0.0
  %4474 = vmatpush1.msra.mxu0 %v2708
  %4475 = vmatprep.subr.mxu0 0.0
  %4476 = vmatpush1.msra.mxu0 %v2709
  %4477 = vmatprep.subr.mxu0 0.0
  %4478 = vmatpush1.msra.mxu0 %v2710
  %4479 = vmatprep.subr.mxu0 0.0
  %4480 = vmatpush1.msra.mxu0 %v2711
  %4481 = vmatprep.subr.mxu0 0.0
  %4482 = vmatpush1.msra.mxu0 0.0
  %4483 = vmatprep.subr.mxu0 0.0
  %4484 = vmatpush1.msra.mxu0 0.0
  %4485 = vmatprep.subr.mxu0 0.0
  %4486 = vmatpush1.msra.mxu0 0.0
  %4487 = vmatprep.subr.mxu0 0.0
  %4488 = vmatpush1.msra.mxu0 0.0
  %4489 = vmatprep.subr.mxu0 0.0
  %4490 = vmatpush1.msra.mxu0 0.0
  %4491 = vmatprep.subr.mxu0 0.0
  %4492 = vmatpush1.msra.mxu0 0.0
  %4493 = vmatprep.subr.mxu0 0.0
  %4494 = vmatpush1.msra.mxu0 0.0
  %4495 = vmatprep.subr.mxu0 0.0
  %4496 = vmatpush1.msra.mxu0 0.0
  %4497 = vmatprep.subr.mxu0 0.0
  %4498 = vmatpush1.msra.mxu0 0.0
  %4499 = vmatprep.subr.mxu0 0.0
  %4500 = vmatpush1.msra.mxu0 0.0
  %4501 = vmatprep.subr.mxu0 0.0
  %4502 = vmatpush1.msra.mxu0 0.0
  %4503 = vmatprep.subr.mxu0 0.0
  %4504 = vmatpush1.msra.mxu0 0.0
  %4505 = vmatprep.subr.mxu0 0.0
  %4506 = vmatpush1.msra.mxu0 0.0
  %4507 = vmatprep.subr.mxu0 0.0
  %4508 = vmatpush1.msra.mxu0 0.0
  %4509 = vmatprep.subr.mxu0 0.0
  %4510 = vmatpush1.msra.mxu0 0.0
  %4511 = vmatprep.subr.mxu0 0.0
  %4512 = vmatpush1.msra.mxu0 0.0
  %4513 = vmatprep.mubr.f32.mxu0 0.0
  %4514 = vmatmul.mubr.f32.gmra.mrb[0].mxu0 %v4435
  %v4515 = vpop.f32.mrb[0].mxu0
  %v4516 = vadd.f32 %v4448, %v4515
  %v4517 = vpop.f32.mrb[0].mxu0
  %4518 = vmatprep.mubr.f32.mxu0 0.0
  %4519 = vmatmul.mubr.f32.gmra.mrb[0].mxu0 %v4436
  %v4520 = vpop.f32.mrb[0].mxu0
  %v4521 = vadd.f32 %v4448, %v4520
  %v4522 = vpop.f32.mrb[0].mxu0
  %4523 = vmatprep.mubr.f32.mxu0 0.0
  %4524 = vmatmul.mubr.f32.gmra.mrb[0].mxu0 %v4437
  %v4525 = vpop.f32.mrb[0].mxu0
  %v4526 = vadd.f32 %v4448, %v4525
  %v4527 = vpop.f32.mrb[0].mxu0
  %4528 = vmatprep.mubr.f32.mxu0 0.0
  %4529 = vmatmul.mubr.f32.gmra.mrb[0].mxu0 %v4438
  %v4530 = vpop.f32.mrb[0].mxu0
  %v4531 = vadd.f32 %v4448, %v4530
  %v4532 = vpop.f32.mrb[0].mxu0
  %4533 = vmatprep.mubr.f32.mxu0 0.0
  %4534 = vmatmul.mubr.f32.gmra.mrb[0].mxu0 %v4439
  %v4535 = vpop.f32.mrb[0].mxu0
  %v4536 = vadd.f32 %v4448, %v4535
  %v4537 = vpop.f32.mrb[0].mxu0
  %4538 = vmatprep.mubr.f32.mxu0 0.0
  %4539 = vmatmul.mubr.f32.gmra.mrb[0].mxu0 %v4440
  %v4540 = vpop.f32.mrb[0].mxu0
  %v4541 = vadd.f32 %v4448, %v4540
  %v4542 = vpop.f32.mrb[0].mxu0
  %4543 = vmatprep.mubr.f32.mxu0 0.0
  %4544 = vmatmul.mubr.f32.gmra.mrb[0].mxu0 %v4441
  %v4545 = vpop.f32.mrb[0].mxu0
  %v4546 = vadd.f32 %v4448, %v4545
  %v4547 = vpop.f32.mrb[0].mxu0
  %4548 = vmatprep.mubr.f32.mxu0 0.0
  %4549 = vmatmul.mubr.f32.gmra.mrb[0].mxu0 %v4442
  %v4550 = vpop.f32.mrb[0].mxu0
  %v4551 = vadd.f32 %v4448, %v4550
  %v4552 = vpop.f32.mrb[0].mxu0
  %4553 = vmatprep.mubr.f32.mxu0 0.0
  %4554 = vmatmul.mubr.f32.gmra.mrb[0].mxu0 %v4443
  %v4555 = vpop.f32.mrb[0].mxu0
  %v4556 = vadd.f32 %v4448, %v4555
  %v4557 = vpop.f32.mrb[0].mxu0
  %4558 = vmatprep.mubr.f32.mxu0 0.0
  %4559 = vmatmul.mubr.f32.gmra.mrb[0].mxu0 %v4444
  %v4560 = vpop.f32.mrb[0].mxu0
  %v4561 = vadd.f32 %v4448, %v4560
  %v4562 = vpop.f32.mrb[0].mxu0
  %4563 = vdwg.mxu0
  %v4564 = vadd.f32 %v4516, %v4276
  %v4565 = vadd.f32 %v4521, %v4277
  %v4566 = vadd.f32 %v4526, %v4278
  %v4567 = vadd.f32 %v4531, %v4279
  %v4568 = vadd.f32 %v4536, %v4280
  %v4569 = vadd.f32 %v4541, %v4281
  %v4570 = vadd.f32 %v4546, %v4282
  %v4571 = vadd.f32 %v4551, %v4283
  %v4572 = vadd.f32 %v4556, %v4284
  %v4573 = vadd.f32 %v4561, %v4285
  %v4574 = vsel %vm215, %v4564, 0.0
  %4575 = vadd.xlane.f32.xlu0 %v4574
  %v4576 = vpop.xlane.xlu0 %4575
  %v4577 = vsel %vm215, %v4565, 0.0
  %4578 = vadd.xlane.f32.xlu0 %v4577
  %v4579 = vpop.xlane.xlu0 %4578
  %v4580 = vsel %vm215, %v4566, 0.0
  %4581 = vadd.xlane.f32.xlu0 %v4580
  %v4582 = vpop.xlane.xlu0 %4581
  %v4583 = vsel %vm215, %v4567, 0.0
  %4584 = vadd.xlane.f32.xlu0 %v4583
  %v4585 = vpop.xlane.xlu0 %4584
  %v4586 = vsel %vm215, %v4568, 0.0
  %4587 = vadd.xlane.f32.xlu0 %v4586
  %v4588 = vpop.xlane.xlu0 %4587
  %v4589 = vsel %vm215, %v4569, 0.0
  %4590 = vadd.xlane.f32.xlu0 %v4589
  %v4591 = vpop.xlane.xlu0 %4590
  %v4592 = vsel %vm215, %v4570, 0.0
  %4593 = vadd.xlane.f32.xlu0 %v4592
  %v4594 = vpop.xlane.xlu0 %4593
  %v4595 = vsel %vm215, %v4571, 0.0
  %4596 = vadd.xlane.f32.xlu0 %v4595
  %v4597 = vpop.xlane.xlu0 %4596
  %v4598 = vsel %vm215, %v4572, 0.0
  %4599 = vadd.xlane.f32.xlu0 %v4598
  %v4600 = vpop.xlane.xlu0 %4599
  %v4601 = vsel %vm215, %v4573, 0.0
  %4602 = vadd.xlane.f32.xlu0 %v4601
  %v4603 = vpop.xlane.xlu0 %4602
  %v4604 = vmul.f32 %v4576, %v2097
  %v4605 = vmul.f32 %v4579, %v2097
  %v4606 = vmul.f32 %v4582, %v2097
  %v4607 = vmul.f32 %v4585, %v2097
  %v4608 = vmul.f32 %v4588, %v2097
  %v4609 = vmul.f32 %v4591, %v2097
  %v4610 = vmul.f32 %v4594, %v2097
  %v4611 = vmul.f32 %v4597, %v2097
  %v4612 = vmul.f32 %v4600, %v2097
  %v4613 = vmul.f32 %v4603, %v2097
  %v4614 = vsub.f32 %v4564, %v4604
  %v4615 = vsub.f32 %v4565, %v4605
  %v4616 = vsub.f32 %v4566, %v4606
  %v4617 = vsub.f32 %v4567, %v4607
  %v4618 = vsub.f32 %v4568, %v4608
  %v4619 = vsub.f32 %v4569, %v4609
  %v4620 = vsub.f32 %v4570, %v4610
  %v4621 = vsub.f32 %v4571, %v4611
  %v4622 = vsub.f32 %v4572, %v4612
  %v4623 = vsub.f32 %v4573, %v4613
  %v4624 = vmul.f32 %v4614, %v4614
  %v4625 = vmul.f32 %v4615, %v4615
  %v4626 = vmul.f32 %v4616, %v4616
  %v4627 = vmul.f32 %v4617, %v4617
  %v4628 = vmul.f32 %v4618, %v4618
  %v4629 = vmul.f32 %v4619, %v4619
  %v4630 = vmul.f32 %v4620, %v4620
  %v4631 = vmul.f32 %v4621, %v4621
  %v4632 = vmul.f32 %v4622, %v4622
  %v4633 = vmul.f32 %v4623, %v4623
  %v4634 = vsel %vm215, %v4624, 0.0
  %4635 = vadd.xlane.f32.xlu0 %v4634
  %v4636 = vpop.xlane.xlu0 %4635
  %v4637 = vsel %vm215, %v4625, 0.0
  %4638 = vadd.xlane.f32.xlu0 %v4637
  %v4639 = vpop.xlane.xlu0 %4638
  %v4640 = vsel %vm215, %v4626, 0.0
  %4641 = vadd.xlane.f32.xlu0 %v4640
  %v4642 = vpop.xlane.xlu0 %4641
  %v4643 = vsel %vm215, %v4627, 0.0
  %4644 = vadd.xlane.f32.xlu0 %v4643
  %v4645 = vpop.xlane.xlu0 %4644
  %v4646 = vsel %vm215, %v4628, 0.0
  %4647 = vadd.xlane.f32.xlu0 %v4646
  %v4648 = vpop.xlane.xlu0 %4647
  %v4649 = vsel %vm215, %v4629, 0.0
  %4650 = vadd.xlane.f32.xlu0 %v4649
  %v4651 = vpop.xlane.xlu0 %4650
  %v4652 = vsel %vm215, %v4630, 0.0
  %4653 = vadd.xlane.f32.xlu0 %v4652
  %v4654 = vpop.xlane.xlu0 %4653
  %v4655 = vsel %vm215, %v4631, 0.0
  %4656 = vadd.xlane.f32.xlu0 %v4655
  %v4657 = vpop.xlane.xlu0 %4656
  %v4658 = vsel %vm215, %v4632, 0.0
  %4659 = vadd.xlane.f32.xlu0 %v4658
  %v4660 = vpop.xlane.xlu0 %4659
  %v4661 = vsel %vm215, %v4633, 0.0
  %4662 = vadd.xlane.f32.xlu0 %v4661
  %v4663 = vpop.xlane.xlu0 %4662
  %v4664 = vmul.f32 %v4636, %v2097
  %v4665 = vmul.f32 %v4639, %v2097
  %v4666 = vmul.f32 %v4642, %v2097
  %v4667 = vmul.f32 %v4645, %v2097
  %v4668 = vmul.f32 %v4648, %v2097
  %v4669 = vmul.f32 %v4651, %v2097
  %v4670 = vmul.f32 %v4654, %v2097
  %v4671 = vmul.f32 %v4657, %v2097
  %v4672 = vmul.f32 %v4660, %v2097
  %v4673 = vmul.f32 %v4663, %v2097
  %v4674 = vadd.f32 %v4664, 1e-05
  %v4675 = vadd.f32 %v4665, 1e-05
  %v4676 = vadd.f32 %v4666, 1e-05
  %v4677 = vadd.f32 %v4667, 1e-05
  %v4678 = vadd.f32 %v4668, 1e-05
  %v4679 = vadd.f32 %v4669, 1e-05
  %v4680 = vadd.f32 %v4670, 1e-05
  %v4681 = vadd.f32 %v4671, 1e-05
  %v4682 = vadd.f32 %v4672, 1e-05
  %v4683 = vadd.f32 %v4673, 1e-05
  %v4684 = vrsqrt.pop %v4674
  %v4685 = vrsqrt.pop %v4675
  %v4686 = vrsqrt.pop %v4676
  %v4687 = vrsqrt.pop %v4677
  %v4688 = vrsqrt.pop %v4678
  %v4689 = vrsqrt.pop %v4679
  %v4690 = vrsqrt.pop %v4680
  %v4691 = vrsqrt.pop %v4681
  %v4692 = vrsqrt.pop %v4682
  %v4693 = vrsqrt.pop %v4683
  %v4694 = vmul.f32 %v4614, %v4684
  %v4695 = vmul.f32 %v4615, %v4685
  %v4696 = vmul.f32 %v4616, %v4686
  %v4697 = vmul.f32 %v4617, %v4687
  %v4698 = vmul.f32 %v4618, %v4688
  %v4699 = vmul.f32 %v4619, %v4689
  %v4700 = vmul.f32 %v4620, %v4690
  %v4701 = vmul.f32 %v4621, %v4691
  %v4702 = vmul.f32 %v4622, %v4692
  %v4703 = vmul.f32 %v4623, %v4693
  %v4704 = vlaneseq
  %v4705 = vshrl.u32 %v4704, 7
  %v4706 = vsub.s32 0, %v4705
  %v4707 = vrot.slane %v2717, %v4706
  %v4708 = vmul.f32 %v4694, %v4707
  %v4709 = vmul.f32 %v4695, %v4707
  %v4710 = vmul.f32 %v4696, %v4707
  %v4711 = vmul.f32 %v4697, %v4707
  %v4712 = vmul.f32 %v4698, %v4707
  %v4713 = vmul.f32 %v4699, %v4707
  %v4714 = vmul.f32 %v4700, %v4707
  %v4715 = vmul.f32 %v4701, %v4707
  %v4716 = vmul.f32 %v4702, %v4707
  %v4717 = vmul.f32 %v4703, %v4707
  %v4718 = vlaneseq
  %v4719 = vshrl.u32 %v4718, 7
  %v4720 = vsub.s32 0, %v4719
  %v4721 = vrot.slane %v2718, %v4720
  %v4722 = vadd.f32 %v4708, %v4721
  %v4723 = vadd.f32 %v4709, %v4721
  %v4724 = vadd.f32 %v4710, %v4721
  %v4725 = vadd.f32 %v4711, %v4721
  %v4726 = vadd.f32 %v4712, %v4721
  %v4727 = vadd.f32 %v4713, %v4721
  %v4728 = vadd.f32 %v4714, %v4721
  %v4729 = vadd.f32 %v4715, %v4721
  %v4730 = vadd.f32 %v4716, %v4721
  %v4731 = vadd.f32 %v4717, %v4721
  %vm4732 = vcmp.lt.s32.totalorder %v362, 8
  %vm4733 = vcmp.lt.s32.totalorder %v363, 8
  %v4734 = vmul.u32 %v362, 10
  %v4735 = vmul.u32 %v363, 10
  %v4736 = vsub.s32 %v362, 8
  %v4737 = vmul.u32 %v4736, 10
  %v4738 = vadd.s32 %v4737, 9
  %v4739 = vadd.s32 %v4734, 9
  %v4740 = vsel %vm4732, %v4734, %v4738
  %v4741 = vsel %vm4733, %v4735, %v4739
  %vm4742 = vcmp.eq.s32.totalorder %v373, %v4740
  %vm4743 = vcmp.eq.s32.totalorder %v373, %v4741
  %v4744 = vsel %vm4742, 1.0, 0.0
  %v4745 = vsel %vm4743, 1.0, 0.0
  %v4747 = vsel %vm1007, %v4744, 0
  %v4750 = vsel %vm1007, %v4745, 0
  %4752 = vmatprep.subr.mxu0 0.0
  %4753 = vmatpush1.msra.mxu0 %v4722
  %4754 = vmatprep.subr.mxu0 0.0
  %4755 = vmatpush1.msra.mxu0 %v4723
  %4756 = vmatprep.subr.mxu0 0.0
  %4757 = vmatpush1.msra.mxu0 %v4724
  %4758 = vmatprep.subr.mxu0 0.0
  %4759 = vmatpush1.msra.mxu0 %v4725
  %4760 = vmatprep.subr.mxu0 0.0
  %4761 = vmatpush1.msra.mxu0 %v4726
  %4762 = vmatprep.subr.mxu0 0.0
  %4763 = vmatpush1.msra.mxu0 %v4727
  %4764 = vmatprep.subr.mxu0 0.0
  %4765 = vmatpush1.msra.mxu0 %v4728
  %4766 = vmatprep.subr.mxu0 0.0
  %4767 = vmatpush1.msra.mxu0 %v4729
  %4768 = vmatprep.subr.mxu0 0.0
  %4769 = vmatpush1.msra.mxu0 %v4730
  %4770 = vmatprep.subr.mxu0 0.0
  %4771 = vmatpush1.msra.mxu0 %v4731
  %4772 = vmatprep.subr.mxu0 0.0
  %4773 = vmatpush1.msra.mxu0 0.0
  %4774 = vmatprep.subr.mxu0 0.0
  %4775 = vmatpush1.msra.mxu0 0.0
  %4776 = vmatprep.subr.mxu0 0.0
  %4777 = vmatpush1.msra.mxu0 0.0
  %4778 = vmatprep.subr.mxu0 0.0
  %4779 = vmatpush1.msra.mxu0 0.0
  %4780 = vmatprep.subr.mxu0 0.0
  %4781 = vmatpush1.msra.mxu0 0.0
  %4782 = vmatprep.subr.mxu0 0.0
  %4783 = vmatpush1.msra.mxu0 0.0
  %4784 = vmatprep.subr.mxu0 0.0
  %4785 = vmatpush1.msra.mxu0 0.0
  %4786 = vmatprep.subr.mxu0 0.0
  %4787 = vmatpush1.msra.mxu0 0.0
  %4788 = vmatprep.subr.mxu0 0.0
  %4789 = vmatpush1.msra.mxu0 0.0
  %4790 = vmatprep.subr.mxu0 0.0
  %4791 = vmatpush1.msra.mxu0 0.0
  %4792 = vmatprep.subr.mxu0 0.0
  %4793 = vmatpush1.msra.mxu0 0.0
  %4794 = vmatprep.subr.mxu0 0.0
  %4795 = vmatpush1.msra.mxu0 0.0
  %4796 = vmatprep.subr.mxu0 0.0
  %4797 = vmatpush1.msra.mxu0 0.0
  %4798 = vmatprep.subr.mxu0 0.0
  %4799 = vmatpush1.msra.mxu0 0.0
  %4800 = vmatprep.subr.mxu0 0.0
  %4801 = vmatpush1.msra.mxu0 0.0
  %4802 = vmatprep.subr.mxu0 0.0
  %4803 = vmatpush1.msra.mxu0 0.0
  %4804 = vmatprep.subr.mxu0 0.0
  %4805 = vmatpush1.msra.mxu0 0.0
  %4806 = vmatprep.subr.mxu0 0.0
  %4807 = vmatpush1.msra.mxu0 0.0
  %4808 = vmatprep.subr.mxu0 0.0
  %4809 = vmatpush1.msra.mxu0 0.0
  %4810 = vmatprep.subr.mxu0 0.0
  %4811 = vmatpush1.msra.mxu0 0.0
  %4812 = vmatprep.subr.mxu0 0.0
  %4813 = vmatpush1.msra.mxu0 0.0
  %4814 = vmatprep.subr.mxu0 0.0
  %4815 = vmatpush1.msra.mxu0 0.0
  %4816 = vmatprep.mubr.f32.mxu0 0.0
  %4817 = vmatmul.mubr.f32.gmra.mrb[0].mxu0 %v4747
  %v4818 = vpop.f32.mrb[0].mxu0
  %v4819 = vadd.f32 0.0, %v4818
  %v4820 = vpop.f32.mrb[0].mxu0
  %4821 = vmatprep.mubr.f32.mxu0 0.0
  %4822 = vmatmul.mubr.f32.gmra.mrb[0].mxu0 %v4750
  %v4823 = vpop.f32.mrb[0].mxu0
  %v4824 = vadd.f32 0.0, %v4823
  %v4825 = vpop.f32.mrb[0].mxu0
  %4826 = vdwg.mxu0
  %s4827 = scalar_lea.vmem %s3, 32
  %v4828 = vld [vmem:[%s4827] sm:$0xff]
  %v4829 = vld [vmem:[%s4827 + $0x8] sm:$0xff]
  %v4830 = vld [vmem:[%s4827 + $0x10] sm:$0xff]
  %v4831 = vld [vmem:[%s4827 + $0x18] sm:$0xff]
  %v4832 = vld [vmem:[%s8 + $0x1] sm:$0x1]
  %v4833 = vlaneseq
  %v4834 = vshrl.u32 %v4833, 7
  %v4835 = vsub.s32 0, %v4834
  %v4836 = vrot.slane %v4832, %v4835
  %v4838 = vsel %vm215, %v4819, 0
  %v4841 = vsel %vm215, %v4824, 0
  %4843 = vmatprep.subr.mxu0 0.0
  %4844 = vmatpush1.msra.mxu0 %v4828
  %4845 = vmatprep.subr.mxu0 0.0
  %4846 = vmatpush1.msra.mxu0 %v4829
  %4847 = vmatprep.subr.mxu0 0.0
  %4848 = vmatpush1.msra.mxu0 %v4830
  %4849 = vmatprep.subr.mxu0 0.0
  %4850 = vmatpush1.msra.mxu0 %v4831
  %4851 = vmatprep.subr.mxu0 0.0
  %4852 = vmatpush1.msra.mxu0 0.0
  %4853 = vmatprep.subr.mxu0 0.0
  %4854 = vmatpush1.msra.mxu0 0.0
  %4855 = vmatprep.subr.mxu0 0.0
  %4856 = vmatpush1.msra.mxu0 0.0
  %4857 = vmatprep.subr.mxu0 0.0
  %4858 = vmatpush1.msra.mxu0 0.0
  %4859 = vmatprep.subr.mxu0 0.0
  %4860 = vmatpush1.msra.mxu0 0.0
  %4861 = vmatprep.subr.mxu0 0.0
  %4862 = vmatpush1.msra.mxu0 0.0
  %4863 = vmatprep.subr.mxu0 0.0
  %4864 = vmatpush1.msra.mxu0 0.0
  %4865 = vmatprep.subr.mxu0 0.0
  %4866 = vmatpush1.msra.mxu0 0.0
  %4867 = vmatprep.subr.mxu0 0.0
  %4868 = vmatpush1.msra.mxu0 0.0
  %4869 = vmatprep.subr.mxu0 0.0
  %4870 = vmatpush1.msra.mxu0 0.0
  %4871 = vmatprep.subr.mxu0 0.0
  %4872 = vmatpush1.msra.mxu0 0.0
  %4873 = vmatprep.subr.mxu0 0.0
  %4874 = vmatpush1.msra.mxu0 0.0
  %4875 = vmatprep.subr.mxu0 0.0
  %4876 = vmatpush1.msra.mxu0 0.0
  %4877 = vmatprep.subr.mxu0 0.0
  %4878 = vmatpush1.msra.mxu0 0.0
  %4879 = vmatprep.subr.mxu0 0.0
  %4880 = vmatpush1.msra.mxu0 0.0
  %4881 = vmatprep.subr.mxu0 0.0
  %4882 = vmatpush1.msra.mxu0 0.0
  %4883 = vmatprep.subr.mxu0 0.0
  %4884 = vmatpush1.msra.mxu0 0.0
  %4885 = vmatprep.subr.mxu0 0.0
  %4886 = vmatpush1.msra.mxu0 0.0
  %4887 = vmatprep.subr.mxu0 0.0
  %4888 = vmatpush1.msra.mxu0 0.0
  %4889 = vmatprep.subr.mxu0 0.0
  %4890 = vmatpush1.msra.mxu0 0.0
  %4891 = vmatprep.subr.mxu0 0.0
  %4892 = vmatpush1.msra.mxu0 0.0
  %4893 = vmatprep.subr.mxu0 0.0
  %4894 = vmatpush1.msra.mxu0 0.0
  %4895 = vmatprep.subr.mxu0 0.0
  %4896 = vmatpush1.msra.mxu0 0.0
  %4897 = vmatprep.subr.mxu0 0.0
  %4898 = vmatpush1.msra.mxu0 0.0
  %4899 = vmatprep.subr.mxu0 0.0
  %4900 = vmatpush1.msra.mxu0 0.0
  %4901 = vmatprep.subr.mxu0 0.0
  %4902 = vmatpush1.msra.mxu0 0.0
  %4903 = vmatprep.subr.mxu0 0.0
  %4904 = vmatpush1.msra.mxu0 0.0
  %4905 = vmatprep.subr.mxu0 0.0
  %4906 = vmatpush1.msra.mxu0 0.0
  %4907 = vmatprep.mubr.f32.mxu0 0.0
  %4908 = vmatmul.mubr.f32.gmra.mrb[0].mxu0 %v4838
  %v4909 = vpop.f32.mrb[0].mxu0
  %v4910 = vadd.f32 %v4836, %v4909
  %v4911 = vpop.f32.mrb[0].mxu0
  %4912 = vmatprep.mubr.f32.mxu0 0.0
  %4913 = vmatmul.mubr.f32.gmra.mrb[0].mxu0 %v4841
  %v4914 = vpop.f32.mrb[0].mxu0
  %v4915 = vadd.f32 %v4836, %v4914
  %v4916 = vpop.f32.mrb[0].mxu0
  %4917 = vdwg.mxu0
  %s4918 = scalar_lea.vmem %s6, 64
  %v4919 = vld [vmem:[%s4918] sm:$0xff]
  %v4920 = vld [vmem:[%s4918 + $0x8] sm:$0xff]
  %v4921 = vld [vmem:[%s4918 + $0x10] sm:$0xff]
  %v4922 = vld [vmem:[%s4918 + $0x18] sm:$0xff]
  %v4923 = vld [vmem:[%s9 + $0x2] sm:$0x1]
  %v4924 = vld [vmem:[%s9 + $0x3] sm:$0x1]
  %v4925 = vld [vmem:[%s8 + $0x2] sm:$0x1]
  %v4926 = vlaneseq
  %v4927 = vshrl.u32 %v4926, 7
  %v4928 = vsub.s32 0, %v4927
  %v4929 = vrot.slane %v4923, %v4928
  %v4931 = vsel %vm215, %v4910, 0
  %4933 = vmatprep.subr.mxu0 0.0
  %4934 = vmatpush1.msra.mxu0 %v4919
  %4935 = vmatprep.subr.mxu0 0.0
  %4936 = vmatpush1.msra.mxu0 %v4920
  %4937 = vmatprep.subr.mxu0 0.0
  %4938 = vmatpush1.msra.mxu0 %v4921
  %4939 = vmatprep.subr.mxu0 0.0
  %4940 = vmatpush1.msra.mxu0 %v4922
  %4941 = vmatprep.subr.mxu0 0.0
  %4942 = vmatpush1.msra.mxu0 0.0
  %4943 = vmatprep.subr.mxu0 0.0
  %4944 = vmatpush1.msra.mxu0 0.0
  %4945 = vmatprep.subr.mxu0 0.0
  %4946 = vmatpush1.msra.mxu0 0.0
  %4947 = vmatprep.subr.mxu0 0.0
  %4948 = vmatpush1.msra.mxu0 0.0
  %4949 = vmatprep.subr.mxu0 0.0
  %4950 = vmatpush1.msra.mxu0 0.0
  %4951 = vmatprep.subr.mxu0 0.0
  %4952 = vmatpush1.msra.mxu0 0.0
  %4953 = vmatprep.subr.mxu0 0.0
  %4954 = vmatpush1.msra.mxu0 0.0
  %4955 = vmatprep.subr.mxu0 0.0
  %4956 = vmatpush1.msra.mxu0 0.0
  %4957 = vmatprep.subr.mxu0 0.0
  %4958 = vmatpush1.msra.mxu0 0.0
  %4959 = vmatprep.subr.mxu0 0.0
  %4960 = vmatpush1.msra.mxu0 0.0
  %4961 = vmatprep.subr.mxu0 0.0
  %4962 = vmatpush1.msra.mxu0 0.0
  %4963 = vmatprep.subr.mxu0 0.0
  %4964 = vmatpush1.msra.mxu0 0.0
  %4965 = vmatprep.subr.mxu0 0.0
  %4966 = vmatpush1.msra.mxu0 0.0
  %4967 = vmatprep.subr.mxu0 0.0
  %4968 = vmatpush1.msra.mxu0 0.0
  %4969 = vmatprep.subr.mxu0 0.0
  %4970 = vmatpush1.msra.mxu0 0.0
  %4971 = vmatprep.subr.mxu0 0.0
  %4972 = vmatpush1.msra.mxu0 0.0
  %4973 = vmatprep.subr.mxu0 0.0
  %4974 = vmatpush1.msra.mxu0 0.0
  %4975 = vmatprep.subr.mxu0 0.0
  %4976 = vmatpush1.msra.mxu0 0.0
  %4977 = vmatprep.subr.mxu0 0.0
  %4978 = vmatpush1.msra.mxu0 0.0
  %4979 = vmatprep.subr.mxu0 0.0
  %4980 = vmatpush1.msra.mxu0 0.0
  %4981 = vmatprep.subr.mxu0 0.0
  %4982 = vmatpush1.msra.mxu0 0.0
  %4983 = vmatprep.subr.mxu0 0.0
  %4984 = vmatpush1.msra.mxu0 0.0
  %4985 = vmatprep.subr.mxu0 0.0
  %4986 = vmatpush1.msra.mxu0 0.0
  %4987 = vmatprep.subr.mxu0 0.0
  %4988 = vmatpush1.msra.mxu0 0.0
  %4989 = vmatprep.subr.mxu0 0.0
  %4990 = vmatpush1.msra.mxu0 0.0
  %4991 = vmatprep.subr.mxu0 0.0
  %4992 = vmatpush1.msra.mxu0 0.0
  %4993 = vmatprep.subr.mxu0 0.0
  %4994 = vmatpush1.msra.mxu0 0.0
  %4995 = vmatprep.subr.mxu0 0.0
  %4996 = vmatpush1.msra.mxu0 0.0
  %4997 = vmatprep.mubr.f32.mxu0 0.0
  %4998 = vmatmul.mubr.f32.gmra.mrb[0].mxu0 %v4931
  %v4999 = vpop.f32.mrb[0].mxu0
  %v5000 = vadd.f32 %v4929, %v4999
  %v5001 = vpop.f32.mrb[0].mxu0
  %5002 = vdwg.mxu0
  %v5003 = vmax.f32 %v5000, 0.0
  %v5004 = vlaneseq
  %v5005 = vshrl.u32 %v5004, 7
  %v5006 = vsub.s32 0, %v5005
  %v5007 = vrot.slane %v4924, %v5006
  %v5008 = vmul.f32 %v5003, %v5007
  %5009 = vadd.xlane.f32.xlu0 %v5008
  %v5010 = vpop.xlane.xlu0 %5009
  %v5011 = vlaneseq
  %v5012 = vshrl.u32 %v5011, 7
  %v5013 = vsub.s32 0, %v5012
  %v5014 = vrot.slane %v4925, %v5013
  %v5015 = vadd.f32 %v5010, %v5014
  %5017 = vset.pattern.permute.xlu0 0
  %5018 = vperm.xlu0 %5017, %v5015
  %v5019 = vpop.permute.xlu0 %5018
  %v5021 = vsel %vm215, %v4915, %v5019
  %vm5022 = vcmask 523264
  %v5023 = vsel %vm5022, %v5021, 0.0
  %5024 = vst [vmem:[%s10] sm:$0xff] %v5023
  // Predicated region
  $region42: #{_lambda_.1} parent=0 // pred_check
    _
  $region43: #{_lambda_.1} parent=0 // pred_check_branch
    %5026 = sbr.rel (0) target = $region45
  $region44: #{_lambda_.1} parent=0 // pred_region
    _
  $region45: #{_lambda_.1} parent=0 // pred_fallthru
    _
  // Predicated region
  $region46: #{_lambda_.1} parent=0 // pred_check
    _
  $region47: #{_lambda_.1} parent=0 // pred_check_branch
    %5028 = sbr.rel (0) target = $region49
  $region48: #{_lambda_.1} parent=0 // pred_region
    _
  $region49: #{_lambda_.1} parent=0 // pred_fallthru
    _

</llo_original>
